<compile_context>
chip_gen: v7x
topology: tpu7x:2x2x1
jax: 0.10.0
libtpu: 0.0.40
codegen_flags: <defaults>
</compile_context>

<pallas_src>
import math
from functools import partial

import jax
import jax.numpy as jnp
from jax.experimental import pallas as pl
from jax.experimental.pallas import tpu as pltpu  # noqa: F401  (kept for TPU-specific tuning hooks)


# ---------------------------------------------------------------------------
# In-kernel helpers (all f32 elementwise math)
# ---------------------------------------------------------------------------

def _ln(x, g, b, eps):
    mean = jnp.mean(x, axis=-1, keepdims=True)
    var = jnp.mean(jnp.square(x - mean), axis=-1, keepdims=True)
    return (x - mean) * jax.lax.rsqrt(var + eps) * g + b


def _gelu(x):
    # tanh approximation of GELU.
    # TODO(synk): HF BERT default "gelu" is the exact erf form; swap in lax.erf for bit-match.
    return 0.5 * x * (1.0 + jnp.tanh(0.7978845608028654 * (x + 0.044715 * x * x * x)))


# ---------------------------------------------------------------------------
# Kernel 1: fused embedding add (pos + token-type) + LayerNorm
# ---------------------------------------------------------------------------

def _emb_kernel(word_ref, pos_ref, type_ref, g_ref, b_ref, o_ref, *, batch, eps):
    # word_ref: (B*S, H) gathered word embeddings; pos_ref: (S, H); type_ref: (1, H)
    pos_full = jnp.concatenate([pos_ref[...]] * batch, axis=0)      # (B*S, H), sublane concat
    x = word_ref[...] + pos_full + type_ref[...]
    o_ref[...] = _ln(x, g_ref[...], b_ref[...], eps)


def embed_layernorm(word, pos, type_row, gamma, beta, *, batch, eps=1e-12):
    M, H = word.shape
    return pl.pallas_call(
        partial(_emb_kernel, batch=batch, eps=eps),
        out_shape=jax.ShapeDtypeStruct((M, H), jnp.float32),
    )(word, pos, type_row, gamma, beta)


# ---------------------------------------------------------------------------
# Kernel 2: one fully-fused transformer layer over the flattened batch
# ---------------------------------------------------------------------------

def _layer_kernel(x_ref, mask_ref,
                  wqkv_ref, bqkv_ref, wo_ref, bo_ref,
                  ln1_g_ref, ln1_b_ref,
                  w1_ref, b1_ref, w2_ref, b2_ref,
                  ln2_g_ref, ln2_b_ref,
                  o_ref, *, batch, num_heads, eps):
    M, H = x_ref.shape
    S = M // batch
    dh = H // num_heads
    scale = 1.0 / math.sqrt(dh)

    x = x_ref[...]                                  # (M, H) f32
    xb = x.astype(jnp.bfloat16)

    # Fused QKV projection: single wide (M, 3H) matmul, f32 MXU accumulation.
    qkv = jnp.dot(xb, wqkv_ref[...], preferred_element_type=jnp.float32) + bqkv_ref[...]
    q = qkv[:, 0 * H:1 * H]
    k = qkv[:, 1 * H:2 * H]
    v = qkv[:, 2 * H:3 * H]

    mask = mask_ref[...]                            # (B, S) additive mask, f32

    # Attention per (batch, head); batch/head loops are statically unrolled and
    # heads are static column slices of the H-major layout (no relayout transposes).
    batch_ctx = []
    for b in range(batch):
        r0, r1 = b * S, (b + 1) * S
        add_m = mask[b:b + 1, :]                    # (1, S) broadcast over queries
        head_ctx = []
        for h in range(num_heads):
            c0, c1 = h * dh, (h + 1) * dh
            qh = q[r0:r1, c0:c1].astype(jnp.bfloat16)
            kh = k[r0:r1, c0:c1].astype(jnp.bfloat16)
            vh = v[r0:r1, c0:c1].astype(jnp.bfloat16)
            # scores = qh @ kh^T, contracting the head dim (no explicit transpose op).
            s = jax.lax.dot_general(qh, kh, (((1,), (1,)), ((), ())),
                                    preferred_element_type=jnp.float32) * scale
            s = s + add_m                           # mask applied in f32 post-accumulate
            s = s - jnp.max(s, axis=-1, keepdims=True)
            p = jnp.exp(s)
            p = p * pl.reciprocal(jnp.sum(p, axis=-1, keepdims=True), approx=True)
            head_ctx.append(jnp.dot(p.astype(jnp.bfloat16), vh,
                                    preferred_element_type=jnp.float32))
        batch_ctx.append(jnp.concatenate(head_ctx, axis=-1))        # lane concat -> (S, H)
    ctx = jnp.concatenate(batch_ctx, axis=0).astype(jnp.bfloat16)   # sublane concat -> (M, H)

    attn_out = jnp.dot(ctx, wo_ref[...], preferred_element_type=jnp.float32) + bo_ref[...]
    h1 = _ln(x + attn_out, ln1_g_ref[...], ln1_b_ref[...], eps)     # residual fused

    ff = jnp.dot(h1.astype(jnp.bfloat16), w1_ref[...],
                 preferred_element_type=jnp.float32) + b1_ref[...]
    ff = _gelu(ff)
    ff = jnp.dot(ff.astype(jnp.bfloat16), w2_ref[...],
                 preferred_element_type=jnp.float32) + b2_ref[...]
    o_ref[...] = _ln(h1 + ff, ln2_g_ref[...], ln2_b_ref[...], eps)  # residual fused


def transformer_layer(x, add_mask, layer, *, batch, num_heads, eps=1e-12):
    """x: (B*S, H) f32; add_mask: (B, S) additive mask."""
    M, H = x.shape
    return pl.pallas_call(
        partial(_layer_kernel, batch=batch, num_heads=num_heads, eps=eps),
        out_shape=jax.ShapeDtypeStruct((M, H), jnp.float32),
    )(x, add_mask,
      layer["wqkv"], layer["bqkv"], layer["wo"], layer["bo"],
      layer["ln1_g"], layer["ln1_b"],
      layer["w1"], layer["b1"], layer["w2"], layer["b2"],
      layer["ln2_g"], layer["ln2_b"])


# ---------------------------------------------------------------------------
# Kernel 3: fused BERT pooler (tanh dense on [CLS]) + nn.Linear classifier
# ---------------------------------------------------------------------------

def _pool_cls_kernel(cls_ref, pw_ref, pb_ref, cw_ref, cb_ref, o_ref):
    x = cls_ref[...].astype(jnp.bfloat16)
    pooled = jnp.tanh(
        jnp.dot(x, pw_ref[...], preferred_element_type=jnp.float32) + pb_ref[...])
    o_ref[...] = jnp.dot(pooled.astype(jnp.bfloat16), cw_ref[...],
                         preferred_element_type=jnp.float32) + cb_ref[...]


def pool_and_classify(cls, pool_w, pool_b, cls_w, cls_b):
    B, H = cls.shape
    C = cls_w.shape[1]
    return pl.pallas_call(
        _pool_cls_kernel,
        out_shape=jax.ShapeDtypeStruct((B, C), jnp.float32),
    )(cls, pool_w, pool_b, cls_w, cls_b)


# ---------------------------------------------------------------------------
# Synthetic BERT parameters + forward
# ---------------------------------------------------------------------------

def init_params(key, *, vocab=100, max_pos=16, type_vocab=2,
                hidden=128, intermediate=256, num_layers=2, num_classes=4):
    def normal(k, shape, std=0.02, dtype=jnp.float32):
        return (std * jax.random.normal(k, shape, dtype=jnp.float32)).astype(dtype)

    keys = iter(jax.random.split(key, 8 + 8 * num_layers))
    params = {
        "word_emb": normal(next(keys), (vocab, hidden)),
        "pos_emb": normal(next(keys), (max_pos, hidden)),
        "type_emb": normal(next(keys), (type_vocab, hidden)),
        "emb_ln_g": jnp.ones((1, hidden), jnp.float32),
        "emb_ln_b": jnp.zeros((1, hidden), jnp.float32),
        "pool_w": normal(next(keys), (hidden, hidden), dtype=jnp.bfloat16),
        "pool_b": jnp.zeros((1, hidden), jnp.float32),
        # nn.Linear(hidden, num_classes) stored as (hidden, num_classes) so that
        # logits = pooled @ W + b (same semantics as x @ W_pt.T + b).
        "cls_w": normal(next(keys), (hidden, num_classes), dtype=jnp.bfloat16),
        "cls_b": jnp.zeros((1, num_classes), jnp.float32),
        "layers": [],
    }
    for _ in range(num_layers):
        layer = {
            # Wq | Wk | Wv concatenated -> one (H, 3H) matmul (wide lane dim).
            "wqkv": normal(next(keys), (hidden, 3 * hidden), dtype=jnp.bfloat16),
            "bqkv": jnp.zeros((1, 3 * hidden), jnp.float32),
            "wo": normal(next(keys), (hidden, hidden), dtype=jnp.bfloat16),
            "bo": jnp.zeros((1, hidden), jnp.float32),
            "ln1_g": jnp.ones((1, hidden), jnp.float32),
            "ln1_b": jnp.zeros((1, hidden), jnp.float32),
            "w1": normal(next(keys), (hidden, intermediate), dtype=jnp.bfloat16),
            "b1": jnp.zeros((1, intermediate), jnp.float32),
            "w2": normal(next(keys), (intermediate, hidden), dtype=jnp.bfloat16),
            "b2": jnp.zeros((1, hidden), jnp.float32),
            "ln2_g": jnp.ones((1, hidden), jnp.float32),
            "ln2_b": jnp.zeros((1, hidden), jnp.float32),
        }
        params["layers"].append(layer)
    return params


def bert_classifier_forward(params, input_ids, attention_mask, *, num_heads=2):
    """Equivalent of BERTClassifier.forward: bert(...).pooler_output -> Linear."""
    B, S = input_ids.shape
    H = params["word_emb"].shape[1]

    # Word-embedding lookup (data-dependent gather) stays in XLA glue;
    # pos/type adds + LN happen inside the Pallas embedding kernel.
    word = jnp.take(params["word_emb"], input_ids.reshape(-1), axis=0)   # (B*S, H)
    pos = params["pos_emb"][:S]                                          # (S, H)
    type_row = params["type_emb"][0:1]                                   # (1, H)
    x = embed_layernorm(word, pos, type_row,
                        params["emb_ln_g"], params["emb_ln_b"], batch=B)  # (B*S, H)

    add_mask = (1.0 - attention_mask.astype(jnp.float32)) * -1e9         # (B, S)

    for layer in params["layers"]:
        x = transformer_layer(x, add_mask, layer, batch=B, num_heads=num_heads)

    cls = x.reshape(B, S, H)[:, 0, :]                                    # (B, H) [CLS] token
    logits = pool_and_classify(cls, params["pool_w"], params["pool_b"],
                               params["cls_w"], params["cls_b"])         # (B, num_classes)
    return logits


if __name__ == "__main__":
    key = jax.random.PRNGKey(0)
    pkey, ikey = jax.random.split(key)

    B, S = 2, 8
    NUM_HEADS = 2
    params = init_params(pkey, vocab=100, max_pos=16, hidden=128,
                         intermediate=256, num_layers=2, num_classes=4)

    input_ids = jax.random.randint(ikey, (B, S), 0, 100, dtype=jnp.int32)
    attention_mask = jnp.ones((B, S), dtype=jnp.int32)
    attention_mask = attention_mask.at[1, -2:].set(0)   # some padding in batch 1

    fwd = jax.jit(partial(bert_classifier_forward, num_heads=NUM_HEADS))
    logits = fwd(params, input_ids, attention_mask)
    jax.block_until_ready(logits)
    assert logits.shape == (B, 4) and logits.dtype == jnp.float32
    print("KERNEL_OK")
</pallas_src>

<mosaic_0001>
module attributes {stable_mosaic.version = 11 : i64} {
  func.func @_emb_kernel(%arg0: memref<16x128xf32, #tpu.memory_space<vmem>>, %arg1: memref<8x128xf32, #tpu.memory_space<vmem>>, %arg2: memref<1x128xf32, #tpu.memory_space<vmem>>, %arg3: memref<1x128xf32, #tpu.memory_space<vmem>>, %arg4: memref<1x128xf32, #tpu.memory_space<vmem>>, %arg5: memref<16x128xf32, #tpu.memory_space<vmem>>) attributes {dimension_semantics = [], scalar_prefetch = 0 : i64, scratch_operands = 0 : i64, tpu.core_type = #tpu.core_type<tc>} {
    %c0 = arith.constant 0 : index
    %c0_0 = arith.constant 0 : index
    %0 = vector.load %arg1[%c0, %c0_0] : memref<8x128xf32, #tpu.memory_space<vmem>>, vector<8x128xf32>
    %1 = tpu.concatenate %0, %0 in 0 : vector<8x128xf32>, vector<8x128xf32> -> vector<16x128xf32>
    %c0_1 = arith.constant 0 : index
    %c0_2 = arith.constant 0 : index
    %2 = vector.load %arg0[%c0_1, %c0_2] : memref<16x128xf32, #tpu.memory_space<vmem>>, vector<16x128xf32>
    %3 = arith.addf %2, %1 : vector<16x128xf32>
    %c0_3 = arith.constant 0 : index
    %c0_4 = arith.constant 0 : index
    %4 = vector.load %arg2[%c0_3, %c0_4] : memref<1x128xf32, #tpu.memory_space<vmem>>, vector<1x128xf32>
    %5 = vector.broadcast %4 : vector<1x128xf32> to vector<16x128xf32>
    %6 = arith.addf %3, %5 : vector<16x128xf32>
    %c0_5 = arith.constant 0 : index
    %c0_6 = arith.constant 0 : index
    %7 = vector.load %arg3[%c0_5, %c0_6] : memref<1x128xf32, #tpu.memory_space<vmem>>, vector<1x128xf32>
    %c0_7 = arith.constant 0 : index
    %c0_8 = arith.constant 0 : index
    %8 = vector.load %arg4[%c0_7, %c0_8] : memref<1x128xf32, #tpu.memory_space<vmem>>, vector<1x128xf32>
    %cst = arith.constant dense<0.000000e+00> : vector<16xf32>
    %9 = vector.multi_reduction <add>, %6, %cst [1] : vector<16x128xf32> to vector<16xf32>
    %10 = vector.shape_cast %9 : vector<16xf32> to vector<16x1xf32>
    %cst_9 = arith.constant 1.280000e+02 : f32
    %11 = vector.broadcast %cst_9 : f32 to vector<16x1xf32>
    %12 = arith.divf %10, %11 : vector<16x1xf32>
    %13 = vector.broadcast %12 : vector<16x1xf32> to vector<16x128xf32>
    %14 = arith.subf %6, %13 : vector<16x128xf32>
    %15 = arith.mulf %14, %14 : vector<16x128xf32>
    %cst_10 = arith.constant dense<0.000000e+00> : vector<16xf32>
    %16 = vector.multi_reduction <add>, %15, %cst_10 [1] : vector<16x128xf32> to vector<16xf32>
    %17 = vector.shape_cast %16 : vector<16xf32> to vector<16x1xf32>
    %cst_11 = arith.constant 1.280000e+02 : f32
    %18 = vector.broadcast %cst_11 : f32 to vector<16x1xf32>
    %19 = arith.divf %17, %18 : vector<16x1xf32>
    %20 = vector.broadcast %12 : vector<16x1xf32> to vector<16x128xf32>
    %21 = arith.subf %6, %20 : vector<16x128xf32>
    %cst_12 = arith.constant 9.99999996E-13 : f32
    %22 = vector.broadcast %cst_12 : f32 to vector<16x1xf32>
    %23 = arith.addf %19, %22 : vector<16x1xf32>
    %24 = math.rsqrt %23 : vector<16x1xf32>
    %25 = vector.broadcast %24 : vector<16x1xf32> to vector<16x128xf32>
    %26 = arith.mulf %21, %25 : vector<16x128xf32>
    %27 = vector.broadcast %7 : vector<1x128xf32> to vector<16x128xf32>
    %28 = arith.mulf %26, %27 : vector<16x128xf32>
    %29 = vector.broadcast %8 : vector<1x128xf32> to vector<16x128xf32>
    %30 = arith.addf %28, %29 : vector<16x128xf32>
    %c0_13 = arith.constant 0 : index
    %c0_14 = arith.constant 0 : index
    %31 = vector.load %arg5[%c0_13, %c0_14] : memref<16x128xf32, #tpu.memory_space<vmem>>, vector<16x128xf32>
    tpu.vector_store %arg5[%c0_13, %c0_14], %30 {strides = array<i32>} : memref<16x128xf32, #tpu.memory_space<vmem>>, vector<16x128xf32>,
    return
  }
}

module attributes {stable_mosaic.version = 11 : i64} {
  func.func @_pool_cls_kernel(%arg0: memref<2x128xf32, #tpu.memory_space<vmem>>, %arg1: memref<128x128xbf16, #tpu.memory_space<vmem>>, %arg2: memref<1x128xf32, #tpu.memory_space<vmem>>, %arg3: memref<128x4xbf16, #tpu.memory_space<vmem>>, %arg4: memref<1x4xf32, #tpu.memory_space<vmem>>, %arg5: memref<2x4xf32, #tpu.memory_space<vmem>>) attributes {dimension_semantics = [], scalar_prefetch = 0 : i64, scratch_operands = 0 : i64, tpu.core_type = #tpu.core_type<tc>} {
    %c0 = arith.constant 0 : index
    %c0_0 = arith.constant 0 : index
    %0 = vector.load %arg0[%c0, %c0_0] : memref<2x128xf32, #tpu.memory_space<vmem>>, vector<2x128xf32>
    %1 = arith.truncf %0 : vector<2x128xf32> to vector<2x128xbf16>
    %c0_1 = arith.constant 0 : index
    %c0_2 = arith.constant 0 : index
    %2 = vector.load %arg1[%c0_1, %c0_2] : memref<128x128xbf16, #tpu.memory_space<vmem>>, vector<128x128xbf16>
    %cst = arith.constant dense<0.000000e+00> : vector<2x128xf32>
    %3 = tpu.matmul %1, %2, %cst {dimension_numbers = #tpu.dot_dimension_numbers<[1], [0], [0], [1], [0, 0, 1, 1], [], []>} : vector<2x128xbf16>, vector<128x128xbf16>, vector<2x128xf32> -> vector<2x128xf32>
    %c0_3 = arith.constant 0 : index
    %c0_4 = arith.constant 0 : index
    %4 = vector.load %arg2[%c0_3, %c0_4] : memref<1x128xf32, #tpu.memory_space<vmem>>, vector<1x128xf32>
    %5 = vector.broadcast %4 : vector<1x128xf32> to vector<2x128xf32>
    %6 = arith.addf %3, %5 : vector<2x128xf32>
    %7 = math.tanh %6 : vector<2x128xf32>
    %8 = arith.truncf %7 : vector<2x128xf32> to vector<2x128xbf16>
    %c0_5 = arith.constant 0 : index
    %c0_6 = arith.constant 0 : index
    %9 = vector.load %arg3[%c0_5, %c0_6] : memref<128x4xbf16, #tpu.memory_space<vmem>>, vector<128x4xbf16>
    %cst_7 = arith.constant dense<0.000000e+00> : vector<2x4xf32>
    %10 = tpu.matmul %8, %9, %cst_7 {dimension_numbers = #tpu.dot_dimension_numbers<[1], [0], [0], [1], [0, 0, 1, 1], [], []>} : vector<2x128xbf16>, vector<128x4xbf16>, vector<2x4xf32> -> vector<2x4xf32>
    %c0_8 = arith.constant 0 : index
    %c0_9 = arith.constant 0 : index
    %11 = vector.load %arg4[%c0_8, %c0_9] : memref<1x4xf32, #tpu.memory_space<vmem>>, vector<1x4xf32>
    %12 = vector.broadcast %11 : vector<1x4xf32> to vector<2x4xf32>
    %13 = arith.addf %10, %12 : vector<2x4xf32>
    %c0_10 = arith.constant 0 : index
    %c0_11 = arith.constant 0 : index
    %14 = vector.load %arg5[%c0_10, %c0_11] : memref<2x4xf32, #tpu.memory_space<vmem>>, vector<2x4xf32>
    tpu.vector_store %arg5[%c0_10, %c0_11], %13 {strides = array<i32>} : memref<2x4xf32, #tpu.memory_space<vmem>>, vector<2x4xf32>,
    return
  }
}

module attributes {stable_mosaic.version = 11 : i64} {
  func.func @_layer_kernel(%arg0: memref<16x128xf32, #tpu.memory_space<vmem>>, %arg1: memref<2x8xf32, #tpu.memory_space<vmem>>, %arg2: memref<128x384xbf16, #tpu.memory_space<vmem>>, %arg3: memref<1x384xf32, #tpu.memory_space<vmem>>, %arg4: memref<128x128xbf16, #tpu.memory_space<vmem>>, %arg5: memref<1x128xf32, #tpu.memory_space<vmem>>, %arg6: memref<1x128xf32, #tpu.memory_space<vmem>>, %arg7: memref<1x128xf32, #tpu.memory_space<vmem>>, %arg8: memref<128x256xbf16, #tpu.memory_space<vmem>>, %arg9: memref<1x256xf32, #tpu.memory_space<vmem>>, %arg10: memref<256x128xbf16, #tpu.memory_space<vmem>>, %arg11: memref<1x128xf32, #tpu.memory_space<vmem>>, %arg12: memref<1x128xf32, #tpu.memory_space<vmem>>, %arg13: memref<1x128xf32, #tpu.memory_space<vmem>>, %arg14: memref<16x128xf32, #tpu.memory_space<vmem>>) attributes {dimension_semantics = [], scalar_prefetch = 0 : i64, scratch_operands = 0 : i64, tpu.core_type = #tpu.core_type<tc>} {
    %c0 = arith.constant 0 : index
    %c0_0 = arith.constant 0 : index
    %0 = vector.load %arg0[%c0, %c0_0] : memref<16x128xf32, #tpu.memory_space<vmem>>, vector<16x128xf32>
    %1 = arith.truncf %0 : vector<16x128xf32> to vector<16x128xbf16>
    %c0_1 = arith.constant 0 : index
    %c0_2 = arith.constant 0 : index
    %2 = vector.load %arg2[%c0_1, %c0_2] : memref<128x384xbf16, #tpu.memory_space<vmem>>, vector<128x384xbf16>
    %cst = arith.constant dense<0.000000e+00> : vector<16x384xf32>
    %3 = tpu.matmul %1, %2, %cst {dimension_numbers = #tpu.dot_dimension_numbers<[1], [0], [0], [1], [0, 0, 1, 1], [], []>} : vector<16x128xbf16>, vector<128x384xbf16>, vector<16x384xf32> -> vector<16x384xf32>
    %c0_3 = arith.constant 0 : index
    %c0_4 = arith.constant 0 : index
    %4 = vector.load %arg3[%c0_3, %c0_4] : memref<1x384xf32, #tpu.memory_space<vmem>>, vector<1x384xf32>
    %5 = vector.broadcast %4 : vector<1x384xf32> to vector<16x384xf32>
    %6 = arith.addf %3, %5 : vector<16x384xf32>
    %7 = vector.extract_strided_slice %6 {offsets = [0, 0], sizes = [16, 128], strides = [1, 1]} : vector<16x384xf32> to vector<16x128xf32>
    %8 = vector.extract_strided_slice %6 {offsets = [0, 128], sizes = [16, 128], strides = [1, 1]} : vector<16x384xf32> to vector<16x128xf32>
    %9 = vector.extract_strided_slice %6 {offsets = [0, 256], sizes = [16, 128], strides = [1, 1]} : vector<16x384xf32> to vector<16x128xf32>
    %c0_5 = arith.constant 0 : index
    %c0_6 = arith.constant 0 : index
    %10 = vector.load %arg1[%c0_5, %c0_6] : memref<2x8xf32, #tpu.memory_space<vmem>>, vector<2x8xf32>
    %11 = vector.extract_strided_slice %10 {offsets = [0, 0], sizes = [1, 8], strides = [1, 1]} : vector<2x8xf32> to vector<1x8xf32>
    %12 = vector.extract_strided_slice %7 {offsets = [0, 0], sizes = [8, 64], strides = [1, 1]} : vector<16x128xf32> to vector<8x64xf32>
    %13 = arith.truncf %12 : vector<8x64xf32> to vector<8x64xbf16>
    %14 = vector.extract_strided_slice %8 {offsets = [0, 0], sizes = [8, 64], strides = [1, 1]} : vector<16x128xf32> to vector<8x64xf32>
    %15 = arith.truncf %14 : vector<8x64xf32> to vector<8x64xbf16>
    %16 = vector.extract_strided_slice %9 {offsets = [0, 0], sizes = [8, 64], strides = [1, 1]} : vector<16x128xf32> to vector<8x64xf32>
    %17 = arith.truncf %16 : vector<8x64xf32> to vector<8x64xbf16>
    %cst_7 = arith.constant dense<0.000000e+00> : vector<8x8xf32>
    %18 = tpu.matmul %13, %15, %cst_7 {dimension_numbers = #tpu.dot_dimension_numbers<[1], [1], [0], [0], [0, 0, 1, 0], [], []>} : vector<8x64xbf16>, vector<8x64xbf16>, vector<8x8xf32> -> vector<8x8xf32>
    %cst_8 = arith.constant 1.250000e-01 : f32
    %19 = vector.broadcast %cst_8 : f32 to vector<8x8xf32>
    %20 = arith.mulf %18, %19 : vector<8x8xf32>
    %21 = vector.broadcast %11 : vector<1x8xf32> to vector<8x8xf32>
    %22 = arith.addf %20, %21 : vector<8x8xf32>
    %cst_9 = arith.constant dense<0xFF800000> : vector<8xf32>
    %23 = vector.multi_reduction <maximumf>, %22, %cst_9 [1] : vector<8x8xf32> to vector<8xf32>
    %24 = vector.shape_cast %23 : vector<8xf32> to vector<8x1xf32>
    %25 = vector.broadcast %24 : vector<8x1xf32> to vector<8x8xf32>
    %26 = arith.subf %22, %25 : vector<8x8xf32>
    %27 = math.exp %26 : vector<8x8xf32>
    %cst_10 = arith.constant dense<0.000000e+00> : vector<8xf32>
    %28 = vector.multi_reduction <add>, %27, %cst_10 [1] : vector<8x8xf32> to vector<8xf32>
    %29 = vector.shape_cast %28 : vector<8xf32> to vector<8x1xf32>
    %30 = tpu.reciprocal %29 {approx = true} : vector<8x1xf32> -> vector<8x1xf32>
    %31 = vector.broadcast %30 : vector<8x1xf32> to vector<8x8xf32>
    %32 = arith.mulf %27, %31 : vector<8x8xf32>
    %33 = arith.truncf %32 : vector<8x8xf32> to vector<8x8xbf16>
    %cst_11 = arith.constant dense<0.000000e+00> : vector<8x64xf32>
    %34 = tpu.matmul %33, %17, %cst_11 {dimension_numbers = #tpu.dot_dimension_numbers<[1], [0], [0], [1], [0, 0, 1, 1], [], []>} : vector<8x8xbf16>, vector<8x64xbf16>, vector<8x64xf32> -> vector<8x64xf32>
    %35 = vector.extract_strided_slice %7 {offsets = [0, 64], sizes = [8, 64], strides = [1, 1]} : vector<16x128xf32> to vector<8x64xf32>
    %36 = arith.truncf %35 : vector<8x64xf32> to vector<8x64xbf16>
    %37 = vector.extract_strided_slice %8 {offsets = [0, 64], sizes = [8, 64], strides = [1, 1]} : vector<16x128xf32> to vector<8x64xf32>
    %38 = arith.truncf %37 : vector<8x64xf32> to vector<8x64xbf16>
    %39 = vector.extract_strided_slice %9 {offsets = [0, 64], sizes = [8, 64], strides = [1, 1]} : vector<16x128xf32> to vector<8x64xf32>
    %40 = arith.truncf %39 : vector<8x64xf32> to vector<8x64xbf16>
    %cst_12 = arith.constant dense<0.000000e+00> : vector<8x8xf32>
    %41 = tpu.matmul %36, %38, %cst_12 {dimension_numbers = #tpu.dot_dimension_numbers<[1], [1], [0], [0], [0, 0, 1, 0], [], []>} : vector<8x64xbf16>, vector<8x64xbf16>, vector<8x8xf32> -> vector<8x8xf32>
    %cst_13 = arith.constant 1.250000e-01 : f32
    %42 = vector.broadcast %cst_13 : f32 to vector<8x8xf32>
    %43 = arith.mulf %41, %42 : vector<8x8xf32>
    %44 = vector.broadcast %11 : vector<1x8xf32> to vector<8x8xf32>
    %45 = arith.addf %43, %44 : vector<8x8xf32>
    %cst_14 = arith.constant dense<0xFF800000> : vector<8xf32>
    %46 = vector.multi_reduction <maximumf>, %45, %cst_14 [1] : vector<8x8xf32> to vector<8xf32>
    %47 = vector.shape_cast %46 : vector<8xf32> to vector<8x1xf32>
    %48 = vector.broadcast %47 : vector<8x1xf32> to vector<8x8xf32>
    %49 = arith.subf %45, %48 : vector<8x8xf32>
    %50 = math.exp %49 : vector<8x8xf32>
    %cst_15 = arith.constant dense<0.000000e+00> : vector<8xf32>
    %51 = vector.multi_reduction <add>, %50, %cst_15 [1] : vector<8x8xf32> to vector<8xf32>
    %52 = vector.shape_cast %51 : vector<8xf32> to vector<8x1xf32>
    %53 = tpu.reciprocal %52 {approx = true} : vector<8x1xf32> -> vector<8x1xf32>
    %54 = vector.broadcast %53 : vector<8x1xf32> to vector<8x8xf32>
    %55 = arith.mulf %50, %54 : vector<8x8xf32>
    %56 = arith.truncf %55 : vector<8x8xf32> to vector<8x8xbf16>
    %cst_16 = arith.constant dense<0.000000e+00> : vector<8x64xf32>
    %57 = tpu.matmul %56, %40, %cst_16 {dimension_numbers = #tpu.dot_dimension_numbers<[1], [0], [0], [1], [0, 0, 1, 1], [], []>} : vector<8x8xbf16>, vector<8x64xbf16>, vector<8x64xf32> -> vector<8x64xf32>
    %58 = tpu.concatenate %34, %57 in 1 : vector<8x64xf32>, vector<8x64xf32> -> vector<8x128xf32>
    %59 = vector.extract_strided_slice %10 {offsets = [1, 0], sizes = [1, 8], strides = [1, 1]} : vector<2x8xf32> to vector<1x8xf32>
    %60 = vector.extract_strided_slice %7 {offsets = [8, 0], sizes = [8, 64], strides = [1, 1]} : vector<16x128xf32> to vector<8x64xf32>
    %61 = arith.truncf %60 : vector<8x64xf32> to vector<8x64xbf16>
    %62 = vector.extract_strided_slice %8 {offsets = [8, 0], sizes = [8, 64], strides = [1, 1]} : vector<16x128xf32> to vector<8x64xf32>
    %63 = arith.truncf %62 : vector<8x64xf32> to vector<8x64xbf16>
    %64 = vector.extract_strided_slice %9 {offsets = [8, 0], sizes = [8, 64], strides = [1, 1]} : vector<16x128xf32> to vector<8x64xf32>
    %65 = arith.truncf %64 : vector<8x64xf32> to vector<8x64xbf16>
    %cst_17 = arith.constant dense<0.000000e+00> : vector<8x8xf32>
    %66 = tpu.matmul %61, %63, %cst_17 {dimension_numbers = #tpu.dot_dimension_numbers<[1], [1], [0], [0], [0, 0, 1, 0], [], []>} : vector<8x64xbf16>, vector<8x64xbf16>, vector<8x8xf32> -> vector<8x8xf32>
    %cst_18 = arith.constant 1.250000e-01 : f32
    %67 = vector.broadcast %cst_18 : f32 to vector<8x8xf32>
    %68 = arith.mulf %66, %67 : vector<8x8xf32>
    %69 = vector.broadcast %59 : vector<1x8xf32> to vector<8x8xf32>
    %70 = arith.addf %68, %69 : vector<8x8xf32>
    %cst_19 = arith.constant dense<0xFF800000> : vector<8xf32>
    %71 = vector.multi_reduction <maximumf>, %70, %cst_19 [1] : vector<8x8xf32> to vector<8xf32>
    %72 = vector.shape_cast %71 : vector<8xf32> to vector<8x1xf32>
    %73 = vector.broadcast %72 : vector<8x1xf32> to vector<8x8xf32>
    %74 = arith.subf %70, %73 : vector<8x8xf32>
    %75 = math.exp %74 : vector<8x8xf32>
    %cst_20 = arith.constant dense<0.000000e+00> : vector<8xf32>
    %76 = vector.multi_reduction <add>, %75, %cst_20 [1] : vector<8x8xf32> to vector<8xf32>
    %77 = vector.shape_cast %76 : vector<8xf32> to vector<8x1xf32>
    %78 = tpu.reciprocal %77 {approx = true} : vector<8x1xf32> -> vector<8x1xf32>
    %79 = vector.broadcast %78 : vector<8x1xf32> to vector<8x8xf32>
    %80 = arith.mulf %75, %79 : vector<8x8xf32>
    %81 = arith.truncf %80 : vector<8x8xf32> to vector<8x8xbf16>
    %cst_21 = arith.constant dense<0.000000e+00> : vector<8x64xf32>
    %82 = tpu.matmul %81, %65, %cst_21 {dimension_numbers = #tpu.dot_dimension_numbers<[1], [0], [0], [1], [0, 0, 1, 1], [], []>} : vector<8x8xbf16>, vector<8x64xbf16>, vector<8x64xf32> -> vector<8x64xf32>
    %83 = vector.extract_strided_slice %7 {offsets = [8, 64], sizes = [8, 64], strides = [1, 1]} : vector<16x128xf32> to vector<8x64xf32>
    %84 = arith.truncf %83 : vector<8x64xf32> to vector<8x64xbf16>
    %85 = vector.extract_strided_slice %8 {offsets = [8, 64], sizes = [8, 64], strides = [1, 1]} : vector<16x128xf32> to vector<8x64xf32>
    %86 = arith.truncf %85 : vector<8x64xf32> to vector<8x64xbf16>
    %87 = vector.extract_strided_slice %9 {offsets = [8, 64], sizes = [8, 64], strides = [1, 1]} : vector<16x128xf32> to vector<8x64xf32>
    %88 = arith.truncf %87 : vector<8x64xf32> to vector<8x64xbf16>
    %cst_22 = arith.constant dense<0.000000e+00> : vector<8x8xf32>
    %89 = tpu.matmul %84, %86, %cst_22 {dimension_numbers = #tpu.dot_dimension_numbers<[1], [1], [0], [0], [0, 0, 1, 0], [], []>} : vector<8x64xbf16>, vector<8x64xbf16>, vector<8x8xf32> -> vector<8x8xf32>
    %cst_23 = arith.constant 1.250000e-01 : f32
    %90 = vector.broadcast %cst_23 : f32 to vector<8x8xf32>
    %91 = arith.mulf %89, %90 : vector<8x8xf32>
    %92 = vector.broadcast %59 : vector<1x8xf32> to vector<8x8xf32>
    %93 = arith.addf %91, %92 : vector<8x8xf32>
    %cst_24 = arith.constant dense<0xFF800000> : vector<8xf32>
    %94 = vector.multi_reduction <maximumf>, %93, %cst_24 [1] : vector<8x8xf32> to vector<8xf32>
    %95 = vector.shape_cast %94 : vector<8xf32> to vector<8x1xf32>
    %96 = vector.broadcast %95 : vector<8x1xf32> to vector<8x8xf32>
    %97 = arith.subf %93, %96 : vector<8x8xf32>
    %98 = math.exp %97 : vector<8x8xf32>
    %cst_25 = arith.constant dense<0.000000e+00> : vector<8xf32>
    %99 = vector.multi_reduction <add>, %98, %cst_25 [1] : vector<8x8xf32> to vector<8xf32>
    %100 = vector.shape_cast %99 : vector<8xf32> to vector<8x1xf32>
    %101 = tpu.reciprocal %100 {approx = true} : vector<8x1xf32> -> vector<8x1xf32>
    %102 = vector.broadcast %101 : vector<8x1xf32> to vector<8x8xf32>
    %103 = arith.mulf %98, %102 : vector<8x8xf32>
    %104 = arith.truncf %103 : vector<8x8xf32> to vector<8x8xbf16>
    %cst_26 = arith.constant dense<0.000000e+00> : vector<8x64xf32>
    %105 = tpu.matmul %104, %88, %cst_26 {dimension_numbers = #tpu.dot_dimension_numbers<[1], [0], [0], [1], [0, 0, 1, 1], [], []>} : vector<8x8xbf16>, vector<8x64xbf16>, vector<8x64xf32> -> vector<8x64xf32>
    %106 = tpu.concatenate %82, %105 in 1 : vector<8x64xf32>, vector<8x64xf32> -> vector<8x128xf32>
    %107 = tpu.concatenate %58, %106 in 0 : vector<8x128xf32>, vector<8x128xf32> -> vector<16x128xf32>
    %108 = arith.truncf %107 : vector<16x128xf32> to vector<16x128xbf16>
    %c0_27 = arith.constant 0 : index
    %c0_28 = arith.constant 0 : index
    %109 = vector.load %arg4[%c0_27, %c0_28] : memref<128x128xbf16, #tpu.memory_space<vmem>>, vector<128x128xbf16>
    %cst_29 = arith.constant dense<0.000000e+00> : vector<16x128xf32>
    %110 = tpu.matmul %108, %109, %cst_29 {dimension_numbers = #tpu.dot_dimension_numbers<[1], [0], [0], [1], [0, 0, 1, 1], [], []>} : vector<16x128xbf16>, vector<128x128xbf16>, vector<16x128xf32> -> vector<16x128xf32>
    %c0_30 = arith.constant 0 : index
    %c0_31 = arith.constant 0 : index
    %111 = vector.load %arg5[%c0_30, %c0_31] : memref<1x128xf32, #tpu.memory_space<vmem>>, vector<1x128xf32>
    %112 = vector.broadcast %111 : vector<1x128xf32> to vector<16x128xf32>
    %113 = arith.addf %110, %112 : vector<16x128xf32>
    %114 = arith.addf %0, %113 : vector<16x128xf32>
    %c0_32 = arith.constant 0 : index
    %c0_33 = arith.constant 0 : index
    %115 = vector.load %arg6[%c0_32, %c0_33] : memref<1x128xf32, #tpu.memory_space<vmem>>, vector<1x128xf32>
    %c0_34 = arith.constant 0 : index
    %c0_35 = arith.constant 0 : index
    %116 = vector.load %arg7[%c0_34, %c0_35] : memref<1x128xf32, #tpu.memory_space<vmem>>, vector<1x128xf32>
    %cst_36 = arith.constant dense<0.000000e+00> : vector<16xf32>
    %117 = vector.multi_reduction <add>, %114, %cst_36 [1] : vector<16x128xf32> to vector<16xf32>
    %118 = vector.shape_cast %117 : vector<16xf32> to vector<16x1xf32>
    %cst_37 = arith.constant 1.280000e+02 : f32
    %119 = vector.broadcast %cst_37 : f32 to vector<16x1xf32>
    %120 = arith.divf %118, %119 : vector<16x1xf32>
    %121 = vector.broadcast %120 : vector<16x1xf32> to vector<16x128xf32>
    %122 = arith.subf %114, %121 : vector<16x128xf32>
    %123 = arith.mulf %122, %122 : vector<16x128xf32>
    %cst_38 = arith.constant dense<0.000000e+00> : vector<16xf32>
    %124 = vector.multi_reduction <add>, %123, %cst_38 [1] : vector<16x128xf32> to vector<16xf32>
    %125 = vector.shape_cast %124 : vector<16xf32> to vector<16x1xf32>
    %cst_39 = arith.constant 1.280000e+02 : f32
    %126 = vector.broadcast %cst_39 : f32 to vector<16x1xf32>
    %127 = arith.divf %125, %126 : vector<16x1xf32>
    %128 = vector.broadcast %120 : vector<16x1xf32> to vector<16x128xf32>
    %129 = arith.subf %114, %128 : vector<16x128xf32>
    %cst_40 = arith.constant 9.99999996E-13 : f32
    %130 = vector.broadcast %cst_40 : f32 to vector<16x1xf32>
    %131 = arith.addf %127, %130 : vector<16x1xf32>
    %132 = math.rsqrt %131 : vector<16x1xf32>
    %133 = vector.broadcast %132 : vector<16x1xf32> to vector<16x128xf32>
    %134 = arith.mulf %129, %133 : vector<16x128xf32>
    %135 = vector.broadcast %115 : vector<1x128xf32> to vector<16x128xf32>
    %136 = arith.mulf %134, %135 : vector<16x128xf32>
    %137 = vector.broadcast %116 : vector<1x128xf32> to vector<16x128xf32>
    %138 = arith.addf %136, %137 : vector<16x128xf32>
    %139 = arith.truncf %138 : vector<16x128xf32> to vector<16x128xbf16>
    %c0_41 = arith.constant 0 : index
    %c0_42 = arith.constant 0 : index
    %140 = vector.load %arg8[%c0_41, %c0_42] : memref<128x256xbf16, #tpu.memory_space<vmem>>, vector<128x256xbf16>
    %cst_43 = arith.constant dense<0.000000e+00> : vector<16x256xf32>
    %141 = tpu.matmul %139, %140, %cst_43 {dimension_numbers = #tpu.dot_dimension_numbers<[1], [0], [0], [1], [0, 0, 1, 1], [], []>} : vector<16x128xbf16>, vector<128x256xbf16>, vector<16x256xf32> -> vector<16x256xf32>
    %c0_44 = arith.constant 0 : index
    %c0_45 = arith.constant 0 : index
    %142 = vector.load %arg9[%c0_44, %c0_45] : memref<1x256xf32, #tpu.memory_space<vmem>>, vector<1x256xf32>
    %143 = vector.broadcast %142 : vector<1x256xf32> to vector<16x256xf32>
    %144 = arith.addf %141, %143 : vector<16x256xf32>
    %cst_46 = arith.constant 5.000000e-01 : f32
    %145 = vector.broadcast %cst_46 : f32 to vector<16x256xf32>
    %146 = arith.mulf %145, %144 : vector<16x256xf32>
    %cst_47 = arith.constant 4.471500e-02 : f32
    %147 = vector.broadcast %cst_47 : f32 to vector<16x256xf32>
    %148 = arith.mulf %147, %144 : vector<16x256xf32>
    %149 = arith.mulf %148, %144 : vector<16x256xf32>
    %150 = arith.mulf %149, %144 : vector<16x256xf32>
    %151 = arith.addf %144, %150 : vector<16x256xf32>
    %cst_48 = arith.constant 0.797884583 : f32
    %152 = vector.broadcast %cst_48 : f32 to vector<16x256xf32>
    %153 = arith.mulf %152, %151 : vector<16x256xf32>
    %154 = math.tanh %153 : vector<16x256xf32>
    %cst_49 = arith.constant 1.000000e+00 : f32
    %155 = vector.broadcast %cst_49 : f32 to vector<16x256xf32>
    %156 = arith.addf %155, %154 : vector<16x256xf32>
    %157 = arith.mulf %146, %156 : vector<16x256xf32>
    %158 = arith.truncf %157 : vector<16x256xf32> to vector<16x256xbf16>
    %c0_50 = arith.constant 0 : index
    %c0_51 = arith.constant 0 : index
    %159 = vector.load %arg10[%c0_50, %c0_51] : memref<256x128xbf16, #tpu.memory_space<vmem>>, vector<256x128xbf16>
    %cst_52 = arith.constant dense<0.000000e+00> : vector<16x128xf32>
    %160 = tpu.matmul %158, %159, %cst_52 {dimension_numbers = #tpu.dot_dimension_numbers<[1], [0], [0], [1], [0, 0, 1, 1], [], []>} : vector<16x256xbf16>, vector<256x128xbf16>, vector<16x128xf32> -> vector<16x128xf32>
    %c0_53 = arith.constant 0 : index
    %c0_54 = arith.constant 0 : index
    %161 = vector.load %arg11[%c0_53, %c0_54] : memref<1x128xf32, #tpu.memory_space<vmem>>, vector<1x128xf32>
    %162 = vector.broadcast %161 : vector<1x128xf32> to vector<16x128xf32>
    %163 = arith.addf %160, %162 : vector<16x128xf32>
    %164 = arith.addf %138, %163 : vector<16x128xf32>
    %c0_55 = arith.constant 0 : index
    %c0_56 = arith.constant 0 : index
    %165 = vector.load %arg12[%c0_55, %c0_56] : memref<1x128xf32, #tpu.memory_space<vmem>>, vector<1x128xf32>
    %c0_57 = arith.constant 0 : index
    %c0_58 = arith.constant 0 : index
    %166 = vector.load %arg13[%c0_57, %c0_58] : memref<1x128xf32, #tpu.memory_space<vmem>>, vector<1x128xf32>
    %cst_59 = arith.constant dense<0.000000e+00> : vector<16xf32>
    %167 = vector.multi_reduction <add>, %164, %cst_59 [1] : vector<16x128xf32> to vector<16xf32>
    %168 = vector.shape_cast %167 : vector<16xf32> to vector<16x1xf32>
    %cst_60 = arith.constant 1.280000e+02 : f32
    %169 = vector.broadcast %cst_60 : f32 to vector<16x1xf32>
    %170 = arith.divf %168, %169 : vector<16x1xf32>
    %171 = vector.broadcast %170 : vector<16x1xf32> to vector<16x128xf32>
    %172 = arith.subf %164, %171 : vector<16x128xf32>
    %173 = arith.mulf %172, %172 : vector<16x128xf32>
    %cst_61 = arith.constant dense<0.000000e+00> : vector<16xf32>
    %174 = vector.multi_reduction <add>, %173, %cst_61 [1] : vector<16x128xf32> to vector<16xf32>
    %175 = vector.shape_cast %174 : vector<16xf32> to vector<16x1xf32>
    %cst_62 = arith.constant 1.280000e+02 : f32
    %176 = vector.broadcast %cst_62 : f32 to vector<16x1xf32>
    %177 = arith.divf %175, %176 : vector<16x1xf32>
    %178 = vector.broadcast %170 : vector<16x1xf32> to vector<16x128xf32>
    %179 = arith.subf %164, %178 : vector<16x128xf32>
    %cst_63 = arith.constant 9.99999996E-13 : f32
    %180 = vector.broadcast %cst_63 : f32 to vector<16x1xf32>
    %181 = arith.addf %177, %180 : vector<16x1xf32>
    %182 = math.rsqrt %181 : vector<16x1xf32>
    %183 = vector.broadcast %182 : vector<16x1xf32> to vector<16x128xf32>
    %184 = arith.mulf %179, %183 : vector<16x128xf32>
    %185 = vector.broadcast %165 : vector<1x128xf32> to vector<16x128xf32>
    %186 = arith.mulf %184, %185 : vector<16x128xf32>
    %187 = vector.broadcast %166 : vector<1x128xf32> to vector<16x128xf32>
    %188 = arith.addf %186, %187 : vector<16x128xf32>
    %c0_64 = arith.constant 0 : index
    %c0_65 = arith.constant 0 : index
    %189 = vector.load %arg14[%c0_64, %c0_65] : memref<16x128xf32, #tpu.memory_space<vmem>>, vector<16x128xf32>
    tpu.vector_store %arg14[%c0_64, %c0_65], %188 {strides = array<i32>} : memref<16x128xf32, #tpu.memory_space<vmem>>, vector<16x128xf32>,
    return
  }
}

module attributes {stable_mosaic.version = 11 : i64} {
  func.func @_layer_kernel(%arg0: memref<16x128xf32, #tpu.memory_space<vmem>>, %arg1: memref<2x8xf32, #tpu.memory_space<vmem>>, %arg2: memref<128x384xbf16, #tpu.memory_space<vmem>>, %arg3: memref<1x384xf32, #tpu.memory_space<vmem>>, %arg4: memref<128x128xbf16, #tpu.memory_space<vmem>>, %arg5: memref<1x128xf32, #tpu.memory_space<vmem>>, %arg6: memref<1x128xf32, #tpu.memory_space<vmem>>, %arg7: memref<1x128xf32, #tpu.memory_space<vmem>>, %arg8: memref<128x256xbf16, #tpu.memory_space<vmem>>, %arg9: memref<1x256xf32, #tpu.memory_space<vmem>>, %arg10: memref<256x128xbf16, #tpu.memory_space<vmem>>, %arg11: memref<1x128xf32, #tpu.memory_space<vmem>>, %arg12: memref<1x128xf32, #tpu.memory_space<vmem>>, %arg13: memref<1x128xf32, #tpu.memory_space<vmem>>, %arg14: memref<16x128xf32, #tpu.memory_space<vmem>>) attributes {dimension_semantics = [], scalar_prefetch = 0 : i64, scratch_operands = 0 : i64, tpu.core_type = #tpu.core_type<tc>} {
    %c0 = arith.constant 0 : index
    %c0_0 = arith.constant 0 : index
    %0 = vector.load %arg0[%c0, %c0_0] : memref<16x128xf32, #tpu.memory_space<vmem>>, vector<16x128xf32>
    %1 = arith.truncf %0 : vector<16x128xf32> to vector<16x128xbf16>
    %c0_1 = arith.constant 0 : index
    %c0_2 = arith.constant 0 : index
    %2 = vector.load %arg2[%c0_1, %c0_2] : memref<128x384xbf16, #tpu.memory_space<vmem>>, vector<128x384xbf16>
    %cst = arith.constant dense<0.000000e+00> : vector<16x384xf32>
    %3 = tpu.matmul %1, %2, %cst {dimension_numbers = #tpu.dot_dimension_numbers<[1], [0], [0], [1], [0, 0, 1, 1], [], []>} : vector<16x128xbf16>, vector<128x384xbf16>, vector<16x384xf32> -> vector<16x384xf32>
    %c0_3 = arith.constant 0 : index
    %c0_4 = arith.constant 0 : index
    %4 = vector.load %arg3[%c0_3, %c0_4] : memref<1x384xf32, #tpu.memory_space<vmem>>, vector<1x384xf32>
    %5 = vector.broadcast %4 : vector<1x384xf32> to vector<16x384xf32>
    %6 = arith.addf %3, %5 : vector<16x384xf32>
    %7 = vector.extract_strided_slice %6 {offsets = [0, 0], sizes = [16, 128], strides = [1, 1]} : vector<16x384xf32> to vector<16x128xf32>
    %8 = vector.extract_strided_slice %6 {offsets = [0, 128], sizes = [16, 128], strides = [1, 1]} : vector<16x384xf32> to vector<16x128xf32>
    %9 = vector.extract_strided_slice %6 {offsets = [0, 256], sizes = [16, 128], strides = [1, 1]} : vector<16x384xf32> to vector<16x128xf32>
    %c0_5 = arith.constant 0 : index
    %c0_6 = arith.constant 0 : index
    %10 = vector.load %arg1[%c0_5, %c0_6] : memref<2x8xf32, #tpu.memory_space<vmem>>, vector<2x8xf32>
    %11 = vector.extract_strided_slice %10 {offsets = [0, 0], sizes = [1, 8], strides = [1, 1]} : vector<2x8xf32> to vector<1x8xf32>
    %12 = vector.extract_strided_slice %7 {offsets = [0, 0], sizes = [8, 64], strides = [1, 1]} : vector<16x128xf32> to vector<8x64xf32>
    %13 = arith.truncf %12 : vector<8x64xf32> to vector<8x64xbf16>
    %14 = vector.extract_strided_slice %8 {offsets = [0, 0], sizes = [8, 64], strides = [1, 1]} : vector<16x128xf32> to vector<8x64xf32>
    %15 = arith.truncf %14 : vector<8x64xf32> to vector<8x64xbf16>
    %16 = vector.extract_strided_slice %9 {offsets = [0, 0], sizes = [8, 64], strides = [1, 1]} : vector<16x128xf32> to vector<8x64xf32>
    %17 = arith.truncf %16 : vector<8x64xf32> to vector<8x64xbf16>
    %cst_7 = arith.constant dense<0.000000e+00> : vector<8x8xf32>
    %18 = tpu.matmul %13, %15, %cst_7 {dimension_numbers = #tpu.dot_dimension_numbers<[1], [1], [0], [0], [0, 0, 1, 0], [], []>} : vector<8x64xbf16>, vector<8x64xbf16>, vector<8x8xf32> -> vector<8x8xf32>
    %cst_8 = arith.constant 1.250000e-01 : f32
    %19 = vector.broadcast %cst_8 : f32 to vector<8x8xf32>
    %20 = arith.mulf %18, %19 : vector<8x8xf32>
    %21 = vector.broadcast %11 : vector<1x8xf32> to vector<8x8xf32>
    %22 = arith.addf %20, %21 : vector<8x8xf32>
    %cst_9 = arith.constant dense<0xFF800000> : vector<8xf32>
    %23 = vector.multi_reduction <maximumf>, %22, %cst_9 [1] : vector<8x8xf32> to vector<8xf32>
    %24 = vector.shape_cast %23 : vector<8xf32> to vector<8x1xf32>
    %25 = vector.broadcast %24 : vector<8x1xf32> to vector<8x8xf32>
    %26 = arith.subf %22, %25 : vector<8x8xf32>
    %27 = math.exp %26 : vector<8x8xf32>
    %cst_10 = arith.constant dense<0.000000e+00> : vector<8xf32>
    %28 = vector.multi_reduction <add>, %27, %cst_10 [1] : vector<8x8xf32> to vector<8xf32>
    %29 = vector.shape_cast %28 : vector<8xf32> to vector<8x1xf32>
    %30 = tpu.reciprocal %29 {approx = true} : vector<8x1xf32> -> vector<8x1xf32>
    %31 = vector.broadcast %30 : vector<8x1xf32> to vector<8x8xf32>
    %32 = arith.mulf %27, %31 : vector<8x8xf32>
    %33 = arith.truncf %32 : vector<8x8xf32> to vector<8x8xbf16>
    %cst_11 = arith.constant dense<0.000000e+00> : vector<8x64xf32>
    %34 = tpu.matmul %33, %17, %cst_11 {dimension_numbers = #tpu.dot_dimension_numbers<[1], [0], [0], [1], [0, 0, 1, 1], [], []>} : vector<8x8xbf16>, vector<8x64xbf16>, vector<8x64xf32> -> vector<8x64xf32>
    %35 = vector.extract_strided_slice %7 {offsets = [0, 64], sizes = [8, 64], strides = [1, 1]} : vector<16x128xf32> to vector<8x64xf32>
    %36 = arith.truncf %35 : vector<8x64xf32> to vector<8x64xbf16>
    %37 = vector.extract_strided_slice %8 {offsets = [0, 64], sizes = [8, 64], strides = [1, 1]} : vector<16x128xf32> to vector<8x64xf32>
    %38 = arith.truncf %37 : vector<8x64xf32> to vector<8x64xbf16>
    %39 = vector.extract_strided_slice %9 {offsets = [0, 64], sizes = [8, 64], strides = [1, 1]} : vector<16x128xf32> to vector<8x64xf32>
    %40 = arith.truncf %39 : vector<8x64xf32> to vector<8x64xbf16>
    %cst_12 = arith.constant dense<0.000000e+00> : vector<8x8xf32>
    %41 = tpu.matmul %36, %38, %cst_12 {dimension_numbers = #tpu.dot_dimension_numbers<[1], [1], [0], [0], [0, 0, 1, 0], [], []>} : vector<8x64xbf16>, vector<8x64xbf16>, vector<8x8xf32> -> vector<8x8xf32>
    %cst_13 = arith.constant 1.250000e-01 : f32
    %42 = vector.broadcast %cst_13 : f32 to vector<8x8xf32>
    %43 = arith.mulf %41, %42 : vector<8x8xf32>
    %44 = vector.broadcast %11 : vector<1x8xf32> to vector<8x8xf32>
    %45 = arith.addf %43, %44 : vector<8x8xf32>
    %cst_14 = arith.constant dense<0xFF800000> : vector<8xf32>
    %46 = vector.multi_reduction <maximumf>, %45, %cst_14 [1] : vector<8x8xf32> to vector<8xf32>
    %47 = vector.shape_cast %46 : vector<8xf32> to vector<8x1xf32>
    %48 = vector.broadcast %47 : vector<8x1xf32> to vector<8x8xf32>
    %49 = arith.subf %45, %48 : vector<8x8xf32>
    %50 = math.exp %49 : vector<8x8xf32>
    %cst_15 = arith.constant dense<0.000000e+00> : vector<8xf32>
    %51 = vector.multi_reduction <add>, %50, %cst_15 [1] : vector<8x8xf32> to vector<8xf32>
    %52 = vector.shape_cast %51 : vector<8xf32> to vector<8x1xf32>
    %53 = tpu.reciprocal %52 {approx = true} : vector<8x1xf32> -> vector<8x1xf32>
    %54 = vector.broadcast %53 : vector<8x1xf32> to vector<8x8xf32>
    %55 = arith.mulf %50, %54 : vector<8x8xf32>
    %56 = arith.truncf %55 : vector<8x8xf32> to vector<8x8xbf16>
    %cst_16 = arith.constant dense<0.000000e+00> : vector<8x64xf32>
    %57 = tpu.matmul %56, %40, %cst_16 {dimension_numbers = #tpu.dot_dimension_numbers<[1], [0], [0], [1], [0, 0, 1, 1], [], []>} : vector<8x8xbf16>, vector<8x64xbf16>, vector<8x64xf32> -> vector<8x64xf32>
    %58 = tpu.concatenate %34, %57 in 1 : vector<8x64xf32>, vector<8x64xf32> -> vector<8x128xf32>
    %59 = vector.extract_strided_slice %10 {offsets = [1, 0], sizes = [1, 8], strides = [1, 1]} : vector<2x8xf32> to vector<1x8xf32>
    %60 = vector.extract_strided_slice %7 {offsets = [8, 0], sizes = [8, 64], strides = [1, 1]} : vector<16x128xf32> to vector<8x64xf32>
    %61 = arith.truncf %60 : vector<8x64xf32> to vector<8x64xbf16>
    %62 = vector.extract_strided_slice %8 {offsets = [8, 0], sizes = [8, 64], strides = [1, 1]} : vector<16x128xf32> to vector<8x64xf32>
    %63 = arith.truncf %62 : vector<8x64xf32> to vector<8x64xbf16>
    %64 = vector.extract_strided_slice %9 {offsets = [8, 0], sizes = [8, 64], strides = [1, 1]} : vector<16x128xf32> to vector<8x64xf32>
    %65 = arith.truncf %64 : vector<8x64xf32> to vector<8x64xbf16>
    %cst_17 = arith.constant dense<0.000000e+00> : vector<8x8xf32>
    %66 = tpu.matmul %61, %63, %cst_17 {dimension_numbers = #tpu.dot_dimension_numbers<[1], [1], [0], [0], [0, 0, 1, 0], [], []>} : vector<8x64xbf16>, vector<8x64xbf16>, vector<8x8xf32> -> vector<8x8xf32>
    %cst_18 = arith.constant 1.250000e-01 : f32
    %67 = vector.broadcast %cst_18 : f32 to vector<8x8xf32>
    %68 = arith.mulf %66, %67 : vector<8x8xf32>
    %69 = vector.broadcast %59 : vector<1x8xf32> to vector<8x8xf32>
    %70 = arith.addf %68, %69 : vector<8x8xf32>
    %cst_19 = arith.constant dense<0xFF800000> : vector<8xf32>
    %71 = vector.multi_reduction <maximumf>, %70, %cst_19 [1] : vector<8x8xf32> to vector<8xf32>
    %72 = vector.shape_cast %71 : vector<8xf32> to vector<8x1xf32>
    %73 = vector.broadcast %72 : vector<8x1xf32> to vector<8x8xf32>
    %74 = arith.subf %70, %73 : vector<8x8xf32>
    %75 = math.exp %74 : vector<8x8xf32>
    %cst_20 = arith.constant dense<0.000000e+00> : vector<8xf32>
    %76 = vector.multi_reduction <add>, %75, %cst_20 [1] : vector<8x8xf32> to vector<8xf32>
    %77 = vector.shape_cast %76 : vector<8xf32> to vector<8x1xf32>
    %78 = tpu.reciprocal %77 {approx = true} : vector<8x1xf32> -> vector<8x1xf32>
    %79 = vector.broadcast %78 : vector<8x1xf32> to vector<8x8xf32>
    %80 = arith.mulf %75, %79 : vector<8x8xf32>
    %81 = arith.truncf %80 : vector<8x8xf32> to vector<8x8xbf16>
    %cst_21 = arith.constant dense<0.000000e+00> : vector<8x64xf32>
    %82 = tpu.matmul %81, %65, %cst_21 {dimension_numbers = #tpu.dot_dimension_numbers<[1], [0], [0], [1], [0, 0, 1, 1], [], []>} : vector<8x8xbf16>, vector<8x64xbf16>, vector<8x64xf32> -> vector<8x64xf32>
    %83 = vector.extract_strided_slice %7 {offsets = [8, 64], sizes = [8, 64], strides = [1, 1]} : vector<16x128xf32> to vector<8x64xf32>
    %84 = arith.truncf %83 : vector<8x64xf32> to vector<8x64xbf16>
    %85 = vector.extract_strided_slice %8 {offsets = [8, 64], sizes = [8, 64], strides = [1, 1]} : vector<16x128xf32> to vector<8x64xf32>
    %86 = arith.truncf %85 : vector<8x64xf32> to vector<8x64xbf16>
    %87 = vector.extract_strided_slice %9 {offsets = [8, 64], sizes = [8, 64], strides = [1, 1]} : vector<16x128xf32> to vector<8x64xf32>
    %88 = arith.truncf %87 : vector<8x64xf32> to vector<8x64xbf16>
    %cst_22 = arith.constant dense<0.000000e+00> : vector<8x8xf32>
    %89 = tpu.matmul %84, %86, %cst_22 {dimension_numbers = #tpu.dot_dimension_numbers<[1], [1], [0], [0], [0, 0, 1, 0], [], []>} : vector<8x64xbf16>, vector<8x64xbf16>, vector<8x8xf32> -> vector<8x8xf32>
    %cst_23 = arith.constant 1.250000e-01 : f32
    %90 = vector.broadcast %cst_23 : f32 to vector<8x8xf32>
    %91 = arith.mulf %89, %90 : vector<8x8xf32>
    %92 = vector.broadcast %59 : vector<1x8xf32> to vector<8x8xf32>
    %93 = arith.addf %91, %92 : vector<8x8xf32>
    %cst_24 = arith.constant dense<0xFF800000> : vector<8xf32>
    %94 = vector.multi_reduction <maximumf>, %93, %cst_24 [1] : vector<8x8xf32> to vector<8xf32>
    %95 = vector.shape_cast %94 : vector<8xf32> to vector<8x1xf32>
    %96 = vector.broadcast %95 : vector<8x1xf32> to vector<8x8xf32>
    %97 = arith.subf %93, %96 : vector<8x8xf32>
    %98 = math.exp %97 : vector<8x8xf32>
    %cst_25 = arith.constant dense<0.000000e+00> : vector<8xf32>
    %99 = vector.multi_reduction <add>, %98, %cst_25 [1] : vector<8x8xf32> to vector<8xf32>
    %100 = vector.shape_cast %99 : vector<8xf32> to vector<8x1xf32>
    %101 = tpu.reciprocal %100 {approx = true} : vector<8x1xf32> -> vector<8x1xf32>
    %102 = vector.broadcast %101 : vector<8x1xf32> to vector<8x8xf32>
    %103 = arith.mulf %98, %102 : vector<8x8xf32>
    %104 = arith.truncf %103 : vector<8x8xf32> to vector<8x8xbf16>
    %cst_26 = arith.constant dense<0.000000e+00> : vector<8x64xf32>
    %105 = tpu.matmul %104, %88, %cst_26 {dimension_numbers = #tpu.dot_dimension_numbers<[1], [0], [0], [1], [0, 0, 1, 1], [], []>} : vector<8x8xbf16>, vector<8x64xbf16>, vector<8x64xf32> -> vector<8x64xf32>
    %106 = tpu.concatenate %82, %105 in 1 : vector<8x64xf32>, vector<8x64xf32> -> vector<8x128xf32>
    %107 = tpu.concatenate %58, %106 in 0 : vector<8x128xf32>, vector<8x128xf32> -> vector<16x128xf32>
    %108 = arith.truncf %107 : vector<16x128xf32> to vector<16x128xbf16>
    %c0_27 = arith.constant 0 : index
    %c0_28 = arith.constant 0 : index
    %109 = vector.load %arg4[%c0_27, %c0_28] : memref<128x128xbf16, #tpu.memory_space<vmem>>, vector<128x128xbf16>
    %cst_29 = arith.constant dense<0.000000e+00> : vector<16x128xf32>
    %110 = tpu.matmul %108, %109, %cst_29 {dimension_numbers = #tpu.dot_dimension_numbers<[1], [0], [0], [1], [0, 0, 1, 1], [], []>} : vector<16x128xbf16>, vector<128x128xbf16>, vector<16x128xf32> -> vector<16x128xf32>
    %c0_30 = arith.constant 0 : index
    %c0_31 = arith.constant 0 : index
    %111 = vector.load %arg5[%c0_30, %c0_31] : memref<1x128xf32, #tpu.memory_space<vmem>>, vector<1x128xf32>
    %112 = vector.broadcast %111 : vector<1x128xf32> to vector<16x128xf32>
    %113 = arith.addf %110, %112 : vector<16x128xf32>
    %114 = arith.addf %0, %113 : vector<16x128xf32>
    %c0_32 = arith.constant 0 : index
    %c0_33 = arith.constant 0 : index
    %115 = vector.load %arg6[%c0_32, %c0_33] : memref<1x128xf32, #tpu.memory_space<vmem>>, vector<1x128xf32>
    %c0_34 = arith.constant 0 : index
    %c0_35 = arith.constant 0 : index
    %116 = vector.load %arg7[%c0_34, %c0_35] : memref<1x128xf32, #tpu.memory_space<vmem>>, vector<1x128xf32>
    %cst_36 = arith.constant dense<0.000000e+00> : vector<16xf32>
    %117 = vector.multi_reduction <add>, %114, %cst_36 [1] : vector<16x128xf32> to vector<16xf32>
    %118 = vector.shape_cast %117 : vector<16xf32> to vector<16x1xf32>
    %cst_37 = arith.constant 1.280000e+02 : f32
    %119 = vector.broadcast %cst_37 : f32 to vector<16x1xf32>
    %120 = arith.divf %118, %119 : vector<16x1xf32>
    %121 = vector.broadcast %120 : vector<16x1xf32> to vector<16x128xf32>
    %122 = arith.subf %114, %121 : vector<16x128xf32>
    %123 = arith.mulf %122, %122 : vector<16x128xf32>
    %cst_38 = arith.constant dense<0.000000e+00> : vector<16xf32>
    %124 = vector.multi_reduction <add>, %123, %cst_38 [1] : vector<16x128xf32> to vector<16xf32>
    %125 = vector.shape_cast %124 : vector<16xf32> to vector<16x1xf32>
    %cst_39 = arith.constant 1.280000e+02 : f32
    %126 = vector.broadcast %cst_39 : f32 to vector<16x1xf32>
    %127 = arith.divf %125, %126 : vector<16x1xf32>
    %128 = vector.broadcast %120 : vector<16x1xf32> to vector<16x128xf32>
    %129 = arith.subf %114, %128 : vector<16x128xf32>
    %cst_40 = arith.constant 9.99999996E-13 : f32
    %130 = vector.broadcast %cst_40 : f32 to vector<16x1xf32>
    %131 = arith.addf %127, %130 : vector<16x1xf32>
    %132 = math.rsqrt %131 : vector<16x1xf32>
    %133 = vector.broadcast %132 : vector<16x1xf32> to vector<16x128xf32>
    %134 = arith.mulf %129, %133 : vector<16x128xf32>
    %135 = vector.broadcast %115 : vector<1x128xf32> to vector<16x128xf32>
    %136 = arith.mulf %134, %135 : vector<16x128xf32>
    %137 = vector.broadcast %116 : vector<1x128xf32> to vector<16x128xf32>
    %138 = arith.addf %136, %137 : vector<16x128xf32>
    %139 = arith.truncf %138 : vector<16x128xf32> to vector<16x128xbf16>
    %c0_41 = arith.constant 0 : index
    %c0_42 = arith.constant 0 : index
    %140 = vector.load %arg8[%c0_41, %c0_42] : memref<128x256xbf16, #tpu.memory_space<vmem>>, vector<128x256xbf16>
    %cst_43 = arith.constant dense<0.000000e+00> : vector<16x256xf32>
    %141 = tpu.matmul %139, %140, %cst_43 {dimension_numbers = #tpu.dot_dimension_numbers<[1], [0], [0], [1], [0, 0, 1, 1], [], []>} : vector<16x128xbf16>, vector<128x256xbf16>, vector<16x256xf32> -> vector<16x256xf32>
    %c0_44 = arith.constant 0 : index
    %c0_45 = arith.constant 0 : index
    %142 = vector.load %arg9[%c0_44, %c0_45] : memref<1x256xf32, #tpu.memory_space<vmem>>, vector<1x256xf32>
    %143 = vector.broadcast %142 : vector<1x256xf32> to vector<16x256xf32>
    %144 = arith.addf %141, %143 : vector<16x256xf32>
    %cst_46 = arith.constant 5.000000e-01 : f32
    %145 = vector.broadcast %cst_46 : f32 to vector<16x256xf32>
    %146 = arith.mulf %145, %144 : vector<16x256xf32>
    %cst_47 = arith.constant 4.471500e-02 : f32
    %147 = vector.broadcast %cst_47 : f32 to vector<16x256xf32>
    %148 = arith.mulf %147, %144 : vector<16x256xf32>
    %149 = arith.mulf %148, %144 : vector<16x256xf32>
    %150 = arith.mulf %149, %144 : vector<16x256xf32>
    %151 = arith.addf %144, %150 : vector<16x256xf32>
    %cst_48 = arith.constant 0.797884583 : f32
    %152 = vector.broadcast %cst_48 : f32 to vector<16x256xf32>
    %153 = arith.mulf %152, %151 : vector<16x256xf32>
    %154 = math.tanh %153 : vector<16x256xf32>
    %cst_49 = arith.constant 1.000000e+00 : f32
    %155 = vector.broadcast %cst_49 : f32 to vector<16x256xf32>
    %156 = arith.addf %155, %154 : vector<16x256xf32>
    %157 = arith.mulf %146, %156 : vector<16x256xf32>
    %158 = arith.truncf %157 : vector<16x256xf32> to vector<16x256xbf16>
    %c0_50 = arith.constant 0 : index
    %c0_51 = arith.constant 0 : index
    %159 = vector.load %arg10[%c0_50, %c0_51] : memref<256x128xbf16, #tpu.memory_space<vmem>>, vector<256x128xbf16>
    %cst_52 = arith.constant dense<0.000000e+00> : vector<16x128xf32>
    %160 = tpu.matmul %158, %159, %cst_52 {dimension_numbers = #tpu.dot_dimension_numbers<[1], [0], [0], [1], [0, 0, 1, 1], [], []>} : vector<16x256xbf16>, vector<256x128xbf16>, vector<16x128xf32> -> vector<16x128xf32>
    %c0_53 = arith.constant 0 : index
    %c0_54 = arith.constant 0 : index
    %161 = vector.load %arg11[%c0_53, %c0_54] : memref<1x128xf32, #tpu.memory_space<vmem>>, vector<1x128xf32>
    %162 = vector.broadcast %161 : vector<1x128xf32> to vector<16x128xf32>
    %163 = arith.addf %160, %162 : vector<16x128xf32>
    %164 = arith.addf %138, %163 : vector<16x128xf32>
    %c0_55 = arith.constant 0 : index
    %c0_56 = arith.constant 0 : index
    %165 = vector.load %arg12[%c0_55, %c0_56] : memref<1x128xf32, #tpu.memory_space<vmem>>, vector<1x128xf32>
    %c0_57 = arith.constant 0 : index
    %c0_58 = arith.constant 0 : index
    %166 = vector.load %arg13[%c0_57, %c0_58] : memref<1x128xf32, #tpu.memory_space<vmem>>, vector<1x128xf32>
    %cst_59 = arith.constant dense<0.000000e+00> : vector<16xf32>
    %167 = vector.multi_reduction <add>, %164, %cst_59 [1] : vector<16x128xf32> to vector<16xf32>
    %168 = vector.shape_cast %167 : vector<16xf32> to vector<16x1xf32>
    %cst_60 = arith.constant 1.280000e+02 : f32
    %169 = vector.broadcast %cst_60 : f32 to vector<16x1xf32>
    %170 = arith.divf %168, %169 : vector<16x1xf32>
    %171 = vector.broadcast %170 : vector<16x1xf32> to vector<16x128xf32>
    %172 = arith.subf %164, %171 : vector<16x128xf32>
    %173 = arith.mulf %172, %172 : vector<16x128xf32>
    %cst_61 = arith.constant dense<0.000000e+00> : vector<16xf32>
    %174 = vector.multi_reduction <add>, %173, %cst_61 [1] : vector<16x128xf32> to vector<16xf32>
    %175 = vector.shape_cast %174 : vector<16xf32> to vector<16x1xf32>
    %cst_62 = arith.constant 1.280000e+02 : f32
    %176 = vector.broadcast %cst_62 : f32 to vector<16x1xf32>
    %177 = arith.divf %175, %176 : vector<16x1xf32>
    %178 = vector.broadcast %170 : vector<16x1xf32> to vector<16x128xf32>
    %179 = arith.subf %164, %178 : vector<16x128xf32>
    %cst_63 = arith.constant 9.99999996E-13 : f32
    %180 = vector.broadcast %cst_63 : f32 to vector<16x1xf32>
    %181 = arith.addf %177, %180 : vector<16x1xf32>
    %182 = math.rsqrt %181 : vector<16x1xf32>
    %183 = vector.broadcast %182 : vector<16x1xf32> to vector<16x128xf32>
    %184 = arith.mulf %179, %183 : vector<16x128xf32>
    %185 = vector.broadcast %165 : vector<1x128xf32> to vector<16x128xf32>
    %186 = arith.mulf %184, %185 : vector<16x128xf32>
    %187 = vector.broadcast %166 : vector<1x128xf32> to vector<16x128xf32>
    %188 = arith.addf %186, %187 : vector<16x128xf32>
    %c0_64 = arith.constant 0 : index
    %c0_65 = arith.constant 0 : index
    %189 = vector.load %arg14[%c0_64, %c0_65] : memref<16x128xf32, #tpu.memory_space<vmem>>, vector<16x128xf32>
    tpu.vector_store %arg14[%c0_64, %c0_65], %188 {strides = array<i32>} : memref<16x128xf32, #tpu.memory_space<vmem>>, vector<16x128xf32>,
    return
  }
}

</mosaic_0001>

<llo_original>
// kernel: bert_classifier_forward.4
$region0: #{bert_classifier_forward.4}
  #allocation0 [shape = 'u32[]', space=smem, size = 0x4, offset = 0x4, fixed_abs, tag = 'smem constant byte address 0x4 - core index']
  #allocation1 [shape = 'u32[144,128]{1,0:T(1,128)}', space=vmem, size = 0x12000, scoped, tag = 'internal scratch']
  %s0 = inlined_call_operand.vmem [shape: f32[16,128], index: 0, kind: input, shape index: {}]
  %s1 = inlined_call_operand.vmem [shape: f32[8,128], index: 1, kind: input, shape index: {}]
  %s2 = inlined_call_operand.vmem [shape: f32[1,128], index: 2, kind: input, shape index: {}]
  %s3 = inlined_call_operand.hbm [shape: f32[1,128], index: 3, kind: input, shape index: {}]
  %s4 = inlined_call_operand.hbm [shape: f32[1,128], index: 4, kind: input, shape index: {}]
  %s5 = inlined_call_operand.vmem [shape: f32[16,128], index: 5, kind: output, shape index: {}]
  %s6 = sld [smem:[#allocation0]]
  $region38: #{bert_classifier_forward.4} parent=0
    _
  %s8 = ssub.s32 1, %s6
  %s9 = scalar_select 0, %s8, %s6
  $region1: #{bert_classifier_forward.4} parent=0
    #allocation2 [shape = 'u8[512]{0}', space=vmem, size = 0x400, scoped, tag = 'input window, operand 3, single buffered']
    #allocation3 [shape = 's32[1]{0}', space=sflag, size = 0x4, scoped, tag = 'scoped memory for bert_classifier_forward.4']
    #allocation4 [shape = 'u8[512]{0}', space=vmem, size = 0x400, scoped, tag = 'input window, operand 4, single buffered']
    #allocation5 [shape = 's32[1]{0}', space=sflag, size = 0x4, scoped, tag = 'scoped memory for bert_classifier_forward.4']
    %10 = vsyncpa [#allocation3], 0
    %11 = vsyncpa [#allocation5], 0
    // Predicated region
    $region2: #{bert_classifier_forward.4} parent=1 // pred_check
      _
    $region3: #{bert_classifier_forward.4} parent=1 // pred_check_branch
      %13 = sbr.rel (0) target = $region5
    $region4: #{bert_classifier_forward.4} parent=1 // pred_region
      _
    $region5: #{bert_classifier_forward.4} parent=1 // pred_fallthru
      _
    // Predicated region
    $region6: #{bert_classifier_forward.4} parent=1 // pred_check
      _
    $region7: #{bert_classifier_forward.4} parent=1 // pred_check_branch
      %15 = sbr.rel (0) target = $region9
    $region8: #{bert_classifier_forward.4} parent=1 // pred_region
      _
    $region9: #{bert_classifier_forward.4} parent=1 // pred_fallthru
      _
    // Predicated region
    $region10: #{bert_classifier_forward.4} parent=1 // pred_check
      _
    $region11: #{bert_classifier_forward.4} parent=1 // pred_check_branch
      %17 = sbr.rel (0) target = $region13
    $region12: #{bert_classifier_forward.4} parent=1 // pred_region
      _
    $region13: #{bert_classifier_forward.4} parent=1 // pred_fallthru
      _
    // Predicated region
    $region14: #{bert_classifier_forward.4} parent=1 // pred_check
      _
    $region15: #{bert_classifier_forward.4} parent=1 // pred_check_branch
      %19 = sbr.rel (0) target = $region17
    $region16: #{bert_classifier_forward.4} parent=1 // pred_region
      %s21 = ssub.s32 16, 16
      %22 = vsyncadd [#allocation3], %s21
      %s24 = sshll.u32 [#allocation2], 4
      %s25 = int_to_ptr.vmem [resolvable:$true] %s24
      %27 = dma.hbm_to_vmem [thread:$0]  %s3, 16, %s25, [#allocation3]
    $region17: #{bert_classifier_forward.4} parent=1 // pred_fallthru
      _
    // Predicated region
    $region18: #{bert_classifier_forward.4} parent=1 // pred_check
      _
    $region19: #{bert_classifier_forward.4} parent=1 // pred_check_branch
      %29 = sbr.rel (0) target = $region21
    $region20: #{bert_classifier_forward.4} parent=1 // pred_region
      %s31 = ssub.s32 16, 16
      %32 = vsyncadd [#allocation5], %s31
      %s34 = sshll.u32 [#allocation4], 4
      %s35 = int_to_ptr.vmem [resolvable:$true] %s34
      %37 = dma.hbm_to_vmem [thread:$0]  %s4, 16, %s35, [#allocation5]
    $region21: #{bert_classifier_forward.4} parent=1 // pred_fallthru
      _
    // Predicated region
    $region22: #{bert_classifier_forward.4} parent=1 // pred_check
      _
    $region23: #{bert_classifier_forward.4} parent=1 // pred_check_branch
      %39 = sbr.rel (0) target = $region25
    $region24: #{bert_classifier_forward.4} parent=1 // pred_region
      %40 = dma.done [#allocation3], 16
    $region25: #{bert_classifier_forward.4} parent=1 // pred_fallthru
      _
    // Predicated region
    $region26: #{bert_classifier_forward.4} parent=1 // pred_check
      _
    $region27: #{bert_classifier_forward.4} parent=1 // pred_check_branch
      %42 = sbr.rel (0) target = $region29
    $region28: #{bert_classifier_forward.4} parent=1 // pred_region
      %43 = dma.done [#allocation5], 16
    $region29: #{bert_classifier_forward.4} parent=1 // pred_fallthru
      _
    %v44 = vld [vmem:[%s1] sm:$0xff]
    %v45 = vld [vmem:[%s0] sm:$0xff]
    %v46 = vld [vmem:[%s0 + $0x8] sm:$0xff]
    %v47 = vadd.f32 %v45, %v44
    %v48 = vadd.f32 %v46, %v44
    %v49 = vld [vmem:[%s2] sm:$0x1]
    %v51 = vlaneseq
    %v52 = vshrl.u32 %v51, 7
    %v53 = vsub.s32 0, %v52
    %v54 = vrot.slane %v49, %v53
    %v56 = vadd.f32 %v47, %v54
    %v57 = vadd.f32 %v48, %v54
    %v58 = vld [vmem:[#allocation2] sm:$0x1]
    %v59 = vld [vmem:[#allocation4] sm:$0x1]
    %60 = vadd.xlane.f32.xlu0 %v56
    %v61 = vpop.xlane.xlu0 %60
    %62 = vadd.xlane.f32.xlu0 %v57
    %v63 = vpop.xlane.xlu0 %62
    %v64 = vrcp.pop 128.0
    %v65 = vmul.f32 %v61, %v64
    %v66 = vmul.f32 %v63, %v64
    %v67 = vsub.f32 %v56, %v65
    %v68 = vsub.f32 %v57, %v66
    %v69 = vmul.f32 %v67, %v67
    %v70 = vmul.f32 %v68, %v68
    %71 = vadd.xlane.f32.xlu0 %v69
    %v72 = vpop.xlane.xlu0 %71
    %73 = vadd.xlane.f32.xlu0 %v70
    %v74 = vpop.xlane.xlu0 %73
    %v75 = vmul.f32 %v72, %v64
    %v76 = vmul.f32 %v74, %v64
    %v77 = vadd.f32 %v75, 1e-12
    %v78 = vadd.f32 %v76, 1e-12
    %v79 = vrsqrt.pop %v77
    %v80 = vrsqrt.pop %v78
    %v81 = vmul.f32 %v67, %v79
    %v82 = vmul.f32 %v68, %v80
    %v84 = vlaneseq
    %v85 = vshrl.u32 %v84, 7
    %v86 = vsub.s32 0, %v85
    %v87 = vrot.slane %v58, %v86
    %v89 = vmul.f32 %v81, %v87
    %v90 = vmul.f32 %v82, %v87
    %v92 = vlaneseq
    %v93 = vshrl.u32 %v92, 7
    %v94 = vsub.s32 0, %v93
    %v95 = vrot.slane %v59, %v94
    %v97 = vadd.f32 %v89, %v95
    %v98 = vadd.f32 %v90, %v95
    %99 = vst [vmem:[%s5] sm:$0xff] %v97
    %100 = vst [vmem:[%s5 + $0x8] sm:$0xff] %v98
    // Predicated region
    $region30: #{bert_classifier_forward.4} parent=1 // pred_check
      _
    $region31: #{bert_classifier_forward.4} parent=1 // pred_check_branch
      %102 = sbr.rel (0) target = $region33
    $region32: #{bert_classifier_forward.4} parent=1 // pred_region
      _
    $region33: #{bert_classifier_forward.4} parent=1 // pred_fallthru
      _
    // Predicated region
    $region34: #{bert_classifier_forward.4} parent=1 // pred_check
      _
    $region35: #{bert_classifier_forward.4} parent=1 // pred_check_branch
      %104 = sbr.rel (0) target = $region37
    $region36: #{bert_classifier_forward.4} parent=1 // pred_region
      _
    $region37: #{bert_classifier_forward.4} parent=1 // pred_fallthru
      _
    %105 = vsyncpa [#allocation3], 1
    %106 = vsyncpa [#allocation5], 1

// kernel: bert_classifier_forward.7
$region0: #{bert_classifier_forward.7}
  #allocation0 [shape = 'u32[]', space=smem, size = 0x4, offset = 0x4, fixed_abs, tag = 'smem constant byte address 0x4 - core index']
  #allocation1 [shape = 'u32[144,128]{1,0:T(1,128)}', space=vmem, size = 0x12000, scoped, tag = 'internal scratch']
  %s0 = inlined_call_operand.vmem [shape: f32[2,128], index: 0, kind: input, shape index: {}]
  %s1 = inlined_call_operand.vmem [shape: bf16[128,128], index: 1, kind: input, shape index: {}]
  %s2 = inlined_call_operand.vmem [shape: f32[1,128], index: 2, kind: input, shape index: {}]
  %s3 = inlined_call_operand.vmem [shape: bf16[128,4], index: 3, kind: input, shape index: {}]
  %s4 = inlined_call_operand.vmem [shape: f32[1,4], index: 4, kind: input, shape index: {}]
  %s5 = inlined_call_operand.hbm [shape: f32[2,4], index: 5, kind: output, shape index: {}]
  %s6 = sld [smem:[#allocation0]]
  $region30: #{bert_classifier_forward.7} parent=0
    _
  %s8 = ssub.s32 1, %s6
  %s9 = scalar_select 0, %s8, %s6
  $region1: #{bert_classifier_forward.7} parent=0
    #allocation2 [shape = 'u8[1024]{0}', space=vmem, size = 0x400, scoped, tag = 'output window, operand 0, single buffered']
    #allocation3 [shape = 's32[1]{0}', space=sflag, size = 0x4, scoped, tag = 'scoped memory for bert_classifier_forward.7']
    %10 = vsyncpa [#allocation3], 0
    // Predicated region
    $region2: #{bert_classifier_forward.7} parent=1 // pred_check
      _
    $region3: #{bert_classifier_forward.7} parent=1 // pred_check_branch
      %12 = sbr.rel (0) target = $region5
    $region4: #{bert_classifier_forward.7} parent=1 // pred_region
      _
    $region5: #{bert_classifier_forward.7} parent=1 // pred_fallthru
      _
    // Predicated region
    $region6: #{bert_classifier_forward.7} parent=1 // pred_check
      _
    $region7: #{bert_classifier_forward.7} parent=1 // pred_check_branch
      %14 = sbr.rel (0) target = $region9
    $region8: #{bert_classifier_forward.7} parent=1 // pred_region
      _
    $region9: #{bert_classifier_forward.7} parent=1 // pred_fallthru
      _
    // Predicated region
    $region10: #{bert_classifier_forward.7} parent=1 // pred_check
      _
    $region11: #{bert_classifier_forward.7} parent=1 // pred_check_branch
      %16 = sbr.rel (0) target = $region13
    $region12: #{bert_classifier_forward.7} parent=1 // pred_region
      _
    $region13: #{bert_classifier_forward.7} parent=1 // pred_fallthru
      _
    // Predicated region
    $region14: #{bert_classifier_forward.7} parent=1 // pred_check
      _
    $region15: #{bert_classifier_forward.7} parent=1 // pred_check_branch
      %18 = sbr.rel (0) target = $region17
    $region16: #{bert_classifier_forward.7} parent=1 // pred_region
      _
    $region17: #{bert_classifier_forward.7} parent=1 // pred_fallthru
      _
    // Predicated region
    $region18: #{bert_classifier_forward.7} parent=1 // pred_check
      _
    $region19: #{bert_classifier_forward.7} parent=1 // pred_check_branch
      %20 = sbr.rel (0) target = $region21
    $region20: #{bert_classifier_forward.7} parent=1 // pred_region
      _
    $region21: #{bert_classifier_forward.7} parent=1 // pred_fallthru
      _
    %v22 = vld [vmem:[%s0] sm:$0x3]
    %v23 = vpack.c.bf16 %v22, %v22
    %v24 = vld [vmem:[%s1] sm:$0xf]
    %v25 = vld [vmem:[%s1 + $0x4] sm:$0xf]
    %v26 = vld [vmem:[%s1 + $0x8] sm:$0xf]
    %v27 = vld [vmem:[%s1 + $0xc] sm:$0xf]
    %v28 = vld [vmem:[%s1 + $0x10] sm:$0xf]
    %v29 = vld [vmem:[%s1 + $0x14] sm:$0xf]
    %v30 = vld [vmem:[%s1 + $0x18] sm:$0xf]
    %v31 = vld [vmem:[%s1 + $0x1c] sm:$0xf]
    %v32 = vld [vmem:[%s1 + $0x20] sm:$0xf]
    %v33 = vld [vmem:[%s1 + $0x24] sm:$0xf]
    %v34 = vld [vmem:[%s1 + $0x28] sm:$0xf]
    %v35 = vld [vmem:[%s1 + $0x2c] sm:$0xf]
    %v36 = vld [vmem:[%s1 + $0x30] sm:$0xf]
    %v37 = vld [vmem:[%s1 + $0x34] sm:$0xf]
    %v38 = vld [vmem:[%s1 + $0x38] sm:$0xf]
    %v39 = vld [vmem:[%s1 + $0x3c] sm:$0xf]
    %v40 = vld [vmem:[%s2] sm:$0x1]
    %v42 = vlaneseq
    %v43 = vshrl.u32 %v42, 7
    %v44 = vsub.s32 0, %v43
    %v45 = vrot.slane %v40, %v44
    %v63 = vunpack.c.l.b16 %v24
    %v64 = vunpack.c.l.b16 %v25
    %v65 = vunpack.c.l.b16 %v26
    %v66 = vunpack.c.l.b16 %v27
    %v67 = vunpack.c.l.b16 %v28
    %v68 = vunpack.c.l.b16 %v29
    %v69 = vunpack.c.l.b16 %v30
    %v70 = vunpack.c.l.b16 %v31
    %v71 = vunpack.c.l.b16 %v32
    %v72 = vunpack.c.l.b16 %v33
    %v73 = vunpack.c.l.b16 %v34
    %v74 = vunpack.c.l.b16 %v35
    %v75 = vunpack.c.l.b16 %v36
    %v76 = vunpack.c.l.b16 %v37
    %v77 = vunpack.c.l.b16 %v38
    %v78 = vunpack.c.l.b16 %v39
    %v79 = vpack.c.b16 %v64, %v63
    %v80 = vpack.c.b16 %v66, %v65
    %v81 = vpack.c.b16 %v68, %v67
    %v82 = vpack.c.b16 %v70, %v69
    %v83 = vpack.c.b16 %v72, %v71
    %v84 = vpack.c.b16 %v74, %v73
    %v85 = vpack.c.b16 %v76, %v75
    %v86 = vpack.c.b16 %v78, %v77
    %95 = vmatprep.subr.bf16.mxu0 0
    %96 = vmatpush1.bf16.msra.mxu0 %v79
    %97 = vmatprep.subr.bf16.mxu0 0
    %98 = vmatpush1.bf16.msra.mxu0 %v80
    %99 = vmatprep.subr.bf16.mxu0 0
    %100 = vmatpush1.bf16.msra.mxu0 %v81
    %101 = vmatprep.subr.bf16.mxu0 0
    %102 = vmatpush1.bf16.msra.mxu0 %v82
    %103 = vmatprep.subr.bf16.mxu0 0
    %104 = vmatpush1.bf16.msra.mxu0 %v83
    %105 = vmatprep.subr.bf16.mxu0 0
    %106 = vmatpush1.bf16.msra.mxu0 %v84
    %107 = vmatprep.subr.bf16.mxu0 0
    %108 = vmatpush1.bf16.msra.mxu0 %v85
    %109 = vmatprep.subr.bf16.mxu0 0
    %110 = vmatpush1.bf16.msra.mxu0 %v86
    %111 = vmatprep.subr.bf16.mxu0 0
    %112 = vmatpush1.bf16.msra.mxu0 0
    %113 = vmatprep.subr.bf16.mxu0 0
    %114 = vmatpush1.bf16.msra.mxu0 0
    %115 = vmatprep.subr.bf16.mxu0 0
    %116 = vmatpush1.bf16.msra.mxu0 0
    %117 = vmatprep.subr.bf16.mxu0 0
    %118 = vmatpush1.bf16.msra.mxu0 0
    %119 = vmatprep.subr.bf16.mxu0 0
    %120 = vmatpush1.bf16.msra.mxu0 0
    %121 = vmatprep.subr.bf16.mxu0 0
    %122 = vmatpush1.bf16.msra.mxu0 0
    %123 = vmatprep.subr.bf16.mxu0 0
    %124 = vmatpush1.bf16.msra.mxu0 0
    %125 = vmatprep.subr.bf16.mxu0 0
    %126 = vmatpush1.bf16.msra.mxu0 0
    %127 = vmatprep.mubr.bf16.mxu0 0
    %128 = vmatmul.mubr.bf16.gmra.mrb[0].mxu0 %v23
    %v129 = vpop.f32.mrb[0].mxu0
    %v130 = vadd.f32 %v45, %v129
    %v131 = vpop.f32.mrb[0].mxu0
    %v132 = vpop.f32.mrb[0].mxu0
    %v133 = vpop.f32.mrb[0].mxu0
    %134 = vdwg.mxu0
    %v135 = vtanh.pop %v130
    %v136 = vpack.c.bf16 %v135, %v135
    %v137 = vld [vmem:[%s3] sm:$0xf]
    %v138 = vld [vmem:[%s3 + $0x4] sm:$0xf]
    %v139 = vld [vmem:[%s3 + $0x8] sm:$0xf]
    %v140 = vld [vmem:[%s3 + $0xc] sm:$0xf]
    %v141 = vld [vmem:[%s3 + $0x10] sm:$0xf]
    %v142 = vld [vmem:[%s3 + $0x14] sm:$0xf]
    %v143 = vld [vmem:[%s3 + $0x18] sm:$0xf]
    %v144 = vld [vmem:[%s3 + $0x1c] sm:$0xf]
    %v145 = vld [vmem:[%s3 + $0x20] sm:$0xf]
    %v146 = vld [vmem:[%s3 + $0x24] sm:$0xf]
    %v147 = vld [vmem:[%s3 + $0x28] sm:$0xf]
    %v148 = vld [vmem:[%s3 + $0x2c] sm:$0xf]
    %v149 = vld [vmem:[%s3 + $0x30] sm:$0xf]
    %v150 = vld [vmem:[%s3 + $0x34] sm:$0xf]
    %v151 = vld [vmem:[%s3 + $0x38] sm:$0xf]
    %v152 = vld [vmem:[%s3 + $0x3c] sm:$0xf]
    %v153 = vld [vmem:[%s4] sm:$0x1]
    %v155 = vlaneseq
    %v156 = vshrl.u32 %v155, 7
    %v157 = vsub.s32 0, %v156
    %v158 = vrot.slane %v153, %v157
    %v176 = vunpack.c.l.b16 %v137
    %v177 = vunpack.c.l.b16 %v138
    %v178 = vunpack.c.l.b16 %v139
    %v179 = vunpack.c.l.b16 %v140
    %v180 = vunpack.c.l.b16 %v141
    %v181 = vunpack.c.l.b16 %v142
    %v182 = vunpack.c.l.b16 %v143
    %v183 = vunpack.c.l.b16 %v144
    %v184 = vunpack.c.l.b16 %v145
    %v185 = vunpack.c.l.b16 %v146
    %v186 = vunpack.c.l.b16 %v147
    %v187 = vunpack.c.l.b16 %v148
    %v188 = vunpack.c.l.b16 %v149
    %v189 = vunpack.c.l.b16 %v150
    %v190 = vunpack.c.l.b16 %v151
    %v191 = vunpack.c.l.b16 %v152
    %v192 = vpack.c.b16 %v177, %v176
    %v193 = vpack.c.b16 %v179, %v178
    %v194 = vpack.c.b16 %v181, %v180
    %v195 = vpack.c.b16 %v183, %v182
    %v196 = vpack.c.b16 %v185, %v184
    %v197 = vpack.c.b16 %v187, %v186
    %v198 = vpack.c.b16 %v189, %v188
    %v199 = vpack.c.b16 %v191, %v190
    %208 = vmatprep.subr.bf16.mxu0 0
    %209 = vmatpush1.bf16.msra.mxu0 %v192
    %210 = vmatprep.subr.bf16.mxu0 0
    %211 = vmatpush1.bf16.msra.mxu0 %v193
    %212 = vmatprep.subr.bf16.mxu0 0
    %213 = vmatpush1.bf16.msra.mxu0 %v194
    %214 = vmatprep.subr.bf16.mxu0 0
    %215 = vmatpush1.bf16.msra.mxu0 %v195
    %216 = vmatprep.subr.bf16.mxu0 0
    %217 = vmatpush1.bf16.msra.mxu0 %v196
    %218 = vmatprep.subr.bf16.mxu0 0
    %219 = vmatpush1.bf16.msra.mxu0 %v197
    %220 = vmatprep.subr.bf16.mxu0 0
    %221 = vmatpush1.bf16.msra.mxu0 %v198
    %222 = vmatprep.subr.bf16.mxu0 0
    %223 = vmatpush1.bf16.msra.mxu0 %v199
    %224 = vmatprep.subr.bf16.mxu0 0
    %225 = vmatpush1.bf16.msra.mxu0 0
    %226 = vmatprep.subr.bf16.mxu0 0
    %227 = vmatpush1.bf16.msra.mxu0 0
    %228 = vmatprep.subr.bf16.mxu0 0
    %229 = vmatpush1.bf16.msra.mxu0 0
    %230 = vmatprep.subr.bf16.mxu0 0
    %231 = vmatpush1.bf16.msra.mxu0 0
    %232 = vmatprep.subr.bf16.mxu0 0
    %233 = vmatpush1.bf16.msra.mxu0 0
    %234 = vmatprep.subr.bf16.mxu0 0
    %235 = vmatpush1.bf16.msra.mxu0 0
    %236 = vmatprep.subr.bf16.mxu0 0
    %237 = vmatpush1.bf16.msra.mxu0 0
    %238 = vmatprep.subr.bf16.mxu0 0
    %239 = vmatpush1.bf16.msra.mxu0 0
    %240 = vmatprep.mubr.bf16.mxu0 0
    %241 = vmatmul.mubr.bf16.gmra.mrb[0].mxu0 %v136
    %v242 = vpop.f32.mrb[0].mxu0
    %v243 = vadd.f32 %v158, %v242
    %v244 = vpop.f32.mrb[0].mxu0
    %v245 = vpop.f32.mrb[0].mxu0
    %v246 = vpop.f32.mrb[0].mxu0
    %247 = vdwg.mxu0
    %vm248 = vcmask 25600
    %249 = vst.msk [vmem:[#allocation2] sm:$0x3] %vm248, %v243
    // Predicated region
    $region22: #{bert_classifier_forward.7} parent=1 // pred_check
      _
    $region23: #{bert_classifier_forward.7} parent=1 // pred_check_branch
      %251 = sbr.rel (0) target = $region25
    $region24: #{bert_classifier_forward.7} parent=1 // pred_region
      %s253 = ssub.s32 32, 32
      %254 = vsyncadd [#allocation3], %s253
      %s256 = sshll.u32 [#allocation2], 4
      %s257 = int_to_ptr.vmem [resolvable:$true] %s256
      %259 = dma.vmem_to_hbm [thread:$0]  %s257, 32, %s5, [#allocation3]
    $region25: #{bert_classifier_forward.7} parent=1 // pred_fallthru
      _
    // Predicated region
    $region26: #{bert_classifier_forward.7} parent=1 // pred_check
      _
    $region27: #{bert_classifier_forward.7} parent=1 // pred_check_branch
      %261 = sbr.rel (0) target = $region29
    $region28: #{bert_classifier_forward.7} parent=1 // pred_region
      %262 = dma.done [#allocation3], 32
    $region29: #{bert_classifier_forward.7} parent=1 // pred_fallthru
      _
    %263 = vsyncpa [#allocation3], 1

// kernel: bert_classifier_forward.6
$region0: #{bert_classifier_forward.6}
  #allocation0 [shape = 'u32[]', space=smem, size = 0x4, offset = 0x4, fixed_abs, tag = 'smem constant byte address 0x4 - core index']
  #allocation1 [shape = 'u32[144,128]{1,0:T(1,128)}', space=vmem, size = 0x12000, scoped, tag = 'internal scratch']
  %s0 = inlined_call_operand.vmem [shape: f32[16,128], index: 0, kind: input, shape index: {}]
  %s1 = inlined_call_operand.vmem [shape: f32[2,8], index: 1, kind: input, shape index: {}]
  %s2 = inlined_call_operand.vmem [shape: bf16[128,384], index: 2, kind: input, shape index: {}]
  %s3 = inlined_call_operand.vmem [shape: f32[1,384], index: 3, kind: input, shape index: {}]
  %s4 = inlined_call_operand.vmem [shape: bf16[128,128], index: 4, kind: input, shape index: {}]
  %s5 = inlined_call_operand.vmem [shape: f32[1,128], index: 5, kind: input, shape index: {}]
  %s6 = inlined_call_operand.vmem [shape: f32[1,128], index: 6, kind: input, shape index: {}]
  %s7 = inlined_call_operand.vmem [shape: f32[1,128], index: 7, kind: input, shape index: {}]
  %s8 = inlined_call_operand.vmem [shape: bf16[128,256], index: 8, kind: input, shape index: {}]
  %s9 = inlined_call_operand.vmem [shape: f32[1,256], index: 9, kind: input, shape index: {}]
  %s10 = inlined_call_operand.vmem [shape: bf16[256,128], index: 10, kind: input, shape index: {}]
  %s11 = inlined_call_operand.vmem [shape: f32[1,128], index: 11, kind: input, shape index: {}]
  %s12 = inlined_call_operand.vmem [shape: f32[1,128], index: 12, kind: input, shape index: {}]
  %s13 = inlined_call_operand.vmem [shape: f32[1,128], index: 13, kind: input, shape index: {}]
  %s14 = inlined_call_operand.vmem [shape: f32[16,128], index: 14, kind: output, shape index: {}]
  %s15 = sld [smem:[#allocation0]]
  $region66: #{bert_classifier_forward.6} parent=0
    _
  %s17 = ssub.s32 1, %s15
  %s18 = scalar_select 0, %s17, %s15
  // Predicated region
  $region2: #{bert_classifier_forward.6} parent=0 // pred_check
    _
  $region3: #{bert_classifier_forward.6} parent=0 // pred_check_branch
    %20 = sbr.rel (0) target = $region5
  $region4: #{bert_classifier_forward.6} parent=0 // pred_region
    _
  $region5: #{bert_classifier_forward.6} parent=0 // pred_fallthru
    _
  // Predicated region
  $region6: #{bert_classifier_forward.6} parent=0 // pred_check
    _
  $region7: #{bert_classifier_forward.6} parent=0 // pred_check_branch
    %22 = sbr.rel (0) target = $region9
  $region8: #{bert_classifier_forward.6} parent=0 // pred_region
    _
  $region9: #{bert_classifier_forward.6} parent=0 // pred_fallthru
    _
  // Predicated region
  $region10: #{bert_classifier_forward.6} parent=0 // pred_check
    _
  $region11: #{bert_classifier_forward.6} parent=0 // pred_check_branch
    %24 = sbr.rel (0) target = $region13
  $region12: #{bert_classifier_forward.6} parent=0 // pred_region
    _
  $region13: #{bert_classifier_forward.6} parent=0 // pred_fallthru
    _
  // Predicated region
  $region14: #{bert_classifier_forward.6} parent=0 // pred_check
    _
  $region15: #{bert_classifier_forward.6} parent=0 // pred_check_branch
    %26 = sbr.rel (0) target = $region17
  $region16: #{bert_classifier_forward.6} parent=0 // pred_region
    _
  $region17: #{bert_classifier_forward.6} parent=0 // pred_fallthru
    _
  // Predicated region
  $region18: #{bert_classifier_forward.6} parent=0 // pred_check
    _
  $region19: #{bert_classifier_forward.6} parent=0 // pred_check_branch
    %28 = sbr.rel (0) target = $region21
  $region20: #{bert_classifier_forward.6} parent=0 // pred_region
    _
  $region21: #{bert_classifier_forward.6} parent=0 // pred_fallthru
    _
  // Predicated region
  $region22: #{bert_classifier_forward.6} parent=0 // pred_check
    _
  $region23: #{bert_classifier_forward.6} parent=0 // pred_check_branch
    %30 = sbr.rel (0) target = $region25
  $region24: #{bert_classifier_forward.6} parent=0 // pred_region
    _
  $region25: #{bert_classifier_forward.6} parent=0 // pred_fallthru
    _
  // Predicated region
  $region26: #{bert_classifier_forward.6} parent=0 // pred_check
    _
  $region27: #{bert_classifier_forward.6} parent=0 // pred_check_branch
    %32 = sbr.rel (0) target = $region29
  $region28: #{bert_classifier_forward.6} parent=0 // pred_region
    _
  $region29: #{bert_classifier_forward.6} parent=0 // pred_fallthru
    _
  // Predicated region
  $region30: #{bert_classifier_forward.6} parent=0 // pred_check
    _
  $region31: #{bert_classifier_forward.6} parent=0 // pred_check_branch
    %34 = sbr.rel (0) target = $region33
  $region32: #{bert_classifier_forward.6} parent=0 // pred_region
    _
  $region33: #{bert_classifier_forward.6} parent=0 // pred_fallthru
    _
  // Predicated region
  $region34: #{bert_classifier_forward.6} parent=0 // pred_check
    _
  $region35: #{bert_classifier_forward.6} parent=0 // pred_check_branch
    %36 = sbr.rel (0) target = $region37
  $region36: #{bert_classifier_forward.6} parent=0 // pred_region
    _
  $region37: #{bert_classifier_forward.6} parent=0 // pred_fallthru
    _
  // Predicated region
  $region38: #{bert_classifier_forward.6} parent=0 // pred_check
    _
  $region39: #{bert_classifier_forward.6} parent=0 // pred_check_branch
    %38 = sbr.rel (0) target = $region41
  $region40: #{bert_classifier_forward.6} parent=0 // pred_region
    _
  $region41: #{bert_classifier_forward.6} parent=0 // pred_fallthru
    _
  // Predicated region
  $region42: #{bert_classifier_forward.6} parent=0 // pred_check
    _
  $region43: #{bert_classifier_forward.6} parent=0 // pred_check_branch
    %40 = sbr.rel (0) target = $region45
  $region44: #{bert_classifier_forward.6} parent=0 // pred_region
    _
  $region45: #{bert_classifier_forward.6} parent=0 // pred_fallthru
    _
  // Predicated region
  $region46: #{bert_classifier_forward.6} parent=0 // pred_check
    _
  $region47: #{bert_classifier_forward.6} parent=0 // pred_check_branch
    %42 = sbr.rel (0) target = $region49
  $region48: #{bert_classifier_forward.6} parent=0 // pred_region
    _
  $region49: #{bert_classifier_forward.6} parent=0 // pred_fallthru
    _
  // Predicated region
  $region50: #{bert_classifier_forward.6} parent=0 // pred_check
    _
  $region51: #{bert_classifier_forward.6} parent=0 // pred_check_branch
    %44 = sbr.rel (0) target = $region53
  $region52: #{bert_classifier_forward.6} parent=0 // pred_region
    _
  $region53: #{bert_classifier_forward.6} parent=0 // pred_fallthru
    _
  // Predicated region
  $region54: #{bert_classifier_forward.6} parent=0 // pred_check
    _
  $region55: #{bert_classifier_forward.6} parent=0 // pred_check_branch
    %46 = sbr.rel (0) target = $region57
  $region56: #{bert_classifier_forward.6} parent=0 // pred_region
    _
  $region57: #{bert_classifier_forward.6} parent=0 // pred_fallthru
    _
  %v48 = vld [vmem:[%s0] sm:$0xff]
  %v49 = vld [vmem:[%s0 + $0x8] sm:$0xff]
  %v50 = vpack.c.bf16 %v49, %v48
  %v51 = vld [vmem:[%s2] sm:$0xff]
  %v52 = vld [vmem:[%s2 + $0x8] sm:$0xf]
  %v53 = vld [vmem:[%s2 + $0xc] sm:$0xff]
  %v54 = vld [vmem:[%s2 + $0x14] sm:$0xf]
  %v55 = vld [vmem:[%s2 + $0x18] sm:$0xff]
  %v56 = vld [vmem:[%s2 + $0x20] sm:$0xf]
  %v57 = vld [vmem:[%s2 + $0x24] sm:$0xff]
  %v58 = vld [vmem:[%s2 + $0x2c] sm:$0xf]
  %v59 = vld [vmem:[%s2 + $0x30] sm:$0xff]
  %v60 = vld [vmem:[%s2 + $0x38] sm:$0xf]
  %v61 = vld [vmem:[%s2 + $0x3c] sm:$0xff]
  %v62 = vld [vmem:[%s2 + $0x44] sm:$0xf]
  %v63 = vld [vmem:[%s2 + $0x48] sm:$0xff]
  %v64 = vld [vmem:[%s2 + $0x50] sm:$0xf]
  %v65 = vld [vmem:[%s2 + $0x54] sm:$0xff]
  %v66 = vld [vmem:[%s2 + $0x5c] sm:$0xf]
  %v67 = vld [vmem:[%s2 + $0x60] sm:$0xff]
  %v68 = vld [vmem:[%s2 + $0x68] sm:$0xf]
  %v69 = vld [vmem:[%s2 + $0x6c] sm:$0xff]
  %v70 = vld [vmem:[%s2 + $0x74] sm:$0xf]
  %v71 = vld [vmem:[%s2 + $0x78] sm:$0xff]
  %v72 = vld [vmem:[%s2 + $0x80] sm:$0xf]
  %v73 = vld [vmem:[%s2 + $0x84] sm:$0xff]
  %v74 = vld [vmem:[%s2 + $0x8c] sm:$0xf]
  %v75 = vld [vmem:[%s2 + $0x90] sm:$0xff]
  %v76 = vld [vmem:[%s2 + $0x98] sm:$0xf]
  %v77 = vld [vmem:[%s2 + $0x9c] sm:$0xff]
  %v78 = vld [vmem:[%s2 + $0xa4] sm:$0xf]
  %v79 = vld [vmem:[%s2 + $0xa8] sm:$0xff]
  %v80 = vld [vmem:[%s2 + $0xb0] sm:$0xf]
  %v81 = vld [vmem:[%s2 + $0xb4] sm:$0xff]
  %v82 = vld [vmem:[%s2 + $0xbc] sm:$0xf]
  %v83 = vld [vmem:[%s3] sm:$0x7]
  %v85 = vlaneseq
  %v86 = vshrl.u32 %v85, 7
  %v87 = vsub.s32 0, %v86
  %v88 = vrot.slane %v83, %v87
  %v89 = vlaneseq
  %v90 = vshrl.u32 %v89, 7
  %v91 = vsub.s32 1, %v90
  %v92 = vrot.slane %v83, %v91
  %v93 = vlaneseq
  %v94 = vshrl.u32 %v93, 7
  %v95 = vsub.s32 2, %v94
  %v96 = vrot.slane %v83, %v95
  %v132 = vunpack.c.l.b16 %v51
  %v133 = vunpack.c.h.b16 %v51
  %v134 = vunpack.c.l.b16 %v52
  %v135 = vunpack.c.l.b16 %v53
  %v136 = vunpack.c.h.b16 %v53
  %v137 = vunpack.c.l.b16 %v54
  %v138 = vunpack.c.l.b16 %v55
  %v139 = vunpack.c.h.b16 %v55
  %v140 = vunpack.c.l.b16 %v56
  %v141 = vunpack.c.l.b16 %v57
  %v142 = vunpack.c.h.b16 %v57
  %v143 = vunpack.c.l.b16 %v58
  %v144 = vunpack.c.l.b16 %v59
  %v145 = vunpack.c.h.b16 %v59
  %v146 = vunpack.c.l.b16 %v60
  %v147 = vunpack.c.l.b16 %v61
  %v148 = vunpack.c.h.b16 %v61
  %v149 = vunpack.c.l.b16 %v62
  %v150 = vunpack.c.l.b16 %v63
  %v151 = vunpack.c.h.b16 %v63
  %v152 = vunpack.c.l.b16 %v64
  %v153 = vunpack.c.l.b16 %v65
  %v154 = vunpack.c.h.b16 %v65
  %v155 = vunpack.c.l.b16 %v66
  %v156 = vunpack.c.l.b16 %v67
  %v157 = vunpack.c.h.b16 %v67
  %v158 = vunpack.c.l.b16 %v68
  %v159 = vunpack.c.l.b16 %v69
  %v160 = vunpack.c.h.b16 %v69
  %v161 = vunpack.c.l.b16 %v70
  %v162 = vunpack.c.l.b16 %v71
  %v163 = vunpack.c.h.b16 %v71
  %v164 = vunpack.c.l.b16 %v72
  %v165 = vunpack.c.l.b16 %v73
  %v166 = vunpack.c.h.b16 %v73
  %v167 = vunpack.c.l.b16 %v74
  %v168 = vunpack.c.l.b16 %v75
  %v169 = vunpack.c.h.b16 %v75
  %v170 = vunpack.c.l.b16 %v76
  %v171 = vunpack.c.l.b16 %v77
  %v172 = vunpack.c.h.b16 %v77
  %v173 = vunpack.c.l.b16 %v78
  %v174 = vunpack.c.l.b16 %v79
  %v175 = vunpack.c.h.b16 %v79
  %v176 = vunpack.c.l.b16 %v80
  %v177 = vunpack.c.l.b16 %v81
  %v178 = vunpack.c.h.b16 %v81
  %v179 = vunpack.c.l.b16 %v82
  %v180 = vpack.c.b16 %v135, %v132
  %v181 = vpack.c.b16 %v136, %v133
  %v182 = vpack.c.b16 %v137, %v134
  %v183 = vpack.c.b16 %v141, %v138
  %v184 = vpack.c.b16 %v142, %v139
  %v185 = vpack.c.b16 %v143, %v140
  %v186 = vpack.c.b16 %v147, %v144
  %v187 = vpack.c.b16 %v148, %v145
  %v188 = vpack.c.b16 %v149, %v146
  %v189 = vpack.c.b16 %v153, %v150
  %v190 = vpack.c.b16 %v154, %v151
  %v191 = vpack.c.b16 %v155, %v152
  %v192 = vpack.c.b16 %v159, %v156
  %v193 = vpack.c.b16 %v160, %v157
  %v194 = vpack.c.b16 %v161, %v158
  %v195 = vpack.c.b16 %v165, %v162
  %v196 = vpack.c.b16 %v166, %v163
  %v197 = vpack.c.b16 %v167, %v164
  %v198 = vpack.c.b16 %v171, %v168
  %v199 = vpack.c.b16 %v172, %v169
  %v200 = vpack.c.b16 %v173, %v170
  %v201 = vpack.c.b16 %v177, %v174
  %v202 = vpack.c.b16 %v178, %v175
  %v203 = vpack.c.b16 %v179, %v176
  %228 = vmatprep.subr.bf16.mxu0 %v181
  %229 = vmatpush1.bf16.msra.mxu0 %v180
  %230 = vmatprep.subr.bf16.mxu0 %v184
  %231 = vmatpush1.bf16.msra.mxu0 %v183
  %232 = vmatprep.subr.bf16.mxu0 %v187
  %233 = vmatpush1.bf16.msra.mxu0 %v186
  %234 = vmatprep.subr.bf16.mxu0 %v190
  %235 = vmatpush1.bf16.msra.mxu0 %v189
  %236 = vmatprep.subr.bf16.mxu0 %v193
  %237 = vmatpush1.bf16.msra.mxu0 %v192
  %238 = vmatprep.subr.bf16.mxu0 %v196
  %239 = vmatpush1.bf16.msra.mxu0 %v195
  %240 = vmatprep.subr.bf16.mxu0 %v199
  %241 = vmatpush1.bf16.msra.mxu0 %v198
  %242 = vmatprep.subr.bf16.mxu0 %v202
  %243 = vmatpush1.bf16.msra.mxu0 %v201
  %244 = vmatprep.subr.bf16.mxu0 0
  %245 = vmatpush1.bf16.msra.mxu0 0
  %246 = vmatprep.subr.bf16.mxu0 0
  %247 = vmatpush1.bf16.msra.mxu0 0
  %248 = vmatprep.subr.bf16.mxu0 0
  %249 = vmatpush1.bf16.msra.mxu0 0
  %250 = vmatprep.subr.bf16.mxu0 0
  %251 = vmatpush1.bf16.msra.mxu0 0
  %252 = vmatprep.subr.bf16.mxu0 0
  %253 = vmatpush1.bf16.msra.mxu0 0
  %254 = vmatprep.subr.bf16.mxu0 0
  %255 = vmatpush1.bf16.msra.mxu0 0
  %256 = vmatprep.subr.bf16.mxu0 0
  %257 = vmatpush1.bf16.msra.mxu0 0
  %258 = vmatprep.subr.bf16.mxu0 0
  %259 = vmatpush1.bf16.msra.mxu0 0
  %260 = vmatprep.mubr.bf16.mxu0 0
  %261 = vmatmul.mubr.bf16.gmra.mrb[0].mxu0 %v50
  %v262 = vpop.f32.mrb[0].mxu0
  %v263 = vadd.f32 %v88, %v262
  %v264 = vpop.f32.mrb[0].mxu0
  %v265 = vadd.f32 %v92, %v264
  %v266 = vpop.f32.mrb[0].mxu0
  %v267 = vadd.f32 %v88, %v266
  %v268 = vpop.f32.mrb[0].mxu0
  %v269 = vadd.f32 %v92, %v268
  %270 = vdwg.mxu0
  %271 = vmatprep.subr.bf16.mxu0 0
  %272 = vmatpush1.bf16.msra.mxu0 %v182
  %273 = vmatprep.subr.bf16.mxu0 0
  %274 = vmatpush1.bf16.msra.mxu0 %v185
  %275 = vmatprep.subr.bf16.mxu0 0
  %276 = vmatpush1.bf16.msra.mxu0 %v188
  %277 = vmatprep.subr.bf16.mxu0 0
  %278 = vmatpush1.bf16.msra.mxu0 %v191
  %279 = vmatprep.subr.bf16.mxu0 0
  %280 = vmatpush1.bf16.msra.mxu0 %v194
  %281 = vmatprep.subr.bf16.mxu0 0
  %282 = vmatpush1.bf16.msra.mxu0 %v197
  %283 = vmatprep.subr.bf16.mxu0 0
  %284 = vmatpush1.bf16.msra.mxu0 %v200
  %285 = vmatprep.subr.bf16.mxu0 0
  %286 = vmatpush1.bf16.msra.mxu0 %v203
  %287 = vmatprep.subr.bf16.mxu0 0
  %288 = vmatpush1.bf16.msra.mxu0 0
  %289 = vmatprep.subr.bf16.mxu0 0
  %290 = vmatpush1.bf16.msra.mxu0 0
  %291 = vmatprep.subr.bf16.mxu0 0
  %292 = vmatpush1.bf16.msra.mxu0 0
  %293 = vmatprep.subr.bf16.mxu0 0
  %294 = vmatpush1.bf16.msra.mxu0 0
  %295 = vmatprep.subr.bf16.mxu0 0
  %296 = vmatpush1.bf16.msra.mxu0 0
  %297 = vmatprep.subr.bf16.mxu0 0
  %298 = vmatpush1.bf16.msra.mxu0 0
  %299 = vmatprep.subr.bf16.mxu0 0
  %300 = vmatpush1.bf16.msra.mxu0 0
  %301 = vmatprep.subr.bf16.mxu0 0
  %302 = vmatpush1.bf16.msra.mxu0 0
  %303 = vmatprep.mubr.bf16.mxu0 0
  %304 = vmatmul.mubr.bf16.gmra.mrb[0].mxu0 %v50
  %v305 = vpop.f32.mrb[0].mxu0
  %v306 = vadd.f32 %v96, %v305
  %v307 = vpop.f32.mrb[0].mxu0
  %v308 = vpop.f32.mrb[0].mxu0
  %v309 = vadd.f32 %v96, %v308
  %v310 = vpop.f32.mrb[0].mxu0
  %311 = vdwg.mxu0
  %v312 = vld [vmem:[%s1] sm:$0x3]
  %v313 = vpack.c.bf16 %v263, %v263
  %v314 = vpack.c.bf16 %v265, %v265
  %v315 = vpack.c.bf16 %v306, %v306
  %vm316 = vcmask 523264
  %v318 = vsel %vm316, %v313, 0
  %v321 = vsel %vm316, %v314, 0
  %323 = vmatprep.subr.bf16.mxu0 0
  %324 = vmatpush1.bf16.xpose.msra.mxu0 %v321
  %325 = vmatprep.subr.bf16.mxu0 0
  %326 = vmatpush1.bf16.xpose.msra.mxu0 0
  %327 = vmatprep.subr.bf16.mxu0 0
  %328 = vmatpush1.bf16.xpose.msra.mxu0 0
  %329 = vmatprep.subr.bf16.mxu0 0
  %330 = vmatpush1.bf16.xpose.msra.mxu0 0
  %331 = vmatprep.subr.bf16.mxu0 0
  %332 = vmatpush1.bf16.xpose.msra.mxu0 0
  %333 = vmatprep.subr.bf16.mxu0 0
  %334 = vmatpush1.bf16.xpose.msra.mxu0 0
  %335 = vmatprep.subr.bf16.mxu0 0
  %336 = vmatpush1.bf16.xpose.msra.mxu0 0
  %337 = vmatprep.subr.bf16.mxu0 0
  %338 = vmatpush1.bf16.xpose.msra.mxu0 0
  %339 = vmatprep.subr.bf16.mxu0 0
  %340 = vmatpush1.bf16.xpose.msra.mxu0 0
  %341 = vmatprep.subr.bf16.mxu0 0
  %342 = vmatpush1.bf16.xpose.msra.mxu0 0
  %343 = vmatprep.subr.bf16.mxu0 0
  %344 = vmatpush1.bf16.xpose.msra.mxu0 0
  %345 = vmatprep.subr.bf16.mxu0 0
  %346 = vmatpush1.bf16.xpose.msra.mxu0 0
  %347 = vmatprep.subr.bf16.mxu0 0
  %348 = vmatpush1.bf16.xpose.msra.mxu0 0
  %349 = vmatprep.subr.bf16.mxu0 0
  %350 = vmatpush1.bf16.xpose.msra.mxu0 0
  %351 = vmatprep.subr.bf16.mxu0 0
  %352 = vmatpush1.bf16.xpose.msra.mxu0 0
  %353 = vmatprep.subr.bf16.mxu0 0
  %354 = vmatpush1.bf16.xpose.msra.mxu0 0
  %355 = vmatprep.mubr.bf16.mxu0 0
  %356 = vmatmul.mubr.bf16.gmra.mrb[0].mxu0 %v318
  %v357 = vpop.f32.mrb[0].mxu0
  %v358 = vadd.f32 0.0, %v357
  %v359 = vpop.f32.mrb[0].mxu0
  %v360 = vpop.f32.mrb[0].mxu0
  %v361 = vpop.f32.mrb[0].mxu0
  %362 = vdwg.mxu0
  %v363 = vmul.f32 %v358, 0.125
  %v364 = vlaneseq
  %v365 = vshrl.u32 %v364, 7
  %v366 = vsub.s32 0, %v365
  %v367 = vrot.slane %v312, %v366
  %v368 = vadd.f32 %v363, %v367
  %vm369 = vcmask 64512
  %v370 = vsel %vm369, %v368, -inf
  %371 = vmax.xlane.f32.xlu0 %v370
  %v372 = vpop.xlane.xlu0 %371
  %v373 = vsub.f32 %v368, %v372
  %v374 = vmul.f32 %v373, 1.442695
  %v375 = vpow.pop %v374
  %v376 = vsel %vm369, %v375, 0.0
  %377 = vadd.xlane.f32.xlu0 %v376
  %v378 = vpop.xlane.xlu0 %377
  %v379 = vrcp.pop %v378
  %v380 = vmul.f32 %v375, %v379
  %v381 = vpack.c.bf16 %v380, %v380
  %v383 = vsel %vm369, %v381, 0
  %vm385 = vcmask 1043456
  %v387 = vsel %vm385, %v315, 0
  %389 = vmatprep.subr.bf16.mxu0 0
  %390 = vmatpush1.bf16.msra.mxu0 %v387
  %391 = vmatprep.subr.bf16.mxu0 0
  %392 = vmatpush1.bf16.msra.mxu0 0
  %393 = vmatprep.subr.bf16.mxu0 0
  %394 = vmatpush1.bf16.msra.mxu0 0
  %395 = vmatprep.subr.bf16.mxu0 0
  %396 = vmatpush1.bf16.msra.mxu0 0
  %397 = vmatprep.subr.bf16.mxu0 0
  %398 = vmatpush1.bf16.msra.mxu0 0
  %399 = vmatprep.subr.bf16.mxu0 0
  %400 = vmatpush1.bf16.msra.mxu0 0
  %401 = vmatprep.subr.bf16.mxu0 0
  %402 = vmatpush1.bf16.msra.mxu0 0
  %403 = vmatprep.subr.bf16.mxu0 0
  %404 = vmatpush1.bf16.msra.mxu0 0
  %405 = vmatprep.subr.bf16.mxu0 0
  %406 = vmatpush1.bf16.msra.mxu0 0
  %407 = vmatprep.subr.bf16.mxu0 0
  %408 = vmatpush1.bf16.msra.mxu0 0
  %409 = vmatprep.subr.bf16.mxu0 0
  %410 = vmatpush1.bf16.msra.mxu0 0
  %411 = vmatprep.subr.bf16.mxu0 0
  %412 = vmatpush1.bf16.msra.mxu0 0
  %413 = vmatprep.subr.bf16.mxu0 0
  %414 = vmatpush1.bf16.msra.mxu0 0
  %415 = vmatprep.subr.bf16.mxu0 0
  %416 = vmatpush1.bf16.msra.mxu0 0
  %417 = vmatprep.subr.bf16.mxu0 0
  %418 = vmatpush1.bf16.msra.mxu0 0
  %419 = vmatprep.subr.bf16.mxu0 0
  %420 = vmatpush1.bf16.msra.mxu0 0
  %421 = vmatprep.mubr.bf16.mxu0 0
  %422 = vmatmul.mubr.bf16.gmra.mrb[0].mxu0 %v383
  %v423 = vpop.f32.mrb[0].mxu0
  %v424 = vadd.f32 0.0, %v423
  %v425 = vpop.f32.mrb[0].mxu0
  %v426 = vpop.f32.mrb[0].mxu0
  %v427 = vpop.f32.mrb[0].mxu0
  %428 = vdwg.mxu0
  %430 = vrot.lane.b32.xlu0 %v313, 64
  %v431 = vpop.permute.xlu0 %430
  %433 = vrot.lane.b32.xlu0 %v314, 64
  %v434 = vpop.permute.xlu0 %433
  %v436 = vsel %vm316, %v431, 0
  %v439 = vsel %vm316, %v434, 0
  %441 = vmatprep.subr.bf16.mxu0 0
  %442 = vmatpush1.bf16.xpose.msra.mxu0 %v439
  %443 = vmatprep.subr.bf16.mxu0 0
  %444 = vmatpush1.bf16.xpose.msra.mxu0 0
  %445 = vmatprep.subr.bf16.mxu0 0
  %446 = vmatpush1.bf16.xpose.msra.mxu0 0
  %447 = vmatprep.subr.bf16.mxu0 0
  %448 = vmatpush1.bf16.xpose.msra.mxu0 0
  %449 = vmatprep.subr.bf16.mxu0 0
  %450 = vmatpush1.bf16.xpose.msra.mxu0 0
  %451 = vmatprep.subr.bf16.mxu0 0
  %452 = vmatpush1.bf16.xpose.msra.mxu0 0
  %453 = vmatprep.subr.bf16.mxu0 0
  %454 = vmatpush1.bf16.xpose.msra.mxu0 0
  %455 = vmatprep.subr.bf16.mxu0 0
  %456 = vmatpush1.bf16.xpose.msra.mxu0 0
  %457 = vmatprep.subr.bf16.mxu0 0
  %458 = vmatpush1.bf16.xpose.msra.mxu0 0
  %459 = vmatprep.subr.bf16.mxu0 0
  %460 = vmatpush1.bf16.xpose.msra.mxu0 0
  %461 = vmatprep.subr.bf16.mxu0 0
  %462 = vmatpush1.bf16.xpose.msra.mxu0 0
  %463 = vmatprep.subr.bf16.mxu0 0
  %464 = vmatpush1.bf16.xpose.msra.mxu0 0
  %465 = vmatprep.subr.bf16.mxu0 0
  %466 = vmatpush1.bf16.xpose.msra.mxu0 0
  %467 = vmatprep.subr.bf16.mxu0 0
  %468 = vmatpush1.bf16.xpose.msra.mxu0 0
  %469 = vmatprep.subr.bf16.mxu0 0
  %470 = vmatpush1.bf16.xpose.msra.mxu0 0
  %471 = vmatprep.subr.bf16.mxu0 0
  %472 = vmatpush1.bf16.xpose.msra.mxu0 0
  %473 = vmatprep.mubr.bf16.mxu0 0
  %474 = vmatmul.mubr.bf16.gmra.mrb[0].mxu0 %v436
  %v475 = vpop.f32.mrb[0].mxu0
  %v476 = vadd.f32 0.0, %v475
  %v477 = vpop.f32.mrb[0].mxu0
  %v478 = vpop.f32.mrb[0].mxu0
  %v479 = vpop.f32.mrb[0].mxu0
  %480 = vdwg.mxu0
  %v481 = vmul.f32 %v476, 0.125
  %v482 = vadd.f32 %v481, %v367
  %v483 = vsel %vm369, %v482, -inf
  %484 = vmax.xlane.f32.xlu0 %v483
  %v485 = vpop.xlane.xlu0 %484
  %v486 = vsub.f32 %v482, %v485
  %v487 = vmul.f32 %v486, 1.442695
  %v488 = vpow.pop %v487
  %v489 = vsel %vm369, %v488, 0.0
  %490 = vadd.xlane.f32.xlu0 %v489
  %v491 = vpop.xlane.xlu0 %490
  %v492 = vrcp.pop %v491
  %v493 = vmul.f32 %v488, %v492
  %v494 = vpack.c.bf16 %v493, %v493
  %496 = vrot.lane.b32.xlu0 %v315, 64
  %v497 = vpop.permute.xlu0 %496
  %v499 = vsel %vm369, %v494, 0
  %v502 = vsel %vm385, %v497, 0
  %504 = vmatprep.subr.bf16.mxu0 0
  %505 = vmatpush1.bf16.msra.mxu0 %v502
  %506 = vmatprep.subr.bf16.mxu0 0
  %507 = vmatpush1.bf16.msra.mxu0 0
  %508 = vmatprep.subr.bf16.mxu0 0
  %509 = vmatpush1.bf16.msra.mxu0 0
  %510 = vmatprep.subr.bf16.mxu0 0
  %511 = vmatpush1.bf16.msra.mxu0 0
  %512 = vmatprep.subr.bf16.mxu0 0
  %513 = vmatpush1.bf16.msra.mxu0 0
  %514 = vmatprep.subr.bf16.mxu0 0
  %515 = vmatpush1.bf16.msra.mxu0 0
  %516 = vmatprep.subr.bf16.mxu0 0
  %517 = vmatpush1.bf16.msra.mxu0 0
  %518 = vmatprep.subr.bf16.mxu0 0
  %519 = vmatpush1.bf16.msra.mxu0 0
  %520 = vmatprep.subr.bf16.mxu0 0
  %521 = vmatpush1.bf16.msra.mxu0 0
  %522 = vmatprep.subr.bf16.mxu0 0
  %523 = vmatpush1.bf16.msra.mxu0 0
  %524 = vmatprep.subr.bf16.mxu0 0
  %525 = vmatpush1.bf16.msra.mxu0 0
  %526 = vmatprep.subr.bf16.mxu0 0
  %527 = vmatpush1.bf16.msra.mxu0 0
  %528 = vmatprep.subr.bf16.mxu0 0
  %529 = vmatpush1.bf16.msra.mxu0 0
  %530 = vmatprep.subr.bf16.mxu0 0
  %531 = vmatpush1.bf16.msra.mxu0 0
  %532 = vmatprep.subr.bf16.mxu0 0
  %533 = vmatpush1.bf16.msra.mxu0 0
  %534 = vmatprep.subr.bf16.mxu0 0
  %535 = vmatpush1.bf16.msra.mxu0 0
  %536 = vmatprep.mubr.bf16.mxu0 0
  %537 = vmatmul.mubr.bf16.gmra.mrb[0].mxu0 %v499
  %v538 = vpop.f32.mrb[0].mxu0
  %v539 = vadd.f32 0.0, %v538
  %v540 = vpop.f32.mrb[0].mxu0
  %v541 = vpop.f32.mrb[0].mxu0
  %v542 = vpop.f32.mrb[0].mxu0
  %543 = vdwg.mxu0
  %545 = vrot.lane.b32.xlu0 %v539, 64
  %v546 = vpop.permute.xlu0 %545
  %v548 = vsel %vm316, %v424, %v546
  %v549 = vpack.c.bf16 %v267, %v267
  %v550 = vpack.c.bf16 %v269, %v269
  %v551 = vpack.c.bf16 %v309, %v309
  %v553 = vsel %vm316, %v549, 0
  %v556 = vsel %vm316, %v550, 0
  %558 = vmatprep.subr.bf16.mxu0 0
  %559 = vmatpush1.bf16.xpose.msra.mxu0 %v556
  %560 = vmatprep.subr.bf16.mxu0 0
  %561 = vmatpush1.bf16.xpose.msra.mxu0 0
  %562 = vmatprep.subr.bf16.mxu0 0
  %563 = vmatpush1.bf16.xpose.msra.mxu0 0
  %564 = vmatprep.subr.bf16.mxu0 0
  %565 = vmatpush1.bf16.xpose.msra.mxu0 0
  %566 = vmatprep.subr.bf16.mxu0 0
  %567 = vmatpush1.bf16.xpose.msra.mxu0 0
  %568 = vmatprep.subr.bf16.mxu0 0
  %569 = vmatpush1.bf16.xpose.msra.mxu0 0
  %570 = vmatprep.subr.bf16.mxu0 0
  %571 = vmatpush1.bf16.xpose.msra.mxu0 0
  %572 = vmatprep.subr.bf16.mxu0 0
  %573 = vmatpush1.bf16.xpose.msra.mxu0 0
  %574 = vmatprep.subr.bf16.mxu0 0
  %575 = vmatpush1.bf16.xpose.msra.mxu0 0
  %576 = vmatprep.subr.bf16.mxu0 0
  %577 = vmatpush1.bf16.xpose.msra.mxu0 0
  %578 = vmatprep.subr.bf16.mxu0 0
  %579 = vmatpush1.bf16.xpose.msra.mxu0 0
  %580 = vmatprep.subr.bf16.mxu0 0
  %581 = vmatpush1.bf16.xpose.msra.mxu0 0
  %582 = vmatprep.subr.bf16.mxu0 0
  %583 = vmatpush1.bf16.xpose.msra.mxu0 0
  %584 = vmatprep.subr.bf16.mxu0 0
  %585 = vmatpush1.bf16.xpose.msra.mxu0 0
  %586 = vmatprep.subr.bf16.mxu0 0
  %587 = vmatpush1.bf16.xpose.msra.mxu0 0
  %588 = vmatprep.subr.bf16.mxu0 0
  %589 = vmatpush1.bf16.xpose.msra.mxu0 0
  %590 = vmatprep.mubr.bf16.mxu0 0
  %591 = vmatmul.mubr.bf16.gmra.mrb[0].mxu0 %v553
  %v592 = vpop.f32.mrb[0].mxu0
  %v593 = vadd.f32 0.0, %v592
  %v594 = vpop.f32.mrb[0].mxu0
  %v595 = vpop.f32.mrb[0].mxu0
  %v596 = vpop.f32.mrb[0].mxu0
  %597 = vdwg.mxu0
  %v598 = vmul.f32 %v593, 0.125
  %v599 = vlaneseq
  %v600 = vshrl.u32 %v599, 7
  %v601 = vsub.s32 1, %v600
  %v602 = vrot.slane %v312, %v601
  %v603 = vadd.f32 %v598, %v602
  %v604 = vsel %vm369, %v603, -inf
  %605 = vmax.xlane.f32.xlu0 %v604
  %v606 = vpop.xlane.xlu0 %605
  %v607 = vsub.f32 %v603, %v606
  %v608 = vmul.f32 %v607, 1.442695
  %v609 = vpow.pop %v608
  %v610 = vsel %vm369, %v609, 0.0
  %611 = vadd.xlane.f32.xlu0 %v610
  %v612 = vpop.xlane.xlu0 %611
  %v613 = vrcp.pop %v612
  %v614 = vmul.f32 %v609, %v613
  %v615 = vpack.c.bf16 %v614, %v614
  %v617 = vsel %vm369, %v615, 0
  %v620 = vsel %vm385, %v551, 0
  %622 = vmatprep.subr.bf16.mxu0 0
  %623 = vmatpush1.bf16.msra.mxu0 %v620
  %624 = vmatprep.subr.bf16.mxu0 0
  %625 = vmatpush1.bf16.msra.mxu0 0
  %626 = vmatprep.subr.bf16.mxu0 0
  %627 = vmatpush1.bf16.msra.mxu0 0
  %628 = vmatprep.subr.bf16.mxu0 0
  %629 = vmatpush1.bf16.msra.mxu0 0
  %630 = vmatprep.subr.bf16.mxu0 0
  %631 = vmatpush1.bf16.msra.mxu0 0
  %632 = vmatprep.subr.bf16.mxu0 0
  %633 = vmatpush1.bf16.msra.mxu0 0
  %634 = vmatprep.subr.bf16.mxu0 0
  %635 = vmatpush1.bf16.msra.mxu0 0
  %636 = vmatprep.subr.bf16.mxu0 0
  %637 = vmatpush1.bf16.msra.mxu0 0
  %638 = vmatprep.subr.bf16.mxu0 0
  %639 = vmatpush1.bf16.msra.mxu0 0
  %640 = vmatprep.subr.bf16.mxu0 0
  %641 = vmatpush1.bf16.msra.mxu0 0
  %642 = vmatprep.subr.bf16.mxu0 0
  %643 = vmatpush1.bf16.msra.mxu0 0
  %644 = vmatprep.subr.bf16.mxu0 0
  %645 = vmatpush1.bf16.msra.mxu0 0
  %646 = vmatprep.subr.bf16.mxu0 0
  %647 = vmatpush1.bf16.msra.mxu0 0
  %648 = vmatprep.subr.bf16.mxu0 0
  %649 = vmatpush1.bf16.msra.mxu0 0
  %650 = vmatprep.subr.bf16.mxu0 0
  %651 = vmatpush1.bf16.msra.mxu0 0
  %652 = vmatprep.subr.bf16.mxu0 0
  %653 = vmatpush1.bf16.msra.mxu0 0
  %654 = vmatprep.mubr.bf16.mxu0 0
  %655 = vmatmul.mubr.bf16.gmra.mrb[0].mxu0 %v617
  %v656 = vpop.f32.mrb[0].mxu0
  %v657 = vadd.f32 0.0, %v656
  %v658 = vpop.f32.mrb[0].mxu0
  %v659 = vpop.f32.mrb[0].mxu0
  %v660 = vpop.f32.mrb[0].mxu0
  %661 = vdwg.mxu0
  %663 = vrot.lane.b32.xlu0 %v549, 64
  %v664 = vpop.permute.xlu0 %663
  %666 = vrot.lane.b32.xlu0 %v550, 64
  %v667 = vpop.permute.xlu0 %666
  %v669 = vsel %vm316, %v664, 0
  %v672 = vsel %vm316, %v667, 0
  %674 = vmatprep.subr.bf16.mxu0 0
  %675 = vmatpush1.bf16.xpose.msra.mxu0 %v672
  %676 = vmatprep.subr.bf16.mxu0 0
  %677 = vmatpush1.bf16.xpose.msra.mxu0 0
  %678 = vmatprep.subr.bf16.mxu0 0
  %679 = vmatpush1.bf16.xpose.msra.mxu0 0
  %680 = vmatprep.subr.bf16.mxu0 0
  %681 = vmatpush1.bf16.xpose.msra.mxu0 0
  %682 = vmatprep.subr.bf16.mxu0 0
  %683 = vmatpush1.bf16.xpose.msra.mxu0 0
  %684 = vmatprep.subr.bf16.mxu0 0
  %685 = vmatpush1.bf16.xpose.msra.mxu0 0
  %686 = vmatprep.subr.bf16.mxu0 0
  %687 = vmatpush1.bf16.xpose.msra.mxu0 0
  %688 = vmatprep.subr.bf16.mxu0 0
  %689 = vmatpush1.bf16.xpose.msra.mxu0 0
  %690 = vmatprep.subr.bf16.mxu0 0
  %691 = vmatpush1.bf16.xpose.msra.mxu0 0
  %692 = vmatprep.subr.bf16.mxu0 0
  %693 = vmatpush1.bf16.xpose.msra.mxu0 0
  %694 = vmatprep.subr.bf16.mxu0 0
  %695 = vmatpush1.bf16.xpose.msra.mxu0 0
  %696 = vmatprep.subr.bf16.mxu0 0
  %697 = vmatpush1.bf16.xpose.msra.mxu0 0
  %698 = vmatprep.subr.bf16.mxu0 0
  %699 = vmatpush1.bf16.xpose.msra.mxu0 0
  %700 = vmatprep.subr.bf16.mxu0 0
  %701 = vmatpush1.bf16.xpose.msra.mxu0 0
  %702 = vmatprep.subr.bf16.mxu0 0
  %703 = vmatpush1.bf16.xpose.msra.mxu0 0
  %704 = vmatprep.subr.bf16.mxu0 0
  %705 = vmatpush1.bf16.xpose.msra.mxu0 0
  %706 = vmatprep.mubr.bf16.mxu0 0
  %707 = vmatmul.mubr.bf16.gmra.mrb[0].mxu0 %v669
  %v708 = vpop.f32.mrb[0].mxu0
  %v709 = vadd.f32 0.0, %v708
  %v710 = vpop.f32.mrb[0].mxu0
  %v711 = vpop.f32.mrb[0].mxu0
  %v712 = vpop.f32.mrb[0].mxu0
  %713 = vdwg.mxu0
  %v714 = vmul.f32 %v709, 0.125
  %v715 = vadd.f32 %v714, %v602
  %v716 = vsel %vm369, %v715, -inf
  %717 = vmax.xlane.f32.xlu0 %v716
  %v718 = vpop.xlane.xlu0 %717
  %v719 = vsub.f32 %v715, %v718
  %v720 = vmul.f32 %v719, 1.442695
  %v721 = vpow.pop %v720
  %v722 = vsel %vm369, %v721, 0.0
  %723 = vadd.xlane.f32.xlu0 %v722
  %v724 = vpop.xlane.xlu0 %723
  %v725 = vrcp.pop %v724
  %v726 = vmul.f32 %v721, %v725
  %v727 = vpack.c.bf16 %v726, %v726
  %729 = vrot.lane.b32.xlu0 %v551, 64
  %v730 = vpop.permute.xlu0 %729
  %v732 = vsel %vm369, %v727, 0
  %v735 = vsel %vm385, %v730, 0
  %737 = vmatprep.subr.bf16.mxu0 0
  %738 = vmatpush1.bf16.msra.mxu0 %v735
  %739 = vmatprep.subr.bf16.mxu0 0
  %740 = vmatpush1.bf16.msra.mxu0 0
  %741 = vmatprep.subr.bf16.mxu0 0
  %742 = vmatpush1.bf16.msra.mxu0 0
  %743 = vmatprep.subr.bf16.mxu0 0
  %744 = vmatpush1.bf16.msra.mxu0 0
  %745 = vmatprep.subr.bf16.mxu0 0
  %746 = vmatpush1.bf16.msra.mxu0 0
  %747 = vmatprep.subr.bf16.mxu0 0
  %748 = vmatpush1.bf16.msra.mxu0 0
  %749 = vmatprep.subr.bf16.mxu0 0
  %750 = vmatpush1.bf16.msra.mxu0 0
  %751 = vmatprep.subr.bf16.mxu0 0
  %752 = vmatpush1.bf16.msra.mxu0 0
  %753 = vmatprep.subr.bf16.mxu0 0
  %754 = vmatpush1.bf16.msra.mxu0 0
  %755 = vmatprep.subr.bf16.mxu0 0
  %756 = vmatpush1.bf16.msra.mxu0 0
  %757 = vmatprep.subr.bf16.mxu0 0
  %758 = vmatpush1.bf16.msra.mxu0 0
  %759 = vmatprep.subr.bf16.mxu0 0
  %760 = vmatpush1.bf16.msra.mxu0 0
  %761 = vmatprep.subr.bf16.mxu0 0
  %762 = vmatpush1.bf16.msra.mxu0 0
  %763 = vmatprep.subr.bf16.mxu0 0
  %764 = vmatpush1.bf16.msra.mxu0 0
  %765 = vmatprep.subr.bf16.mxu0 0
  %766 = vmatpush1.bf16.msra.mxu0 0
  %767 = vmatprep.subr.bf16.mxu0 0
  %768 = vmatpush1.bf16.msra.mxu0 0
  %769 = vmatprep.mubr.bf16.mxu0 0
  %770 = vmatmul.mubr.bf16.gmra.mrb[0].mxu0 %v732
  %v771 = vpop.f32.mrb[0].mxu0
  %v772 = vadd.f32 0.0, %v771
  %v773 = vpop.f32.mrb[0].mxu0
  %v774 = vpop.f32.mrb[0].mxu0
  %v775 = vpop.f32.mrb[0].mxu0
  %776 = vdwg.mxu0
  %778 = vrot.lane.b32.xlu0 %v772, 64
  %v779 = vpop.permute.xlu0 %778
  %v781 = vsel %vm316, %v657, %v779
  %v782 = vpack.c.bf16 %v781, %v548
  %v783 = vld [vmem:[%s4] sm:$0xf]
  %v784 = vld [vmem:[%s4 + $0x4] sm:$0xf]
  %v785 = vld [vmem:[%s4 + $0x8] sm:$0xf]
  %v786 = vld [vmem:[%s4 + $0xc] sm:$0xf]
  %v787 = vld [vmem:[%s4 + $0x10] sm:$0xf]
  %v788 = vld [vmem:[%s4 + $0x14] sm:$0xf]
  %v789 = vld [vmem:[%s4 + $0x18] sm:$0xf]
  %v790 = vld [vmem:[%s4 + $0x1c] sm:$0xf]
  %v791 = vld [vmem:[%s4 + $0x20] sm:$0xf]
  %v792 = vld [vmem:[%s4 + $0x24] sm:$0xf]
  %v793 = vld [vmem:[%s4 + $0x28] sm:$0xf]
  %v794 = vld [vmem:[%s4 + $0x2c] sm:$0xf]
  %v795 = vld [vmem:[%s4 + $0x30] sm:$0xf]
  %v796 = vld [vmem:[%s4 + $0x34] sm:$0xf]
  %v797 = vld [vmem:[%s4 + $0x38] sm:$0xf]
  %v798 = vld [vmem:[%s4 + $0x3c] sm:$0xf]
  %v799 = vld [vmem:[%s5] sm:$0x1]
  %v801 = vlaneseq
  %v802 = vshrl.u32 %v801, 7
  %v803 = vsub.s32 0, %v802
  %v804 = vrot.slane %v799, %v803
  %v822 = vunpack.c.l.b16 %v783
  %v823 = vunpack.c.l.b16 %v784
  %v824 = vunpack.c.l.b16 %v785
  %v825 = vunpack.c.l.b16 %v786
  %v826 = vunpack.c.l.b16 %v787
  %v827 = vunpack.c.l.b16 %v788
  %v828 = vunpack.c.l.b16 %v789
  %v829 = vunpack.c.l.b16 %v790
  %v830 = vunpack.c.l.b16 %v791
  %v831 = vunpack.c.l.b16 %v792
  %v832 = vunpack.c.l.b16 %v793
  %v833 = vunpack.c.l.b16 %v794
  %v834 = vunpack.c.l.b16 %v795
  %v835 = vunpack.c.l.b16 %v796
  %v836 = vunpack.c.l.b16 %v797
  %v837 = vunpack.c.l.b16 %v798
  %v838 = vpack.c.b16 %v823, %v822
  %v839 = vpack.c.b16 %v825, %v824
  %v840 = vpack.c.b16 %v827, %v826
  %v841 = vpack.c.b16 %v829, %v828
  %v842 = vpack.c.b16 %v831, %v830
  %v843 = vpack.c.b16 %v833, %v832
  %v844 = vpack.c.b16 %v835, %v834
  %v845 = vpack.c.b16 %v837, %v836
  %854 = vmatprep.subr.bf16.mxu0 0
  %855 = vmatpush1.bf16.msra.mxu0 %v838
  %856 = vmatprep.subr.bf16.mxu0 0
  %857 = vmatpush1.bf16.msra.mxu0 %v839
  %858 = vmatprep.subr.bf16.mxu0 0
  %859 = vmatpush1.bf16.msra.mxu0 %v840
  %860 = vmatprep.subr.bf16.mxu0 0
  %861 = vmatpush1.bf16.msra.mxu0 %v841
  %862 = vmatprep.subr.bf16.mxu0 0
  %863 = vmatpush1.bf16.msra.mxu0 %v842
  %864 = vmatprep.subr.bf16.mxu0 0
  %865 = vmatpush1.bf16.msra.mxu0 %v843
  %866 = vmatprep.subr.bf16.mxu0 0
  %867 = vmatpush1.bf16.msra.mxu0 %v844
  %868 = vmatprep.subr.bf16.mxu0 0
  %869 = vmatpush1.bf16.msra.mxu0 %v845
  %870 = vmatprep.subr.bf16.mxu0 0
  %871 = vmatpush1.bf16.msra.mxu0 0
  %872 = vmatprep.subr.bf16.mxu0 0
  %873 = vmatpush1.bf16.msra.mxu0 0
  %874 = vmatprep.subr.bf16.mxu0 0
  %875 = vmatpush1.bf16.msra.mxu0 0
  %876 = vmatprep.subr.bf16.mxu0 0
  %877 = vmatpush1.bf16.msra.mxu0 0
  %878 = vmatprep.subr.bf16.mxu0 0
  %879 = vmatpush1.bf16.msra.mxu0 0
  %880 = vmatprep.subr.bf16.mxu0 0
  %881 = vmatpush1.bf16.msra.mxu0 0
  %882 = vmatprep.subr.bf16.mxu0 0
  %883 = vmatpush1.bf16.msra.mxu0 0
  %884 = vmatprep.subr.bf16.mxu0 0
  %885 = vmatpush1.bf16.msra.mxu0 0
  %886 = vmatprep.mubr.bf16.mxu0 0
  %887 = vmatmul.mubr.bf16.gmra.mrb[0].mxu0 %v782
  %v888 = vpop.f32.mrb[0].mxu0
  %v889 = vadd.f32 %v804, %v888
  %v890 = vpop.f32.mrb[0].mxu0
  %v891 = vpop.f32.mrb[0].mxu0
  %v892 = vadd.f32 %v804, %v891
  %v893 = vpop.f32.mrb[0].mxu0
  %894 = vdwg.mxu0
  %v895 = vadd.f32 %v48, %v889
  %v896 = vadd.f32 %v49, %v892
  %v897 = vld [vmem:[%s6] sm:$0x1]
  %v898 = vld [vmem:[%s7] sm:$0x1]
  %899 = vadd.xlane.f32.xlu0 %v895
  %v900 = vpop.xlane.xlu0 %899
  %901 = vadd.xlane.f32.xlu0 %v896
  %v902 = vpop.xlane.xlu0 %901
  %v903 = vrcp.pop 128.0
  %v904 = vmul.f32 %v900, %v903
  %v905 = vmul.f32 %v902, %v903
  %v906 = vsub.f32 %v895, %v904
  %v907 = vsub.f32 %v896, %v905
  %v908 = vmul.f32 %v906, %v906
  %v909 = vmul.f32 %v907, %v907
  %910 = vadd.xlane.f32.xlu0 %v908
  %v911 = vpop.xlane.xlu0 %910
  %912 = vadd.xlane.f32.xlu0 %v909
  %v913 = vpop.xlane.xlu0 %912
  %v914 = vmul.f32 %v911, %v903
  %v915 = vmul.f32 %v913, %v903
  %v916 = vadd.f32 %v914, 1e-12
  %v917 = vadd.f32 %v915, 1e-12
  %v918 = vrsqrt.pop %v916
  %v919 = vrsqrt.pop %v917
  %v920 = vmul.f32 %v906, %v918
  %v921 = vmul.f32 %v907, %v919
  %v923 = vlaneseq
  %v924 = vshrl.u32 %v923, 7
  %v925 = vsub.s32 0, %v924
  %v926 = vrot.slane %v897, %v925
  %v928 = vmul.f32 %v920, %v926
  %v929 = vmul.f32 %v921, %v926
  %v931 = vlaneseq
  %v932 = vshrl.u32 %v931, 7
  %v933 = vsub.s32 0, %v932
  %v934 = vrot.slane %v898, %v933
  %v936 = vadd.f32 %v928, %v934
  %v937 = vadd.f32 %v929, %v934
  %v938 = vpack.c.bf16 %v937, %v936
  %v939 = vld [vmem:[%s8] sm:$0xff]
  %v940 = vld [vmem:[%s8 + $0x8] sm:$0xff]
  %v941 = vld [vmem:[%s8 + $0x10] sm:$0xff]
  %v942 = vld [vmem:[%s8 + $0x18] sm:$0xff]
  %v943 = vld [vmem:[%s8 + $0x20] sm:$0xff]
  %v944 = vld [vmem:[%s8 + $0x28] sm:$0xff]
  %v945 = vld [vmem:[%s8 + $0x30] sm:$0xff]
  %v946 = vld [vmem:[%s8 + $0x38] sm:$0xff]
  %v947 = vld [vmem:[%s8 + $0x40] sm:$0xff]
  %v948 = vld [vmem:[%s8 + $0x48] sm:$0xff]
  %v949 = vld [vmem:[%s8 + $0x50] sm:$0xff]
  %v950 = vld [vmem:[%s8 + $0x58] sm:$0xff]
  %v951 = vld [vmem:[%s8 + $0x60] sm:$0xff]
  %v952 = vld [vmem:[%s8 + $0x68] sm:$0xff]
  %v953 = vld [vmem:[%s8 + $0x70] sm:$0xff]
  %v954 = vld [vmem:[%s8 + $0x78] sm:$0xff]
  %v955 = vld [vmem:[%s9] sm:$0x3]
  %v957 = vlaneseq
  %v958 = vshrl.u32 %v957, 7
  %v959 = vsub.s32 0, %v958
  %v960 = vrot.slane %v955, %v959
  %v961 = vlaneseq
  %v962 = vshrl.u32 %v961, 7
  %v963 = vsub.s32 1, %v962
  %v964 = vrot.slane %v955, %v963
  %v983 = vunpack.c.l.b16 %v939
  %v984 = vunpack.c.h.b16 %v939
  %v985 = vunpack.c.l.b16 %v940
  %v986 = vunpack.c.h.b16 %v940
  %v987 = vunpack.c.l.b16 %v941
  %v988 = vunpack.c.h.b16 %v941
  %v989 = vunpack.c.l.b16 %v942
  %v990 = vunpack.c.h.b16 %v942
  %v991 = vunpack.c.l.b16 %v943
  %v992 = vunpack.c.h.b16 %v943
  %v993 = vunpack.c.l.b16 %v944
  %v994 = vunpack.c.h.b16 %v944
  %v995 = vunpack.c.l.b16 %v945
  %v996 = vunpack.c.h.b16 %v945
  %v997 = vunpack.c.l.b16 %v946
  %v998 = vunpack.c.h.b16 %v946
  %v999 = vunpack.c.l.b16 %v947
  %v1000 = vunpack.c.h.b16 %v947
  %v1001 = vunpack.c.l.b16 %v948
  %v1002 = vunpack.c.h.b16 %v948
  %v1003 = vunpack.c.l.b16 %v949
  %v1004 = vunpack.c.h.b16 %v949
  %v1005 = vunpack.c.l.b16 %v950
  %v1006 = vunpack.c.h.b16 %v950
  %v1007 = vunpack.c.l.b16 %v951
  %v1008 = vunpack.c.h.b16 %v951
  %v1009 = vunpack.c.l.b16 %v952
  %v1010 = vunpack.c.h.b16 %v952
  %v1011 = vunpack.c.l.b16 %v953
  %v1012 = vunpack.c.h.b16 %v953
  %v1013 = vunpack.c.l.b16 %v954
  %v1014 = vunpack.c.h.b16 %v954
  %v1015 = vpack.c.b16 %v985, %v983
  %v1016 = vpack.c.b16 %v986, %v984
  %v1017 = vpack.c.b16 %v989, %v987
  %v1018 = vpack.c.b16 %v990, %v988
  %v1019 = vpack.c.b16 %v993, %v991
  %v1020 = vpack.c.b16 %v994, %v992
  %v1021 = vpack.c.b16 %v997, %v995
  %v1022 = vpack.c.b16 %v998, %v996
  %v1023 = vpack.c.b16 %v1001, %v999
  %v1024 = vpack.c.b16 %v1002, %v1000
  %v1025 = vpack.c.b16 %v1005, %v1003
  %v1026 = vpack.c.b16 %v1006, %v1004
  %v1027 = vpack.c.b16 %v1009, %v1007
  %v1028 = vpack.c.b16 %v1010, %v1008
  %v1029 = vpack.c.b16 %v1013, %v1011
  %v1030 = vpack.c.b16 %v1014, %v1012
  %1047 = vmatprep.subr.bf16.mxu0 %v1016
  %1048 = vmatpush1.bf16.msra.mxu0 %v1015
  %1049 = vmatprep.subr.bf16.mxu0 %v1018
  %1050 = vmatpush1.bf16.msra.mxu0 %v1017
  %1051 = vmatprep.subr.bf16.mxu0 %v1020
  %1052 = vmatpush1.bf16.msra.mxu0 %v1019
  %1053 = vmatprep.subr.bf16.mxu0 %v1022
  %1054 = vmatpush1.bf16.msra.mxu0 %v1021
  %1055 = vmatprep.subr.bf16.mxu0 %v1024
  %1056 = vmatpush1.bf16.msra.mxu0 %v1023
  %1057 = vmatprep.subr.bf16.mxu0 %v1026
  %1058 = vmatpush1.bf16.msra.mxu0 %v1025
  %1059 = vmatprep.subr.bf16.mxu0 %v1028
  %1060 = vmatpush1.bf16.msra.mxu0 %v1027
  %1061 = vmatprep.subr.bf16.mxu0 %v1030
  %1062 = vmatpush1.bf16.msra.mxu0 %v1029
  %1063 = vmatprep.subr.bf16.mxu0 0
  %1064 = vmatpush1.bf16.msra.mxu0 0
  %1065 = vmatprep.subr.bf16.mxu0 0
  %1066 = vmatpush1.bf16.msra.mxu0 0
  %1067 = vmatprep.subr.bf16.mxu0 0
  %1068 = vmatpush1.bf16.msra.mxu0 0
  %1069 = vmatprep.subr.bf16.mxu0 0
  %1070 = vmatpush1.bf16.msra.mxu0 0
  %1071 = vmatprep.subr.bf16.mxu0 0
  %1072 = vmatpush1.bf16.msra.mxu0 0
  %1073 = vmatprep.subr.bf16.mxu0 0
  %1074 = vmatpush1.bf16.msra.mxu0 0
  %1075 = vmatprep.subr.bf16.mxu0 0
  %1076 = vmatpush1.bf16.msra.mxu0 0
  %1077 = vmatprep.subr.bf16.mxu0 0
  %1078 = vmatpush1.bf16.msra.mxu0 0
  %1079 = vmatprep.mubr.bf16.mxu0 0
  %1080 = vmatmul.mubr.bf16.gmra.mrb[0].mxu0 %v938
  %v1081 = vpop.f32.mrb[0].mxu0
  %v1082 = vadd.f32 %v960, %v1081
  %v1083 = vpop.f32.mrb[0].mxu0
  %v1084 = vadd.f32 %v964, %v1083
  %v1085 = vpop.f32.mrb[0].mxu0
  %v1086 = vadd.f32 %v960, %v1085
  %v1087 = vpop.f32.mrb[0].mxu0
  %v1088 = vadd.f32 %v964, %v1087
  %1089 = vdwg.mxu0
  %v1090 = vmul.f32 %v1082, 0.5
  %v1091 = vmul.f32 %v1084, 0.5
  %v1092 = vmul.f32 %v1086, 0.5
  %v1093 = vmul.f32 %v1088, 0.5
  %v1094 = vmul.f32 %v1082, 0.044715
  %v1095 = vmul.f32 %v1084, 0.044715
  %v1096 = vmul.f32 %v1086, 0.044715
  %v1097 = vmul.f32 %v1088, 0.044715
  %v1098 = vmul.f32 %v1094, %v1082
  %v1099 = vmul.f32 %v1095, %v1084
  %v1100 = vmul.f32 %v1096, %v1086
  %v1101 = vmul.f32 %v1097, %v1088
  %v1102 = vmul.f32 %v1098, %v1082
  %v1103 = vmul.f32 %v1099, %v1084
  %v1104 = vmul.f32 %v1100, %v1086
  %v1105 = vmul.f32 %v1101, %v1088
  %v1106 = vadd.f32 %v1082, %v1102
  %v1107 = vadd.f32 %v1084, %v1103
  %v1108 = vadd.f32 %v1086, %v1104
  %v1109 = vadd.f32 %v1088, %v1105
  %v1110 = vmul.f32 %v1106, 0.7978846
  %v1111 = vmul.f32 %v1107, 0.7978846
  %v1112 = vmul.f32 %v1108, 0.7978846
  %v1113 = vmul.f32 %v1109, 0.7978846
  %v1114 = vtanh.pop %v1110
  %v1115 = vtanh.pop %v1111
  %v1116 = vtanh.pop %v1112
  %v1117 = vtanh.pop %v1113
  %v1118 = vadd.f32 %v1114, 1.0
  %v1119 = vadd.f32 %v1115, 1.0
  %v1120 = vadd.f32 %v1116, 1.0
  %v1121 = vadd.f32 %v1117, 1.0
  %v1122 = vmul.f32 %v1090, %v1118
  %v1123 = vmul.f32 %v1091, %v1119
  %v1124 = vmul.f32 %v1092, %v1120
  %v1125 = vmul.f32 %v1093, %v1121
  %v1126 = vpack.c.bf16 %v1124, %v1122
  %v1127 = vpack.c.bf16 %v1125, %v1123
  %v1128 = vld [vmem:[%s10] sm:$0xf]
  %v1129 = vld [vmem:[%s10 + $0x4] sm:$0xf]
  %v1130 = vld [vmem:[%s10 + $0x8] sm:$0xf]
  %v1131 = vld [vmem:[%s10 + $0xc] sm:$0xf]
  %v1132 = vld [vmem:[%s10 + $0x10] sm:$0xf]
  %v1133 = vld [vmem:[%s10 + $0x14] sm:$0xf]
  %v1134 = vld [vmem:[%s10 + $0x18] sm:$0xf]
  %v1135 = vld [vmem:[%s10 + $0x1c] sm:$0xf]
  %v1136 = vld [vmem:[%s10 + $0x20] sm:$0xf]
  %v1137 = vld [vmem:[%s10 + $0x24] sm:$0xf]
  %v1138 = vld [vmem:[%s10 + $0x28] sm:$0xf]
  %v1139 = vld [vmem:[%s10 + $0x2c] sm:$0xf]
  %v1140 = vld [vmem:[%s10 + $0x30] sm:$0xf]
  %v1141 = vld [vmem:[%s10 + $0x34] sm:$0xf]
  %v1142 = vld [vmem:[%s10 + $0x38] sm:$0xf]
  %v1143 = vld [vmem:[%s10 + $0x3c] sm:$0xf]
  %v1144 = vld [vmem:[%s10 + $0x40] sm:$0xf]
  %v1145 = vld [vmem:[%s10 + $0x44] sm:$0xf]
  %v1146 = vld [vmem:[%s10 + $0x48] sm:$0xf]
  %v1147 = vld [vmem:[%s10 + $0x4c] sm:$0xf]
  %v1148 = vld [vmem:[%s10 + $0x50] sm:$0xf]
  %v1149 = vld [vmem:[%s10 + $0x54] sm:$0xf]
  %v1150 = vld [vmem:[%s10 + $0x58] sm:$0xf]
  %v1151 = vld [vmem:[%s10 + $0x5c] sm:$0xf]
  %v1152 = vld [vmem:[%s10 + $0x60] sm:$0xf]
  %v1153 = vld [vmem:[%s10 + $0x64] sm:$0xf]
  %v1154 = vld [vmem:[%s10 + $0x68] sm:$0xf]
  %v1155 = vld [vmem:[%s10 + $0x6c] sm:$0xf]
  %v1156 = vld [vmem:[%s10 + $0x70] sm:$0xf]
  %v1157 = vld [vmem:[%s10 + $0x74] sm:$0xf]
  %v1158 = vld [vmem:[%s10 + $0x78] sm:$0xf]
  %v1159 = vld [vmem:[%s10 + $0x7c] sm:$0xf]
  %v1160 = vld [vmem:[%s11] sm:$0x1]
  %v1162 = vlaneseq
  %v1163 = vshrl.u32 %v1162, 7
  %v1164 = vsub.s32 0, %v1163
  %v1165 = vrot.slane %v1160, %v1164
  %v1199 = vunpack.c.l.b16 %v1128
  %v1200 = vunpack.c.l.b16 %v1129
  %v1201 = vunpack.c.l.b16 %v1130
  %v1202 = vunpack.c.l.b16 %v1131
  %v1203 = vunpack.c.l.b16 %v1132
  %v1204 = vunpack.c.l.b16 %v1133
  %v1205 = vunpack.c.l.b16 %v1134
  %v1206 = vunpack.c.l.b16 %v1135
  %v1207 = vunpack.c.l.b16 %v1136
  %v1208 = vunpack.c.l.b16 %v1137
  %v1209 = vunpack.c.l.b16 %v1138
  %v1210 = vunpack.c.l.b16 %v1139
  %v1211 = vunpack.c.l.b16 %v1140
  %v1212 = vunpack.c.l.b16 %v1141
  %v1213 = vunpack.c.l.b16 %v1142
  %v1214 = vunpack.c.l.b16 %v1143
  %v1215 = vunpack.c.l.b16 %v1144
  %v1216 = vunpack.c.l.b16 %v1145
  %v1217 = vunpack.c.l.b16 %v1146
  %v1218 = vunpack.c.l.b16 %v1147
  %v1219 = vunpack.c.l.b16 %v1148
  %v1220 = vunpack.c.l.b16 %v1149
  %v1221 = vunpack.c.l.b16 %v1150
  %v1222 = vunpack.c.l.b16 %v1151
  %v1223 = vunpack.c.l.b16 %v1152
  %v1224 = vunpack.c.l.b16 %v1153
  %v1225 = vunpack.c.l.b16 %v1154
  %v1226 = vunpack.c.l.b16 %v1155
  %v1227 = vunpack.c.l.b16 %v1156
  %v1228 = vunpack.c.l.b16 %v1157
  %v1229 = vunpack.c.l.b16 %v1158
  %v1230 = vunpack.c.l.b16 %v1159
  %v1231 = vpack.c.b16 %v1200, %v1199
  %v1232 = vpack.c.b16 %v1202, %v1201
  %v1233 = vpack.c.b16 %v1204, %v1203
  %v1234 = vpack.c.b16 %v1206, %v1205
  %v1235 = vpack.c.b16 %v1208, %v1207
  %v1236 = vpack.c.b16 %v1210, %v1209
  %v1237 = vpack.c.b16 %v1212, %v1211
  %v1238 = vpack.c.b16 %v1214, %v1213
  %v1239 = vpack.c.b16 %v1216, %v1215
  %v1240 = vpack.c.b16 %v1218, %v1217
  %v1241 = vpack.c.b16 %v1220, %v1219
  %v1242 = vpack.c.b16 %v1222, %v1221
  %v1243 = vpack.c.b16 %v1224, %v1223
  %v1244 = vpack.c.b16 %v1226, %v1225
  %v1245 = vpack.c.b16 %v1228, %v1227
  %v1246 = vpack.c.b16 %v1230, %v1229
  %1263 = vmatprep.subr.bf16.mxu0 0
  %1264 = vmatpush1.bf16.msra.mxu0 %v1231
  %1265 = vmatprep.subr.bf16.mxu0 0
  %1266 = vmatpush1.bf16.msra.mxu0 %v1232
  %1267 = vmatprep.subr.bf16.mxu0 0
  %1268 = vmatpush1.bf16.msra.mxu0 %v1233
  %1269 = vmatprep.subr.bf16.mxu0 0
  %1270 = vmatpush1.bf16.msra.mxu0 %v1234
  %1271 = vmatprep.subr.bf16.mxu0 0
  %1272 = vmatpush1.bf16.msra.mxu0 %v1235
  %1273 = vmatprep.subr.bf16.mxu0 0
  %1274 = vmatpush1.bf16.msra.mxu0 %v1236
  %1275 = vmatprep.subr.bf16.mxu0 0
  %1276 = vmatpush1.bf16.msra.mxu0 %v1237
  %1277 = vmatprep.subr.bf16.mxu0 0
  %1278 = vmatpush1.bf16.msra.mxu0 %v1238
  %1279 = vmatprep.subr.bf16.mxu0 0
  %1280 = vmatpush1.bf16.msra.mxu0 %v1239
  %1281 = vmatprep.subr.bf16.mxu0 0
  %1282 = vmatpush1.bf16.msra.mxu0 %v1240
  %1283 = vmatprep.subr.bf16.mxu0 0
  %1284 = vmatpush1.bf16.msra.mxu0 %v1241
  %1285 = vmatprep.subr.bf16.mxu0 0
  %1286 = vmatpush1.bf16.msra.mxu0 %v1242
  %1287 = vmatprep.subr.bf16.mxu0 0
  %1288 = vmatpush1.bf16.msra.mxu0 %v1243
  %1289 = vmatprep.subr.bf16.mxu0 0
  %1290 = vmatpush1.bf16.msra.mxu0 %v1244
  %1291 = vmatprep.subr.bf16.mxu0 0
  %1292 = vmatpush1.bf16.msra.mxu0 %v1245
  %1293 = vmatprep.subr.bf16.mxu0 0
  %1294 = vmatpush1.bf16.msra.mxu0 %v1246
  %1295 = vmatprep.mubr.bf16.mxu0 %v1127
  %1296 = vmatmul.mubr.bf16.gmra.mrb[0].mxu0 %v1126
  %v1297 = vpop.f32.mrb[0].mxu0
  %v1298 = vadd.f32 %v1165, %v1297
  %v1299 = vpop.f32.mrb[0].mxu0
  %v1300 = vpop.f32.mrb[0].mxu0
  %v1301 = vadd.f32 %v1165, %v1300
  %v1302 = vpop.f32.mrb[0].mxu0
  %1303 = vdwg.mxu0
  %v1304 = vadd.f32 %v936, %v1298
  %v1305 = vadd.f32 %v937, %v1301
  %v1306 = vld [vmem:[%s12] sm:$0x1]
  %v1307 = vld [vmem:[%s13] sm:$0x1]
  %1308 = vadd.xlane.f32.xlu0 %v1304
  %v1309 = vpop.xlane.xlu0 %1308
  %1310 = vadd.xlane.f32.xlu0 %v1305
  %v1311 = vpop.xlane.xlu0 %1310
  %v1312 = vmul.f32 %v1309, %v903
  %v1313 = vmul.f32 %v1311, %v903
  %v1314 = vsub.f32 %v1304, %v1312
  %v1315 = vsub.f32 %v1305, %v1313
  %v1316 = vmul.f32 %v1314, %v1314
  %v1317 = vmul.f32 %v1315, %v1315
  %1318 = vadd.xlane.f32.xlu0 %v1316
  %v1319 = vpop.xlane.xlu0 %1318
  %1320 = vadd.xlane.f32.xlu0 %v1317
  %v1321 = vpop.xlane.xlu0 %1320
  %v1322 = vmul.f32 %v1319, %v903
  %v1323 = vmul.f32 %v1321, %v903
  %v1324 = vadd.f32 %v1322, 1e-12
  %v1325 = vadd.f32 %v1323, 1e-12
  %v1326 = vrsqrt.pop %v1324
  %v1327 = vrsqrt.pop %v1325
  %v1328 = vmul.f32 %v1314, %v1326
  %v1329 = vmul.f32 %v1315, %v1327
  %v1331 = vlaneseq
  %v1332 = vshrl.u32 %v1331, 7
  %v1333 = vsub.s32 0, %v1332
  %v1334 = vrot.slane %v1306, %v1333
  %v1336 = vmul.f32 %v1328, %v1334
  %v1337 = vmul.f32 %v1329, %v1334
  %v1339 = vlaneseq
  %v1340 = vshrl.u32 %v1339, 7
  %v1341 = vsub.s32 0, %v1340
  %v1342 = vrot.slane %v1307, %v1341
  %v1344 = vadd.f32 %v1336, %v1342
  %v1345 = vadd.f32 %v1337, %v1342
  %1346 = vst [vmem:[%s14] sm:$0xff] %v1344
  %1347 = vst [vmem:[%s14 + $0x8] sm:$0xff] %v1345
  // Predicated region
  $region58: #{bert_classifier_forward.6} parent=0 // pred_check
    _
  $region59: #{bert_classifier_forward.6} parent=0 // pred_check_branch
    %1349 = sbr.rel (0) target = $region61
  $region60: #{bert_classifier_forward.6} parent=0 // pred_region
    _
  $region61: #{bert_classifier_forward.6} parent=0 // pred_fallthru
    _
  // Predicated region
  $region62: #{bert_classifier_forward.6} parent=0 // pred_check
    _
  $region63: #{bert_classifier_forward.6} parent=0 // pred_check_branch
    %1351 = sbr.rel (0) target = $region65
  $region64: #{bert_classifier_forward.6} parent=0 // pred_region
    _
  $region65: #{bert_classifier_forward.6} parent=0 // pred_fallthru
    _

// kernel: bert_classifier_forward.5
$region0: #{bert_classifier_forward.5}
  #allocation0 [shape = 'u32[]', space=smem, size = 0x4, offset = 0x4, fixed_abs, tag = 'smem constant byte address 0x4 - core index']
  #allocation1 [shape = 'u32[144,128]{1,0:T(1,128)}', space=vmem, size = 0x12000, scoped, tag = 'internal scratch']
  %s0 = inlined_call_operand.vmem [shape: f32[16,128], index: 0, kind: input, shape index: {}]
  %s1 = inlined_call_operand.vmem [shape: f32[2,8], index: 1, kind: input, shape index: {}]
  %s2 = inlined_call_operand.vmem [shape: bf16[128,384], index: 2, kind: input, shape index: {}]
  %s3 = inlined_call_operand.hbm [shape: f32[1,384], index: 3, kind: input, shape index: {}]
  %s4 = inlined_call_operand.hbm [shape: bf16[128,128], index: 4, kind: input, shape index: {}]
  %s5 = inlined_call_operand.vmem [shape: f32[1,128], index: 5, kind: input, shape index: {}]
  %s6 = inlined_call_operand.hbm [shape: f32[1,128], index: 6, kind: input, shape index: {}]
  %s7 = inlined_call_operand.hbm [shape: f32[1,128], index: 7, kind: input, shape index: {}]
  %s8 = inlined_call_operand.vmem [shape: bf16[128,256], index: 8, kind: input, shape index: {}]
  %s9 = inlined_call_operand.hbm [shape: f32[1,256], index: 9, kind: input, shape index: {}]
  %s10 = inlined_call_operand.hbm [shape: bf16[256,128], index: 10, kind: input, shape index: {}]
  %s11 = inlined_call_operand.hbm [shape: f32[1,128], index: 11, kind: input, shape index: {}]
  %s12 = inlined_call_operand.hbm [shape: f32[1,128], index: 12, kind: input, shape index: {}]
  %s13 = inlined_call_operand.hbm [shape: f32[1,128], index: 13, kind: input, shape index: {}]
  %s14 = inlined_call_operand.vmem [shape: f32[16,128], index: 14, kind: output, shape index: {}]
  %s15 = sld [smem:[#allocation0]]
  $region102: #{bert_classifier_forward.5} parent=0
    _
  %s17 = ssub.s32 1, %s15
  %s18 = scalar_select 0, %s17, %s15
  $region1: #{bert_classifier_forward.5} parent=0
    #allocation2 [shape = 'u8[1536]{0}', space=vmem, size = 0x800, scoped, tag = 'input window, operand 3, single buffered']
    #allocation3 [shape = 's32[1]{0}', space=sflag, size = 0x4, scoped, tag = 'scoped memory for bert_classifier_forward.5']
    #allocation4 [shape = 'u8[32768]{0}', space=vmem, size = 0x8000, scoped, tag = 'input window, operand 4, single buffered']
    #allocation5 [shape = 's32[1]{0}', space=sflag, size = 0x4, scoped, tag = 'scoped memory for bert_classifier_forward.5']
    #allocation6 [shape = 'u8[512]{0}', space=vmem, size = 0x400, scoped, tag = 'input window, operand 6, single buffered']
    #allocation7 [shape = 'u8[512]{0}', space=vmem, size = 0x400, scoped, tag = 'input window, operand 7, single buffered']
    #allocation8 [shape = 's32[1]{0}', space=sflag, size = 0x4, scoped, tag = 'scoped memory for bert_classifier_forward.5']
    #allocation9 [shape = 'u8[1024]{0}', space=vmem, size = 0x400, scoped, tag = 'input window, operand 9, single buffered']
    #allocation10 [shape = 'u8[65536]{0}', space=vmem, size = 0x10000, scoped, tag = 'input window, operand 10, single buffered']
    #allocation11 [shape = 's32[1]{0}', space=sflag, size = 0x4, scoped, tag = 'scoped memory for bert_classifier_forward.5']
    #allocation12 [shape = 'u8[512]{0}', space=vmem, size = 0x400, scoped, tag = 'input window, operand 11, single buffered']
    #allocation13 [shape = 'u8[512]{0}', space=vmem, size = 0x400, scoped, tag = 'input window, operand 12, single buffered']
    #allocation14 [shape = 's32[1]{0}', space=sflag, size = 0x4, scoped, tag = 'scoped memory for bert_classifier_forward.5']
    #allocation15 [shape = 'u8[512]{0}', space=vmem, size = 0x400, scoped, tag = 'input window, operand 13, single buffered']
    %19 = vsyncpa [#allocation3], 0
    %20 = vsyncpa [#allocation5], 0
    %21 = vsyncpa [#allocation8], 0
    %22 = vsyncpa [#allocation11], 0
    %23 = vsyncpa [#allocation14], 0
    // Predicated region
    $region2: #{bert_classifier_forward.5} parent=1 // pred_check
      _
    $region3: #{bert_classifier_forward.5} parent=1 // pred_check_branch
      %25 = sbr.rel (0) target = $region5
    $region4: #{bert_classifier_forward.5} parent=1 // pred_region
      _
    $region5: #{bert_classifier_forward.5} parent=1 // pred_fallthru
      _
    // Predicated region
    $region6: #{bert_classifier_forward.5} parent=1 // pred_check
      _
    $region7: #{bert_classifier_forward.5} parent=1 // pred_check_branch
      %27 = sbr.rel (0) target = $region9
    $region8: #{bert_classifier_forward.5} parent=1 // pred_region
      _
    $region9: #{bert_classifier_forward.5} parent=1 // pred_fallthru
      _
    // Predicated region
    $region10: #{bert_classifier_forward.5} parent=1 // pred_check
      _
    $region11: #{bert_classifier_forward.5} parent=1 // pred_check_branch
      %29 = sbr.rel (0) target = $region13
    $region12: #{bert_classifier_forward.5} parent=1 // pred_region
      _
    $region13: #{bert_classifier_forward.5} parent=1 // pred_fallthru
      _
    // Predicated region
    $region14: #{bert_classifier_forward.5} parent=1 // pred_check
      _
    $region15: #{bert_classifier_forward.5} parent=1 // pred_check_branch
      %31 = sbr.rel (0) target = $region17
    $region16: #{bert_classifier_forward.5} parent=1 // pred_region
      %s33 = ssub.s32 48, 48
      %34 = vsyncadd [#allocation3], %s33
      %s36 = sshll.u32 [#allocation2], 4
      %s37 = int_to_ptr.vmem [resolvable:$true] %s36
      %39 = dma.hbm_to_vmem [thread:$0]  %s3, 48, %s37, [#allocation3]
    $region17: #{bert_classifier_forward.5} parent=1 // pred_fallthru
      _
    // Predicated region
    $region18: #{bert_classifier_forward.5} parent=1 // pred_check
      _
    $region19: #{bert_classifier_forward.5} parent=1 // pred_check_branch
      %41 = sbr.rel (0) target = $region21
    $region20: #{bert_classifier_forward.5} parent=1 // pred_region
      %s43 = ssub.s32 1024, 1024
      %44 = vsyncadd [#allocation5], %s43
      %s45 = sshll.u32 [#allocation4], 4
      %s46 = int_to_ptr.vmem [resolvable:$true] %s45
      %51 = dma.hbm_to_vmem [thread:$0]  %s4, 1024, %s46, [#allocation5], 64, 64, 4
    $region21: #{bert_classifier_forward.5} parent=1 // pred_fallthru
      _
    // Predicated region
    $region22: #{bert_classifier_forward.5} parent=1 // pred_check
      _
    $region23: #{bert_classifier_forward.5} parent=1 // pred_check_branch
      %53 = sbr.rel (0) target = $region25
    $region24: #{bert_classifier_forward.5} parent=1 // pred_region
      _
    $region25: #{bert_classifier_forward.5} parent=1 // pred_fallthru
      _
    // Predicated region
    $region26: #{bert_classifier_forward.5} parent=1 // pred_check
      _
    $region27: #{bert_classifier_forward.5} parent=1 // pred_check_branch
      %55 = sbr.rel (0) target = $region29
    $region28: #{bert_classifier_forward.5} parent=1 // pred_region
      %s57 = ssub.s32 16, 16
      %58 = vsyncadd [#allocation5], %s57
      %s60 = sshll.u32 [#allocation6], 4
      %s61 = int_to_ptr.vmem [resolvable:$true] %s60
      %63 = dma.hbm_to_vmem [thread:$0]  %s6, 16, %s61, [#allocation5]
    $region29: #{bert_classifier_forward.5} parent=1 // pred_fallthru
      _
    // Predicated region
    $region30: #{bert_classifier_forward.5} parent=1 // pred_check
      _
    $region31: #{bert_classifier_forward.5} parent=1 // pred_check_branch
      %65 = sbr.rel (0) target = $region33
    $region32: #{bert_classifier_forward.5} parent=1 // pred_region
      %s67 = ssub.s32 16, 16
      %68 = vsyncadd [#allocation8], %s67
      %s70 = sshll.u32 [#allocation7], 4
      %s71 = int_to_ptr.vmem [resolvable:$true] %s70
      %73 = dma.hbm_to_vmem [thread:$0]  %s7, 16, %s71, [#allocation8]
    $region33: #{bert_classifier_forward.5} parent=1 // pred_fallthru
      _
    // Predicated region
    $region34: #{bert_classifier_forward.5} parent=1 // pred_check
      _
    $region35: #{bert_classifier_forward.5} parent=1 // pred_check_branch
      %75 = sbr.rel (0) target = $region37
    $region36: #{bert_classifier_forward.5} parent=1 // pred_region
      _
    $region37: #{bert_classifier_forward.5} parent=1 // pred_fallthru
      _
    // Predicated region
    $region38: #{bert_classifier_forward.5} parent=1 // pred_check
      _
    $region39: #{bert_classifier_forward.5} parent=1 // pred_check_branch
      %77 = sbr.rel (0) target = $region41
    $region40: #{bert_classifier_forward.5} parent=1 // pred_region
      %s79 = ssub.s32 32, 32
      %80 = vsyncadd [#allocation8], %s79
      %s82 = sshll.u32 [#allocation9], 4
      %s83 = int_to_ptr.vmem [resolvable:$true] %s82
      %85 = dma.hbm_to_vmem [thread:$0]  %s9, 32, %s83, [#allocation8]
    $region41: #{bert_classifier_forward.5} parent=1 // pred_fallthru
      _
    // Predicated region
    $region42: #{bert_classifier_forward.5} parent=1 // pred_check
      _
    $region43: #{bert_classifier_forward.5} parent=1 // pred_check_branch
      %87 = sbr.rel (0) target = $region45
    $region44: #{bert_classifier_forward.5} parent=1 // pred_region
      %s89 = ssub.s32 2048, 2048
      %90 = vsyncadd [#allocation11], %s89
      %s91 = sshll.u32 [#allocation10], 4
      %s92 = int_to_ptr.vmem [resolvable:$true] %s91
      %97 = dma.hbm_to_vmem [thread:$0]  %s10, 2048, %s92, [#allocation11], 64, 64, 4
    $region45: #{bert_classifier_forward.5} parent=1 // pred_fallthru
      _
    // Predicated region
    $region46: #{bert_classifier_forward.5} parent=1 // pred_check
      _
    $region47: #{bert_classifier_forward.5} parent=1 // pred_check_branch
      %99 = sbr.rel (0) target = $region49
    $region48: #{bert_classifier_forward.5} parent=1 // pred_region
      %s101 = ssub.s32 16, 16
      %102 = vsyncadd [#allocation11], %s101
      %s104 = sshll.u32 [#allocation12], 4
      %s105 = int_to_ptr.vmem [resolvable:$true] %s104
      %107 = dma.hbm_to_vmem [thread:$0]  %s11, 16, %s105, [#allocation11]
    $region49: #{bert_classifier_forward.5} parent=1 // pred_fallthru
      _
    // Predicated region
    $region50: #{bert_classifier_forward.5} parent=1 // pred_check
      _
    $region51: #{bert_classifier_forward.5} parent=1 // pred_check_branch
      %109 = sbr.rel (0) target = $region53
    $region52: #{bert_classifier_forward.5} parent=1 // pred_region
      %s111 = ssub.s32 16, 16
      %112 = vsyncadd [#allocation14], %s111
      %s114 = sshll.u32 [#allocation13], 4
      %s115 = int_to_ptr.vmem [resolvable:$true] %s114
      %117 = dma.hbm_to_vmem [thread:$0]  %s12, 16, %s115, [#allocation14]
    $region53: #{bert_classifier_forward.5} parent=1 // pred_fallthru
      _
    // Predicated region
    $region54: #{bert_classifier_forward.5} parent=1 // pred_check
      _
    $region55: #{bert_classifier_forward.5} parent=1 // pred_check_branch
      %119 = sbr.rel (0) target = $region57
    $region56: #{bert_classifier_forward.5} parent=1 // pred_region
      %s121 = ssub.s32 16, 16
      %122 = vsyncadd [#allocation14], %s121
      %s124 = sshll.u32 [#allocation15], 4
      %s125 = int_to_ptr.vmem [resolvable:$true] %s124
      %127 = dma.hbm_to_vmem [thread:$0]  %s13, 16, %s125, [#allocation14]
    $region57: #{bert_classifier_forward.5} parent=1 // pred_fallthru
      _
    // Predicated region
    $region58: #{bert_classifier_forward.5} parent=1 // pred_check
      _
    $region59: #{bert_classifier_forward.5} parent=1 // pred_check_branch
      %129 = sbr.rel (0) target = $region61
    $region60: #{bert_classifier_forward.5} parent=1 // pred_region
      %130 = dma.done [#allocation3], 48
    $region61: #{bert_classifier_forward.5} parent=1 // pred_fallthru
      _
    // Predicated region
    $region62: #{bert_classifier_forward.5} parent=1 // pred_check
      _
    $region63: #{bert_classifier_forward.5} parent=1 // pred_check_branch
      %132 = sbr.rel (0) target = $region65
    $region64: #{bert_classifier_forward.5} parent=1 // pred_region
      %133 = dma.done [#allocation5], 1024
    $region65: #{bert_classifier_forward.5} parent=1 // pred_fallthru
      _
    // Predicated region
    $region66: #{bert_classifier_forward.5} parent=1 // pred_check
      _
    $region67: #{bert_classifier_forward.5} parent=1 // pred_check_branch
      %135 = sbr.rel (0) target = $region69
    $region68: #{bert_classifier_forward.5} parent=1 // pred_region
      %136 = dma.done [#allocation5], 16
    $region69: #{bert_classifier_forward.5} parent=1 // pred_fallthru
      _
    // Predicated region
    $region70: #{bert_classifier_forward.5} parent=1 // pred_check
      _
    $region71: #{bert_classifier_forward.5} parent=1 // pred_check_branch
      %138 = sbr.rel (0) target = $region73
    $region72: #{bert_classifier_forward.5} parent=1 // pred_region
      %139 = dma.done [#allocation8], 16
    $region73: #{bert_classifier_forward.5} parent=1 // pred_fallthru
      _
    // Predicated region
    $region74: #{bert_classifier_forward.5} parent=1 // pred_check
      _
    $region75: #{bert_classifier_forward.5} parent=1 // pred_check_branch
      %141 = sbr.rel (0) target = $region77
    $region76: #{bert_classifier_forward.5} parent=1 // pred_region
      %142 = dma.done [#allocation8], 32
    $region77: #{bert_classifier_forward.5} parent=1 // pred_fallthru
      _
    // Predicated region
    $region78: #{bert_classifier_forward.5} parent=1 // pred_check
      _
    $region79: #{bert_classifier_forward.5} parent=1 // pred_check_branch
      %144 = sbr.rel (0) target = $region81
    $region80: #{bert_classifier_forward.5} parent=1 // pred_region
      %145 = dma.done [#allocation11], 2048
    $region81: #{bert_classifier_forward.5} parent=1 // pred_fallthru
      _
    // Predicated region
    $region82: #{bert_classifier_forward.5} parent=1 // pred_check
      _
    $region83: #{bert_classifier_forward.5} parent=1 // pred_check_branch
      %147 = sbr.rel (0) target = $region85
    $region84: #{bert_classifier_forward.5} parent=1 // pred_region
      %148 = dma.done [#allocation11], 16
    $region85: #{bert_classifier_forward.5} parent=1 // pred_fallthru
      _
    // Predicated region
    $region86: #{bert_classifier_forward.5} parent=1 // pred_check
      _
    $region87: #{bert_classifier_forward.5} parent=1 // pred_check_branch
      %150 = sbr.rel (0) target = $region89
    $region88: #{bert_classifier_forward.5} parent=1 // pred_region
      %151 = dma.done [#allocation14], 16
    $region89: #{bert_classifier_forward.5} parent=1 // pred_fallthru
      _
    // Predicated region
    $region90: #{bert_classifier_forward.5} parent=1 // pred_check
      _
    $region91: #{bert_classifier_forward.5} parent=1 // pred_check_branch
      %153 = sbr.rel (0) target = $region93
    $region92: #{bert_classifier_forward.5} parent=1 // pred_region
      %154 = dma.done [#allocation14], 16
    $region93: #{bert_classifier_forward.5} parent=1 // pred_fallthru
      _
    %v156 = vld [vmem:[%s0] sm:$0xff]
    %v157 = vld [vmem:[%s0 + $0x8] sm:$0xff]
    %v158 = vpack.c.bf16 %v157, %v156
    %v159 = vld [vmem:[%s2] sm:$0xff]
    %v160 = vld [vmem:[%s2 + $0x8] sm:$0xf]
    %v161 = vld [vmem:[%s2 + $0xc] sm:$0xff]
    %v162 = vld [vmem:[%s2 + $0x14] sm:$0xf]
    %v163 = vld [vmem:[%s2 + $0x18] sm:$0xff]
    %v164 = vld [vmem:[%s2 + $0x20] sm:$0xf]
    %v165 = vld [vmem:[%s2 + $0x24] sm:$0xff]
    %v166 = vld [vmem:[%s2 + $0x2c] sm:$0xf]
    %v167 = vld [vmem:[%s2 + $0x30] sm:$0xff]
    %v168 = vld [vmem:[%s2 + $0x38] sm:$0xf]
    %v169 = vld [vmem:[%s2 + $0x3c] sm:$0xff]
    %v170 = vld [vmem:[%s2 + $0x44] sm:$0xf]
    %v171 = vld [vmem:[%s2 + $0x48] sm:$0xff]
    %v172 = vld [vmem:[%s2 + $0x50] sm:$0xf]
    %v173 = vld [vmem:[%s2 + $0x54] sm:$0xff]
    %v174 = vld [vmem:[%s2 + $0x5c] sm:$0xf]
    %v175 = vld [vmem:[%s2 + $0x60] sm:$0xff]
    %v176 = vld [vmem:[%s2 + $0x68] sm:$0xf]
    %v177 = vld [vmem:[%s2 + $0x6c] sm:$0xff]
    %v178 = vld [vmem:[%s2 + $0x74] sm:$0xf]
    %v179 = vld [vmem:[%s2 + $0x78] sm:$0xff]
    %v180 = vld [vmem:[%s2 + $0x80] sm:$0xf]
    %v181 = vld [vmem:[%s2 + $0x84] sm:$0xff]
    %v182 = vld [vmem:[%s2 + $0x8c] sm:$0xf]
    %v183 = vld [vmem:[%s2 + $0x90] sm:$0xff]
    %v184 = vld [vmem:[%s2 + $0x98] sm:$0xf]
    %v185 = vld [vmem:[%s2 + $0x9c] sm:$0xff]
    %v186 = vld [vmem:[%s2 + $0xa4] sm:$0xf]
    %v187 = vld [vmem:[%s2 + $0xa8] sm:$0xff]
    %v188 = vld [vmem:[%s2 + $0xb0] sm:$0xf]
    %v189 = vld [vmem:[%s2 + $0xb4] sm:$0xff]
    %v190 = vld [vmem:[%s2 + $0xbc] sm:$0xf]
    %v191 = vld [vmem:[#allocation2] sm:$0x7]
    %v193 = vlaneseq
    %v194 = vshrl.u32 %v193, 7
    %v195 = vsub.s32 0, %v194
    %v196 = vrot.slane %v191, %v195
    %v197 = vlaneseq
    %v198 = vshrl.u32 %v197, 7
    %v199 = vsub.s32 1, %v198
    %v200 = vrot.slane %v191, %v199
    %v201 = vlaneseq
    %v202 = vshrl.u32 %v201, 7
    %v203 = vsub.s32 2, %v202
    %v204 = vrot.slane %v191, %v203
    %v240 = vunpack.c.l.b16 %v159
    %v241 = vunpack.c.h.b16 %v159
    %v242 = vunpack.c.l.b16 %v160
    %v243 = vunpack.c.l.b16 %v161
    %v244 = vunpack.c.h.b16 %v161
    %v245 = vunpack.c.l.b16 %v162
    %v246 = vunpack.c.l.b16 %v163
    %v247 = vunpack.c.h.b16 %v163
    %v248 = vunpack.c.l.b16 %v164
    %v249 = vunpack.c.l.b16 %v165
    %v250 = vunpack.c.h.b16 %v165
    %v251 = vunpack.c.l.b16 %v166
    %v252 = vunpack.c.l.b16 %v167
    %v253 = vunpack.c.h.b16 %v167
    %v254 = vunpack.c.l.b16 %v168
    %v255 = vunpack.c.l.b16 %v169
    %v256 = vunpack.c.h.b16 %v169
    %v257 = vunpack.c.l.b16 %v170
    %v258 = vunpack.c.l.b16 %v171
    %v259 = vunpack.c.h.b16 %v171
    %v260 = vunpack.c.l.b16 %v172
    %v261 = vunpack.c.l.b16 %v173
    %v262 = vunpack.c.h.b16 %v173
    %v263 = vunpack.c.l.b16 %v174
    %v264 = vunpack.c.l.b16 %v175
    %v265 = vunpack.c.h.b16 %v175
    %v266 = vunpack.c.l.b16 %v176
    %v267 = vunpack.c.l.b16 %v177
    %v268 = vunpack.c.h.b16 %v177
    %v269 = vunpack.c.l.b16 %v178
    %v270 = vunpack.c.l.b16 %v179
    %v271 = vunpack.c.h.b16 %v179
    %v272 = vunpack.c.l.b16 %v180
    %v273 = vunpack.c.l.b16 %v181
    %v274 = vunpack.c.h.b16 %v181
    %v275 = vunpack.c.l.b16 %v182
    %v276 = vunpack.c.l.b16 %v183
    %v277 = vunpack.c.h.b16 %v183
    %v278 = vunpack.c.l.b16 %v184
    %v279 = vunpack.c.l.b16 %v185
    %v280 = vunpack.c.h.b16 %v185
    %v281 = vunpack.c.l.b16 %v186
    %v282 = vunpack.c.l.b16 %v187
    %v283 = vunpack.c.h.b16 %v187
    %v284 = vunpack.c.l.b16 %v188
    %v285 = vunpack.c.l.b16 %v189
    %v286 = vunpack.c.h.b16 %v189
    %v287 = vunpack.c.l.b16 %v190
    %v288 = vpack.c.b16 %v243, %v240
    %v289 = vpack.c.b16 %v244, %v241
    %v290 = vpack.c.b16 %v245, %v242
    %v291 = vpack.c.b16 %v249, %v246
    %v292 = vpack.c.b16 %v250, %v247
    %v293 = vpack.c.b16 %v251, %v248
    %v294 = vpack.c.b16 %v255, %v252
    %v295 = vpack.c.b16 %v256, %v253
    %v296 = vpack.c.b16 %v257, %v254
    %v297 = vpack.c.b16 %v261, %v258
    %v298 = vpack.c.b16 %v262, %v259
    %v299 = vpack.c.b16 %v263, %v260
    %v300 = vpack.c.b16 %v267, %v264
    %v301 = vpack.c.b16 %v268, %v265
    %v302 = vpack.c.b16 %v269, %v266
    %v303 = vpack.c.b16 %v273, %v270
    %v304 = vpack.c.b16 %v274, %v271
    %v305 = vpack.c.b16 %v275, %v272
    %v306 = vpack.c.b16 %v279, %v276
    %v307 = vpack.c.b16 %v280, %v277
    %v308 = vpack.c.b16 %v281, %v278
    %v309 = vpack.c.b16 %v285, %v282
    %v310 = vpack.c.b16 %v286, %v283
    %v311 = vpack.c.b16 %v287, %v284
    %336 = vmatprep.subr.bf16.mxu0 %v289
    %337 = vmatpush1.bf16.msra.mxu0 %v288
    %338 = vmatprep.subr.bf16.mxu0 %v292
    %339 = vmatpush1.bf16.msra.mxu0 %v291
    %340 = vmatprep.subr.bf16.mxu0 %v295
    %341 = vmatpush1.bf16.msra.mxu0 %v294
    %342 = vmatprep.subr.bf16.mxu0 %v298
    %343 = vmatpush1.bf16.msra.mxu0 %v297
    %344 = vmatprep.subr.bf16.mxu0 %v301
    %345 = vmatpush1.bf16.msra.mxu0 %v300
    %346 = vmatprep.subr.bf16.mxu0 %v304
    %347 = vmatpush1.bf16.msra.mxu0 %v303
    %348 = vmatprep.subr.bf16.mxu0 %v307
    %349 = vmatpush1.bf16.msra.mxu0 %v306
    %350 = vmatprep.subr.bf16.mxu0 %v310
    %351 = vmatpush1.bf16.msra.mxu0 %v309
    %352 = vmatprep.subr.bf16.mxu0 0
    %353 = vmatpush1.bf16.msra.mxu0 0
    %354 = vmatprep.subr.bf16.mxu0 0
    %355 = vmatpush1.bf16.msra.mxu0 0
    %356 = vmatprep.subr.bf16.mxu0 0
    %357 = vmatpush1.bf16.msra.mxu0 0
    %358 = vmatprep.subr.bf16.mxu0 0
    %359 = vmatpush1.bf16.msra.mxu0 0
    %360 = vmatprep.subr.bf16.mxu0 0
    %361 = vmatpush1.bf16.msra.mxu0 0
    %362 = vmatprep.subr.bf16.mxu0 0
    %363 = vmatpush1.bf16.msra.mxu0 0
    %364 = vmatprep.subr.bf16.mxu0 0
    %365 = vmatpush1.bf16.msra.mxu0 0
    %366 = vmatprep.subr.bf16.mxu0 0
    %367 = vmatpush1.bf16.msra.mxu0 0
    %368 = vmatprep.mubr.bf16.mxu0 0
    %369 = vmatmul.mubr.bf16.gmra.mrb[0].mxu0 %v158
    %v370 = vpop.f32.mrb[0].mxu0
    %v371 = vadd.f32 %v196, %v370
    %v372 = vpop.f32.mrb[0].mxu0
    %v373 = vadd.f32 %v200, %v372
    %v374 = vpop.f32.mrb[0].mxu0
    %v375 = vadd.f32 %v196, %v374
    %v376 = vpop.f32.mrb[0].mxu0
    %v377 = vadd.f32 %v200, %v376
    %378 = vdwg.mxu0
    %379 = vmatprep.subr.bf16.mxu0 0
    %380 = vmatpush1.bf16.msra.mxu0 %v290
    %381 = vmatprep.subr.bf16.mxu0 0
    %382 = vmatpush1.bf16.msra.mxu0 %v293
    %383 = vmatprep.subr.bf16.mxu0 0
    %384 = vmatpush1.bf16.msra.mxu0 %v296
    %385 = vmatprep.subr.bf16.mxu0 0
    %386 = vmatpush1.bf16.msra.mxu0 %v299
    %387 = vmatprep.subr.bf16.mxu0 0
    %388 = vmatpush1.bf16.msra.mxu0 %v302
    %389 = vmatprep.subr.bf16.mxu0 0
    %390 = vmatpush1.bf16.msra.mxu0 %v305
    %391 = vmatprep.subr.bf16.mxu0 0
    %392 = vmatpush1.bf16.msra.mxu0 %v308
    %393 = vmatprep.subr.bf16.mxu0 0
    %394 = vmatpush1.bf16.msra.mxu0 %v311
    %395 = vmatprep.subr.bf16.mxu0 0
    %396 = vmatpush1.bf16.msra.mxu0 0
    %397 = vmatprep.subr.bf16.mxu0 0
    %398 = vmatpush1.bf16.msra.mxu0 0
    %399 = vmatprep.subr.bf16.mxu0 0
    %400 = vmatpush1.bf16.msra.mxu0 0
    %401 = vmatprep.subr.bf16.mxu0 0
    %402 = vmatpush1.bf16.msra.mxu0 0
    %403 = vmatprep.subr.bf16.mxu0 0
    %404 = vmatpush1.bf16.msra.mxu0 0
    %405 = vmatprep.subr.bf16.mxu0 0
    %406 = vmatpush1.bf16.msra.mxu0 0
    %407 = vmatprep.subr.bf16.mxu0 0
    %408 = vmatpush1.bf16.msra.mxu0 0
    %409 = vmatprep.subr.bf16.mxu0 0
    %410 = vmatpush1.bf16.msra.mxu0 0
    %411 = vmatprep.mubr.bf16.mxu0 0
    %412 = vmatmul.mubr.bf16.gmra.mrb[0].mxu0 %v158
    %v413 = vpop.f32.mrb[0].mxu0
    %v414 = vadd.f32 %v204, %v413
    %v415 = vpop.f32.mrb[0].mxu0
    %v416 = vpop.f32.mrb[0].mxu0
    %v417 = vadd.f32 %v204, %v416
    %v418 = vpop.f32.mrb[0].mxu0
    %419 = vdwg.mxu0
    %v420 = vld [vmem:[%s1] sm:$0x3]
    %v421 = vpack.c.bf16 %v371, %v371
    %v422 = vpack.c.bf16 %v373, %v373
    %v423 = vpack.c.bf16 %v414, %v414
    %vm424 = vcmask 523264
    %v426 = vsel %vm424, %v421, 0
    %v429 = vsel %vm424, %v422, 0
    %431 = vmatprep.subr.bf16.mxu0 0
    %432 = vmatpush1.bf16.xpose.msra.mxu0 %v429
    %433 = vmatprep.subr.bf16.mxu0 0
    %434 = vmatpush1.bf16.xpose.msra.mxu0 0
    %435 = vmatprep.subr.bf16.mxu0 0
    %436 = vmatpush1.bf16.xpose.msra.mxu0 0
    %437 = vmatprep.subr.bf16.mxu0 0
    %438 = vmatpush1.bf16.xpose.msra.mxu0 0
    %439 = vmatprep.subr.bf16.mxu0 0
    %440 = vmatpush1.bf16.xpose.msra.mxu0 0
    %441 = vmatprep.subr.bf16.mxu0 0
    %442 = vmatpush1.bf16.xpose.msra.mxu0 0
    %443 = vmatprep.subr.bf16.mxu0 0
    %444 = vmatpush1.bf16.xpose.msra.mxu0 0
    %445 = vmatprep.subr.bf16.mxu0 0
    %446 = vmatpush1.bf16.xpose.msra.mxu0 0
    %447 = vmatprep.subr.bf16.mxu0 0
    %448 = vmatpush1.bf16.xpose.msra.mxu0 0
    %449 = vmatprep.subr.bf16.mxu0 0
    %450 = vmatpush1.bf16.xpose.msra.mxu0 0
    %451 = vmatprep.subr.bf16.mxu0 0
    %452 = vmatpush1.bf16.xpose.msra.mxu0 0
    %453 = vmatprep.subr.bf16.mxu0 0
    %454 = vmatpush1.bf16.xpose.msra.mxu0 0
    %455 = vmatprep.subr.bf16.mxu0 0
    %456 = vmatpush1.bf16.xpose.msra.mxu0 0
    %457 = vmatprep.subr.bf16.mxu0 0
    %458 = vmatpush1.bf16.xpose.msra.mxu0 0
    %459 = vmatprep.subr.bf16.mxu0 0
    %460 = vmatpush1.bf16.xpose.msra.mxu0 0
    %461 = vmatprep.subr.bf16.mxu0 0
    %462 = vmatpush1.bf16.xpose.msra.mxu0 0
    %463 = vmatprep.mubr.bf16.mxu0 0
    %464 = vmatmul.mubr.bf16.gmra.mrb[0].mxu0 %v426
    %v465 = vpop.f32.mrb[0].mxu0
    %v466 = vadd.f32 0.0, %v465
    %v467 = vpop.f32.mrb[0].mxu0
    %v468 = vpop.f32.mrb[0].mxu0
    %v469 = vpop.f32.mrb[0].mxu0
    %470 = vdwg.mxu0
    %v471 = vmul.f32 %v466, 0.125
    %v472 = vlaneseq
    %v473 = vshrl.u32 %v472, 7
    %v474 = vsub.s32 0, %v473
    %v475 = vrot.slane %v420, %v474
    %v476 = vadd.f32 %v471, %v475
    %vm477 = vcmask 64512
    %v478 = vsel %vm477, %v476, -inf
    %479 = vmax.xlane.f32.xlu0 %v478
    %v480 = vpop.xlane.xlu0 %479
    %v481 = vsub.f32 %v476, %v480
    %v482 = vmul.f32 %v481, 1.442695
    %v483 = vpow.pop %v482
    %v484 = vsel %vm477, %v483, 0.0
    %485 = vadd.xlane.f32.xlu0 %v484
    %v486 = vpop.xlane.xlu0 %485
    %v487 = vrcp.pop %v486
    %v488 = vmul.f32 %v483, %v487
    %v489 = vpack.c.bf16 %v488, %v488
    %v491 = vsel %vm477, %v489, 0
    %vm493 = vcmask 1043456
    %v495 = vsel %vm493, %v423, 0
    %497 = vmatprep.subr.bf16.mxu0 0
    %498 = vmatpush1.bf16.msra.mxu0 %v495
    %499 = vmatprep.subr.bf16.mxu0 0
    %500 = vmatpush1.bf16.msra.mxu0 0
    %501 = vmatprep.subr.bf16.mxu0 0
    %502 = vmatpush1.bf16.msra.mxu0 0
    %503 = vmatprep.subr.bf16.mxu0 0
    %504 = vmatpush1.bf16.msra.mxu0 0
    %505 = vmatprep.subr.bf16.mxu0 0
    %506 = vmatpush1.bf16.msra.mxu0 0
    %507 = vmatprep.subr.bf16.mxu0 0
    %508 = vmatpush1.bf16.msra.mxu0 0
    %509 = vmatprep.subr.bf16.mxu0 0
    %510 = vmatpush1.bf16.msra.mxu0 0
    %511 = vmatprep.subr.bf16.mxu0 0
    %512 = vmatpush1.bf16.msra.mxu0 0
    %513 = vmatprep.subr.bf16.mxu0 0
    %514 = vmatpush1.bf16.msra.mxu0 0
    %515 = vmatprep.subr.bf16.mxu0 0
    %516 = vmatpush1.bf16.msra.mxu0 0
    %517 = vmatprep.subr.bf16.mxu0 0
    %518 = vmatpush1.bf16.msra.mxu0 0
    %519 = vmatprep.subr.bf16.mxu0 0
    %520 = vmatpush1.bf16.msra.mxu0 0
    %521 = vmatprep.subr.bf16.mxu0 0
    %522 = vmatpush1.bf16.msra.mxu0 0
    %523 = vmatprep.subr.bf16.mxu0 0
    %524 = vmatpush1.bf16.msra.mxu0 0
    %525 = vmatprep.subr.bf16.mxu0 0
    %526 = vmatpush1.bf16.msra.mxu0 0
    %527 = vmatprep.subr.bf16.mxu0 0
    %528 = vmatpush1.bf16.msra.mxu0 0
    %529 = vmatprep.mubr.bf16.mxu0 0
    %530 = vmatmul.mubr.bf16.gmra.mrb[0].mxu0 %v491
    %v531 = vpop.f32.mrb[0].mxu0
    %v532 = vadd.f32 0.0, %v531
    %v533 = vpop.f32.mrb[0].mxu0
    %v534 = vpop.f32.mrb[0].mxu0
    %v535 = vpop.f32.mrb[0].mxu0
    %536 = vdwg.mxu0
    %538 = vrot.lane.b32.xlu0 %v421, 64
    %v539 = vpop.permute.xlu0 %538
    %541 = vrot.lane.b32.xlu0 %v422, 64
    %v542 = vpop.permute.xlu0 %541
    %v544 = vsel %vm424, %v539, 0
    %v547 = vsel %vm424, %v542, 0
    %549 = vmatprep.subr.bf16.mxu0 0
    %550 = vmatpush1.bf16.xpose.msra.mxu0 %v547
    %551 = vmatprep.subr.bf16.mxu0 0
    %552 = vmatpush1.bf16.xpose.msra.mxu0 0
    %553 = vmatprep.subr.bf16.mxu0 0
    %554 = vmatpush1.bf16.xpose.msra.mxu0 0
    %555 = vmatprep.subr.bf16.mxu0 0
    %556 = vmatpush1.bf16.xpose.msra.mxu0 0
    %557 = vmatprep.subr.bf16.mxu0 0
    %558 = vmatpush1.bf16.xpose.msra.mxu0 0
    %559 = vmatprep.subr.bf16.mxu0 0
    %560 = vmatpush1.bf16.xpose.msra.mxu0 0
    %561 = vmatprep.subr.bf16.mxu0 0
    %562 = vmatpush1.bf16.xpose.msra.mxu0 0
    %563 = vmatprep.subr.bf16.mxu0 0
    %564 = vmatpush1.bf16.xpose.msra.mxu0 0
    %565 = vmatprep.subr.bf16.mxu0 0
    %566 = vmatpush1.bf16.xpose.msra.mxu0 0
    %567 = vmatprep.subr.bf16.mxu0 0
    %568 = vmatpush1.bf16.xpose.msra.mxu0 0
    %569 = vmatprep.subr.bf16.mxu0 0
    %570 = vmatpush1.bf16.xpose.msra.mxu0 0
    %571 = vmatprep.subr.bf16.mxu0 0
    %572 = vmatpush1.bf16.xpose.msra.mxu0 0
    %573 = vmatprep.subr.bf16.mxu0 0
    %574 = vmatpush1.bf16.xpose.msra.mxu0 0
    %575 = vmatprep.subr.bf16.mxu0 0
    %576 = vmatpush1.bf16.xpose.msra.mxu0 0
    %577 = vmatprep.subr.bf16.mxu0 0
    %578 = vmatpush1.bf16.xpose.msra.mxu0 0
    %579 = vmatprep.subr.bf16.mxu0 0
    %580 = vmatpush1.bf16.xpose.msra.mxu0 0
    %581 = vmatprep.mubr.bf16.mxu0 0
    %582 = vmatmul.mubr.bf16.gmra.mrb[0].mxu0 %v544
    %v583 = vpop.f32.mrb[0].mxu0
    %v584 = vadd.f32 0.0, %v583
    %v585 = vpop.f32.mrb[0].mxu0
    %v586 = vpop.f32.mrb[0].mxu0
    %v587 = vpop.f32.mrb[0].mxu0
    %588 = vdwg.mxu0
    %v589 = vmul.f32 %v584, 0.125
    %v590 = vadd.f32 %v589, %v475
    %v591 = vsel %vm477, %v590, -inf
    %592 = vmax.xlane.f32.xlu0 %v591
    %v593 = vpop.xlane.xlu0 %592
    %v594 = vsub.f32 %v590, %v593
    %v595 = vmul.f32 %v594, 1.442695
    %v596 = vpow.pop %v595
    %v597 = vsel %vm477, %v596, 0.0
    %598 = vadd.xlane.f32.xlu0 %v597
    %v599 = vpop.xlane.xlu0 %598
    %v600 = vrcp.pop %v599
    %v601 = vmul.f32 %v596, %v600
    %v602 = vpack.c.bf16 %v601, %v601
    %604 = vrot.lane.b32.xlu0 %v423, 64
    %v605 = vpop.permute.xlu0 %604
    %v607 = vsel %vm477, %v602, 0
    %v610 = vsel %vm493, %v605, 0
    %612 = vmatprep.subr.bf16.mxu0 0
    %613 = vmatpush1.bf16.msra.mxu0 %v610
    %614 = vmatprep.subr.bf16.mxu0 0
    %615 = vmatpush1.bf16.msra.mxu0 0
    %616 = vmatprep.subr.bf16.mxu0 0
    %617 = vmatpush1.bf16.msra.mxu0 0
    %618 = vmatprep.subr.bf16.mxu0 0
    %619 = vmatpush1.bf16.msra.mxu0 0
    %620 = vmatprep.subr.bf16.mxu0 0
    %621 = vmatpush1.bf16.msra.mxu0 0
    %622 = vmatprep.subr.bf16.mxu0 0
    %623 = vmatpush1.bf16.msra.mxu0 0
    %624 = vmatprep.subr.bf16.mxu0 0
    %625 = vmatpush1.bf16.msra.mxu0 0
    %626 = vmatprep.subr.bf16.mxu0 0
    %627 = vmatpush1.bf16.msra.mxu0 0
    %628 = vmatprep.subr.bf16.mxu0 0
    %629 = vmatpush1.bf16.msra.mxu0 0
    %630 = vmatprep.subr.bf16.mxu0 0
    %631 = vmatpush1.bf16.msra.mxu0 0
    %632 = vmatprep.subr.bf16.mxu0 0
    %633 = vmatpush1.bf16.msra.mxu0 0
    %634 = vmatprep.subr.bf16.mxu0 0
    %635 = vmatpush1.bf16.msra.mxu0 0
    %636 = vmatprep.subr.bf16.mxu0 0
    %637 = vmatpush1.bf16.msra.mxu0 0
    %638 = vmatprep.subr.bf16.mxu0 0
    %639 = vmatpush1.bf16.msra.mxu0 0
    %640 = vmatprep.subr.bf16.mxu0 0
    %641 = vmatpush1.bf16.msra.mxu0 0
    %642 = vmatprep.subr.bf16.mxu0 0
    %643 = vmatpush1.bf16.msra.mxu0 0
    %644 = vmatprep.mubr.bf16.mxu0 0
    %645 = vmatmul.mubr.bf16.gmra.mrb[0].mxu0 %v607
    %v646 = vpop.f32.mrb[0].mxu0
    %v647 = vadd.f32 0.0, %v646
    %v648 = vpop.f32.mrb[0].mxu0
    %v649 = vpop.f32.mrb[0].mxu0
    %v650 = vpop.f32.mrb[0].mxu0
    %651 = vdwg.mxu0
    %653 = vrot.lane.b32.xlu0 %v647, 64
    %v654 = vpop.permute.xlu0 %653
    %v656 = vsel %vm424, %v532, %v654
    %v657 = vpack.c.bf16 %v375, %v375
    %v658 = vpack.c.bf16 %v377, %v377
    %v659 = vpack.c.bf16 %v417, %v417
    %v661 = vsel %vm424, %v657, 0
    %v664 = vsel %vm424, %v658, 0
    %666 = vmatprep.subr.bf16.mxu0 0
    %667 = vmatpush1.bf16.xpose.msra.mxu0 %v664
    %668 = vmatprep.subr.bf16.mxu0 0
    %669 = vmatpush1.bf16.xpose.msra.mxu0 0
    %670 = vmatprep.subr.bf16.mxu0 0
    %671 = vmatpush1.bf16.xpose.msra.mxu0 0
    %672 = vmatprep.subr.bf16.mxu0 0
    %673 = vmatpush1.bf16.xpose.msra.mxu0 0
    %674 = vmatprep.subr.bf16.mxu0 0
    %675 = vmatpush1.bf16.xpose.msra.mxu0 0
    %676 = vmatprep.subr.bf16.mxu0 0
    %677 = vmatpush1.bf16.xpose.msra.mxu0 0
    %678 = vmatprep.subr.bf16.mxu0 0
    %679 = vmatpush1.bf16.xpose.msra.mxu0 0
    %680 = vmatprep.subr.bf16.mxu0 0
    %681 = vmatpush1.bf16.xpose.msra.mxu0 0
    %682 = vmatprep.subr.bf16.mxu0 0
    %683 = vmatpush1.bf16.xpose.msra.mxu0 0
    %684 = vmatprep.subr.bf16.mxu0 0
    %685 = vmatpush1.bf16.xpose.msra.mxu0 0
    %686 = vmatprep.subr.bf16.mxu0 0
    %687 = vmatpush1.bf16.xpose.msra.mxu0 0
    %688 = vmatprep.subr.bf16.mxu0 0
    %689 = vmatpush1.bf16.xpose.msra.mxu0 0
    %690 = vmatprep.subr.bf16.mxu0 0
    %691 = vmatpush1.bf16.xpose.msra.mxu0 0
    %692 = vmatprep.subr.bf16.mxu0 0
    %693 = vmatpush1.bf16.xpose.msra.mxu0 0
    %694 = vmatprep.subr.bf16.mxu0 0
    %695 = vmatpush1.bf16.xpose.msra.mxu0 0
    %696 = vmatprep.subr.bf16.mxu0 0
    %697 = vmatpush1.bf16.xpose.msra.mxu0 0
    %698 = vmatprep.mubr.bf16.mxu0 0
    %699 = vmatmul.mubr.bf16.gmra.mrb[0].mxu0 %v661
    %v700 = vpop.f32.mrb[0].mxu0
    %v701 = vadd.f32 0.0, %v700
    %v702 = vpop.f32.mrb[0].mxu0
    %v703 = vpop.f32.mrb[0].mxu0
    %v704 = vpop.f32.mrb[0].mxu0
    %705 = vdwg.mxu0
    %v706 = vmul.f32 %v701, 0.125
    %v707 = vlaneseq
    %v708 = vshrl.u32 %v707, 7
    %v709 = vsub.s32 1, %v708
    %v710 = vrot.slane %v420, %v709
    %v711 = vadd.f32 %v706, %v710
    %v712 = vsel %vm477, %v711, -inf
    %713 = vmax.xlane.f32.xlu0 %v712
    %v714 = vpop.xlane.xlu0 %713
    %v715 = vsub.f32 %v711, %v714
    %v716 = vmul.f32 %v715, 1.442695
    %v717 = vpow.pop %v716
    %v718 = vsel %vm477, %v717, 0.0
    %719 = vadd.xlane.f32.xlu0 %v718
    %v720 = vpop.xlane.xlu0 %719
    %v721 = vrcp.pop %v720
    %v722 = vmul.f32 %v717, %v721
    %v723 = vpack.c.bf16 %v722, %v722
    %v725 = vsel %vm477, %v723, 0
    %v728 = vsel %vm493, %v659, 0
    %730 = vmatprep.subr.bf16.mxu0 0
    %731 = vmatpush1.bf16.msra.mxu0 %v728
    %732 = vmatprep.subr.bf16.mxu0 0
    %733 = vmatpush1.bf16.msra.mxu0 0
    %734 = vmatprep.subr.bf16.mxu0 0
    %735 = vmatpush1.bf16.msra.mxu0 0
    %736 = vmatprep.subr.bf16.mxu0 0
    %737 = vmatpush1.bf16.msra.mxu0 0
    %738 = vmatprep.subr.bf16.mxu0 0
    %739 = vmatpush1.bf16.msra.mxu0 0
    %740 = vmatprep.subr.bf16.mxu0 0
    %741 = vmatpush1.bf16.msra.mxu0 0
    %742 = vmatprep.subr.bf16.mxu0 0
    %743 = vmatpush1.bf16.msra.mxu0 0
    %744 = vmatprep.subr.bf16.mxu0 0
    %745 = vmatpush1.bf16.msra.mxu0 0
    %746 = vmatprep.subr.bf16.mxu0 0
    %747 = vmatpush1.bf16.msra.mxu0 0
    %748 = vmatprep.subr.bf16.mxu0 0
    %749 = vmatpush1.bf16.msra.mxu0 0
    %750 = vmatprep.subr.bf16.mxu0 0
    %751 = vmatpush1.bf16.msra.mxu0 0
    %752 = vmatprep.subr.bf16.mxu0 0
    %753 = vmatpush1.bf16.msra.mxu0 0
    %754 = vmatprep.subr.bf16.mxu0 0
    %755 = vmatpush1.bf16.msra.mxu0 0
    %756 = vmatprep.subr.bf16.mxu0 0
    %757 = vmatpush1.bf16.msra.mxu0 0
    %758 = vmatprep.subr.bf16.mxu0 0
    %759 = vmatpush1.bf16.msra.mxu0 0
    %760 = vmatprep.subr.bf16.mxu0 0
    %761 = vmatpush1.bf16.msra.mxu0 0
    %762 = vmatprep.mubr.bf16.mxu0 0
    %763 = vmatmul.mubr.bf16.gmra.mrb[0].mxu0 %v725
    %v764 = vpop.f32.mrb[0].mxu0
    %v765 = vadd.f32 0.0, %v764
    %v766 = vpop.f32.mrb[0].mxu0
    %v767 = vpop.f32.mrb[0].mxu0
    %v768 = vpop.f32.mrb[0].mxu0
    %769 = vdwg.mxu0
    %771 = vrot.lane.b32.xlu0 %v657, 64
    %v772 = vpop.permute.xlu0 %771
    %774 = vrot.lane.b32.xlu0 %v658, 64
    %v775 = vpop.permute.xlu0 %774
    %v777 = vsel %vm424, %v772, 0
    %v780 = vsel %vm424, %v775, 0
    %782 = vmatprep.subr.bf16.mxu0 0
    %783 = vmatpush1.bf16.xpose.msra.mxu0 %v780
    %784 = vmatprep.subr.bf16.mxu0 0
    %785 = vmatpush1.bf16.xpose.msra.mxu0 0
    %786 = vmatprep.subr.bf16.mxu0 0
    %787 = vmatpush1.bf16.xpose.msra.mxu0 0
    %788 = vmatprep.subr.bf16.mxu0 0
    %789 = vmatpush1.bf16.xpose.msra.mxu0 0
    %790 = vmatprep.subr.bf16.mxu0 0
    %791 = vmatpush1.bf16.xpose.msra.mxu0 0
    %792 = vmatprep.subr.bf16.mxu0 0
    %793 = vmatpush1.bf16.xpose.msra.mxu0 0
    %794 = vmatprep.subr.bf16.mxu0 0
    %795 = vmatpush1.bf16.xpose.msra.mxu0 0
    %796 = vmatprep.subr.bf16.mxu0 0
    %797 = vmatpush1.bf16.xpose.msra.mxu0 0
    %798 = vmatprep.subr.bf16.mxu0 0
    %799 = vmatpush1.bf16.xpose.msra.mxu0 0
    %800 = vmatprep.subr.bf16.mxu0 0
    %801 = vmatpush1.bf16.xpose.msra.mxu0 0
    %802 = vmatprep.subr.bf16.mxu0 0
    %803 = vmatpush1.bf16.xpose.msra.mxu0 0
    %804 = vmatprep.subr.bf16.mxu0 0
    %805 = vmatpush1.bf16.xpose.msra.mxu0 0
    %806 = vmatprep.subr.bf16.mxu0 0
    %807 = vmatpush1.bf16.xpose.msra.mxu0 0
    %808 = vmatprep.subr.bf16.mxu0 0
    %809 = vmatpush1.bf16.xpose.msra.mxu0 0
    %810 = vmatprep.subr.bf16.mxu0 0
    %811 = vmatpush1.bf16.xpose.msra.mxu0 0
    %812 = vmatprep.subr.bf16.mxu0 0
    %813 = vmatpush1.bf16.xpose.msra.mxu0 0
    %814 = vmatprep.mubr.bf16.mxu0 0
    %815 = vmatmul.mubr.bf16.gmra.mrb[0].mxu0 %v777
    %v816 = vpop.f32.mrb[0].mxu0
    %v817 = vadd.f32 0.0, %v816
    %v818 = vpop.f32.mrb[0].mxu0
    %v819 = vpop.f32.mrb[0].mxu0
    %v820 = vpop.f32.mrb[0].mxu0
    %821 = vdwg.mxu0
    %v822 = vmul.f32 %v817, 0.125
    %v823 = vadd.f32 %v822, %v710
    %v824 = vsel %vm477, %v823, -inf
    %825 = vmax.xlane.f32.xlu0 %v824
    %v826 = vpop.xlane.xlu0 %825
    %v827 = vsub.f32 %v823, %v826
    %v828 = vmul.f32 %v827, 1.442695
    %v829 = vpow.pop %v828
    %v830 = vsel %vm477, %v829, 0.0
    %831 = vadd.xlane.f32.xlu0 %v830
    %v832 = vpop.xlane.xlu0 %831
    %v833 = vrcp.pop %v832
    %v834 = vmul.f32 %v829, %v833
    %v835 = vpack.c.bf16 %v834, %v834
    %837 = vrot.lane.b32.xlu0 %v659, 64
    %v838 = vpop.permute.xlu0 %837
    %v840 = vsel %vm477, %v835, 0
    %v843 = vsel %vm493, %v838, 0
    %845 = vmatprep.subr.bf16.mxu0 0
    %846 = vmatpush1.bf16.msra.mxu0 %v843
    %847 = vmatprep.subr.bf16.mxu0 0
    %848 = vmatpush1.bf16.msra.mxu0 0
    %849 = vmatprep.subr.bf16.mxu0 0
    %850 = vmatpush1.bf16.msra.mxu0 0
    %851 = vmatprep.subr.bf16.mxu0 0
    %852 = vmatpush1.bf16.msra.mxu0 0
    %853 = vmatprep.subr.bf16.mxu0 0
    %854 = vmatpush1.bf16.msra.mxu0 0
    %855 = vmatprep.subr.bf16.mxu0 0
    %856 = vmatpush1.bf16.msra.mxu0 0
    %857 = vmatprep.subr.bf16.mxu0 0
    %858 = vmatpush1.bf16.msra.mxu0 0
    %859 = vmatprep.subr.bf16.mxu0 0
    %860 = vmatpush1.bf16.msra.mxu0 0
    %861 = vmatprep.subr.bf16.mxu0 0
    %862 = vmatpush1.bf16.msra.mxu0 0
    %863 = vmatprep.subr.bf16.mxu0 0
    %864 = vmatpush1.bf16.msra.mxu0 0
    %865 = vmatprep.subr.bf16.mxu0 0
    %866 = vmatpush1.bf16.msra.mxu0 0
    %867 = vmatprep.subr.bf16.mxu0 0
    %868 = vmatpush1.bf16.msra.mxu0 0
    %869 = vmatprep.subr.bf16.mxu0 0
    %870 = vmatpush1.bf16.msra.mxu0 0
    %871 = vmatprep.subr.bf16.mxu0 0
    %872 = vmatpush1.bf16.msra.mxu0 0
    %873 = vmatprep.subr.bf16.mxu0 0
    %874 = vmatpush1.bf16.msra.mxu0 0
    %875 = vmatprep.subr.bf16.mxu0 0
    %876 = vmatpush1.bf16.msra.mxu0 0
    %877 = vmatprep.mubr.bf16.mxu0 0
    %878 = vmatmul.mubr.bf16.gmra.mrb[0].mxu0 %v840
    %v879 = vpop.f32.mrb[0].mxu0
    %v880 = vadd.f32 0.0, %v879
    %v881 = vpop.f32.mrb[0].mxu0
    %v882 = vpop.f32.mrb[0].mxu0
    %v883 = vpop.f32.mrb[0].mxu0
    %884 = vdwg.mxu0
    %886 = vrot.lane.b32.xlu0 %v880, 64
    %v887 = vpop.permute.xlu0 %886
    %v889 = vsel %vm424, %v765, %v887
    %v890 = vpack.c.bf16 %v889, %v656
    %v891 = vld [vmem:[#allocation4] sm:$0xf]
    %v892 = vld [vmem:[#allocation4 + $0x4] sm:$0xf]
    %v893 = vld [vmem:[#allocation4 + $0x8] sm:$0xf]
    %v894 = vld [vmem:[#allocation4 + $0xc] sm:$0xf]
    %v895 = vld [vmem:[#allocation4 + $0x10] sm:$0xf]
    %v896 = vld [vmem:[#allocation4 + $0x14] sm:$0xf]
    %v897 = vld [vmem:[#allocation4 + $0x18] sm:$0xf]
    %v898 = vld [vmem:[#allocation4 + $0x1c] sm:$0xf]
    %v899 = vld [vmem:[#allocation4 + $0x20] sm:$0xf]
    %v900 = vld [vmem:[#allocation4 + $0x24] sm:$0xf]
    %v901 = vld [vmem:[#allocation4 + $0x28] sm:$0xf]
    %v902 = vld [vmem:[#allocation4 + $0x2c] sm:$0xf]
    %v903 = vld [vmem:[#allocation4 + $0x30] sm:$0xf]
    %v904 = vld [vmem:[#allocation4 + $0x34] sm:$0xf]
    %v905 = vld [vmem:[#allocation4 + $0x38] sm:$0xf]
    %v906 = vld [vmem:[#allocation4 + $0x3c] sm:$0xf]
    %v907 = vld [vmem:[%s5] sm:$0x1]
    %v909 = vlaneseq
    %v910 = vshrl.u32 %v909, 7
    %v911 = vsub.s32 0, %v910
    %v912 = vrot.slane %v907, %v911
    %v930 = vunpack.c.l.b16 %v891
    %v931 = vunpack.c.l.b16 %v892
    %v932 = vunpack.c.l.b16 %v893
    %v933 = vunpack.c.l.b16 %v894
    %v934 = vunpack.c.l.b16 %v895
    %v935 = vunpack.c.l.b16 %v896
    %v936 = vunpack.c.l.b16 %v897
    %v937 = vunpack.c.l.b16 %v898
    %v938 = vunpack.c.l.b16 %v899
    %v939 = vunpack.c.l.b16 %v900
    %v940 = vunpack.c.l.b16 %v901
    %v941 = vunpack.c.l.b16 %v902
    %v942 = vunpack.c.l.b16 %v903
    %v943 = vunpack.c.l.b16 %v904
    %v944 = vunpack.c.l.b16 %v905
    %v945 = vunpack.c.l.b16 %v906
    %v946 = vpack.c.b16 %v931, %v930
    %v947 = vpack.c.b16 %v933, %v932
    %v948 = vpack.c.b16 %v935, %v934
    %v949 = vpack.c.b16 %v937, %v936
    %v950 = vpack.c.b16 %v939, %v938
    %v951 = vpack.c.b16 %v941, %v940
    %v952 = vpack.c.b16 %v943, %v942
    %v953 = vpack.c.b16 %v945, %v944
    %962 = vmatprep.subr.bf16.mxu0 0
    %963 = vmatpush1.bf16.msra.mxu0 %v946
    %964 = vmatprep.subr.bf16.mxu0 0
    %965 = vmatpush1.bf16.msra.mxu0 %v947
    %966 = vmatprep.subr.bf16.mxu0 0
    %967 = vmatpush1.bf16.msra.mxu0 %v948
    %968 = vmatprep.subr.bf16.mxu0 0
    %969 = vmatpush1.bf16.msra.mxu0 %v949
    %970 = vmatprep.subr.bf16.mxu0 0
    %971 = vmatpush1.bf16.msra.mxu0 %v950
    %972 = vmatprep.subr.bf16.mxu0 0
    %973 = vmatpush1.bf16.msra.mxu0 %v951
    %974 = vmatprep.subr.bf16.mxu0 0
    %975 = vmatpush1.bf16.msra.mxu0 %v952
    %976 = vmatprep.subr.bf16.mxu0 0
    %977 = vmatpush1.bf16.msra.mxu0 %v953
    %978 = vmatprep.subr.bf16.mxu0 0
    %979 = vmatpush1.bf16.msra.mxu0 0
    %980 = vmatprep.subr.bf16.mxu0 0
    %981 = vmatpush1.bf16.msra.mxu0 0
    %982 = vmatprep.subr.bf16.mxu0 0
    %983 = vmatpush1.bf16.msra.mxu0 0
    %984 = vmatprep.subr.bf16.mxu0 0
    %985 = vmatpush1.bf16.msra.mxu0 0
    %986 = vmatprep.subr.bf16.mxu0 0
    %987 = vmatpush1.bf16.msra.mxu0 0
    %988 = vmatprep.subr.bf16.mxu0 0
    %989 = vmatpush1.bf16.msra.mxu0 0
    %990 = vmatprep.subr.bf16.mxu0 0
    %991 = vmatpush1.bf16.msra.mxu0 0
    %992 = vmatprep.subr.bf16.mxu0 0
    %993 = vmatpush1.bf16.msra.mxu0 0
    %994 = vmatprep.mubr.bf16.mxu0 0
    %995 = vmatmul.mubr.bf16.gmra.mrb[0].mxu0 %v890
    %v996 = vpop.f32.mrb[0].mxu0
    %v997 = vadd.f32 %v912, %v996
    %v998 = vpop.f32.mrb[0].mxu0
    %v999 = vpop.f32.mrb[0].mxu0
    %v1000 = vadd.f32 %v912, %v999
    %v1001 = vpop.f32.mrb[0].mxu0
    %1002 = vdwg.mxu0
    %v1003 = vadd.f32 %v156, %v997
    %v1004 = vadd.f32 %v157, %v1000
    %v1005 = vld [vmem:[#allocation6] sm:$0x1]
    %v1006 = vld [vmem:[#allocation7] sm:$0x1]
    %1007 = vadd.xlane.f32.xlu0 %v1003
    %v1008 = vpop.xlane.xlu0 %1007
    %1009 = vadd.xlane.f32.xlu0 %v1004
    %v1010 = vpop.xlane.xlu0 %1009
    %v1011 = vrcp.pop 128.0
    %v1012 = vmul.f32 %v1008, %v1011
    %v1013 = vmul.f32 %v1010, %v1011
    %v1014 = vsub.f32 %v1003, %v1012
    %v1015 = vsub.f32 %v1004, %v1013
    %v1016 = vmul.f32 %v1014, %v1014
    %v1017 = vmul.f32 %v1015, %v1015
    %1018 = vadd.xlane.f32.xlu0 %v1016
    %v1019 = vpop.xlane.xlu0 %1018
    %1020 = vadd.xlane.f32.xlu0 %v1017
    %v1021 = vpop.xlane.xlu0 %1020
    %v1022 = vmul.f32 %v1019, %v1011
    %v1023 = vmul.f32 %v1021, %v1011
    %v1024 = vadd.f32 %v1022, 1e-12
    %v1025 = vadd.f32 %v1023, 1e-12
    %v1026 = vrsqrt.pop %v1024
    %v1027 = vrsqrt.pop %v1025
    %v1028 = vmul.f32 %v1014, %v1026
    %v1029 = vmul.f32 %v1015, %v1027
    %v1031 = vlaneseq
    %v1032 = vshrl.u32 %v1031, 7
    %v1033 = vsub.s32 0, %v1032
    %v1034 = vrot.slane %v1005, %v1033
    %v1036 = vmul.f32 %v1028, %v1034
    %v1037 = vmul.f32 %v1029, %v1034
    %v1039 = vlaneseq
    %v1040 = vshrl.u32 %v1039, 7
    %v1041 = vsub.s32 0, %v1040
    %v1042 = vrot.slane %v1006, %v1041
    %v1044 = vadd.f32 %v1036, %v1042
    %v1045 = vadd.f32 %v1037, %v1042
    %v1046 = vpack.c.bf16 %v1045, %v1044
    %v1047 = vld [vmem:[%s8] sm:$0xff]
    %v1048 = vld [vmem:[%s8 + $0x8] sm:$0xff]
    %v1049 = vld [vmem:[%s8 + $0x10] sm:$0xff]
    %v1050 = vld [vmem:[%s8 + $0x18] sm:$0xff]
    %v1051 = vld [vmem:[%s8 + $0x20] sm:$0xff]
    %v1052 = vld [vmem:[%s8 + $0x28] sm:$0xff]
    %v1053 = vld [vmem:[%s8 + $0x30] sm:$0xff]
    %v1054 = vld [vmem:[%s8 + $0x38] sm:$0xff]
    %v1055 = vld [vmem:[%s8 + $0x40] sm:$0xff]
    %v1056 = vld [vmem:[%s8 + $0x48] sm:$0xff]
    %v1057 = vld [vmem:[%s8 + $0x50] sm:$0xff]
    %v1058 = vld [vmem:[%s8 + $0x58] sm:$0xff]
    %v1059 = vld [vmem:[%s8 + $0x60] sm:$0xff]
    %v1060 = vld [vmem:[%s8 + $0x68] sm:$0xff]
    %v1061 = vld [vmem:[%s8 + $0x70] sm:$0xff]
    %v1062 = vld [vmem:[%s8 + $0x78] sm:$0xff]
    %v1063 = vld [vmem:[#allocation9] sm:$0x3]
    %v1065 = vlaneseq
    %v1066 = vshrl.u32 %v1065, 7
    %v1067 = vsub.s32 0, %v1066
    %v1068 = vrot.slane %v1063, %v1067
    %v1069 = vlaneseq
    %v1070 = vshrl.u32 %v1069, 7
    %v1071 = vsub.s32 1, %v1070
    %v1072 = vrot.slane %v1063, %v1071
    %v1091 = vunpack.c.l.b16 %v1047
    %v1092 = vunpack.c.h.b16 %v1047
    %v1093 = vunpack.c.l.b16 %v1048
    %v1094 = vunpack.c.h.b16 %v1048
    %v1095 = vunpack.c.l.b16 %v1049
    %v1096 = vunpack.c.h.b16 %v1049
    %v1097 = vunpack.c.l.b16 %v1050
    %v1098 = vunpack.c.h.b16 %v1050
    %v1099 = vunpack.c.l.b16 %v1051
    %v1100 = vunpack.c.h.b16 %v1051
    %v1101 = vunpack.c.l.b16 %v1052
    %v1102 = vunpack.c.h.b16 %v1052
    %v1103 = vunpack.c.l.b16 %v1053
    %v1104 = vunpack.c.h.b16 %v1053
    %v1105 = vunpack.c.l.b16 %v1054
    %v1106 = vunpack.c.h.b16 %v1054
    %v1107 = vunpack.c.l.b16 %v1055
    %v1108 = vunpack.c.h.b16 %v1055
    %v1109 = vunpack.c.l.b16 %v1056
    %v1110 = vunpack.c.h.b16 %v1056
    %v1111 = vunpack.c.l.b16 %v1057
    %v1112 = vunpack.c.h.b16 %v1057
    %v1113 = vunpack.c.l.b16 %v1058
    %v1114 = vunpack.c.h.b16 %v1058
    %v1115 = vunpack.c.l.b16 %v1059
    %v1116 = vunpack.c.h.b16 %v1059
    %v1117 = vunpack.c.l.b16 %v1060
    %v1118 = vunpack.c.h.b16 %v1060
    %v1119 = vunpack.c.l.b16 %v1061
    %v1120 = vunpack.c.h.b16 %v1061
    %v1121 = vunpack.c.l.b16 %v1062
    %v1122 = vunpack.c.h.b16 %v1062
    %v1123 = vpack.c.b16 %v1093, %v1091
    %v1124 = vpack.c.b16 %v1094, %v1092
    %v1125 = vpack.c.b16 %v1097, %v1095
    %v1126 = vpack.c.b16 %v1098, %v1096
    %v1127 = vpack.c.b16 %v1101, %v1099
    %v1128 = vpack.c.b16 %v1102, %v1100
    %v1129 = vpack.c.b16 %v1105, %v1103
    %v1130 = vpack.c.b16 %v1106, %v1104
    %v1131 = vpack.c.b16 %v1109, %v1107
    %v1132 = vpack.c.b16 %v1110, %v1108
    %v1133 = vpack.c.b16 %v1113, %v1111
    %v1134 = vpack.c.b16 %v1114, %v1112
    %v1135 = vpack.c.b16 %v1117, %v1115
    %v1136 = vpack.c.b16 %v1118, %v1116
    %v1137 = vpack.c.b16 %v1121, %v1119
    %v1138 = vpack.c.b16 %v1122, %v1120
    %1155 = vmatprep.subr.bf16.mxu0 %v1124
    %1156 = vmatpush1.bf16.msra.mxu0 %v1123
    %1157 = vmatprep.subr.bf16.mxu0 %v1126
    %1158 = vmatpush1.bf16.msra.mxu0 %v1125
    %1159 = vmatprep.subr.bf16.mxu0 %v1128
    %1160 = vmatpush1.bf16.msra.mxu0 %v1127
    %1161 = vmatprep.subr.bf16.mxu0 %v1130
    %1162 = vmatpush1.bf16.msra.mxu0 %v1129
    %1163 = vmatprep.subr.bf16.mxu0 %v1132
    %1164 = vmatpush1.bf16.msra.mxu0 %v1131
    %1165 = vmatprep.subr.bf16.mxu0 %v1134
    %1166 = vmatpush1.bf16.msra.mxu0 %v1133
    %1167 = vmatprep.subr.bf16.mxu0 %v1136
    %1168 = vmatpush1.bf16.msra.mxu0 %v1135
    %1169 = vmatprep.subr.bf16.mxu0 %v1138
    %1170 = vmatpush1.bf16.msra.mxu0 %v1137
    %1171 = vmatprep.subr.bf16.mxu0 0
    %1172 = vmatpush1.bf16.msra.mxu0 0
    %1173 = vmatprep.subr.bf16.mxu0 0
    %1174 = vmatpush1.bf16.msra.mxu0 0
    %1175 = vmatprep.subr.bf16.mxu0 0
    %1176 = vmatpush1.bf16.msra.mxu0 0
    %1177 = vmatprep.subr.bf16.mxu0 0
    %1178 = vmatpush1.bf16.msra.mxu0 0
    %1179 = vmatprep.subr.bf16.mxu0 0
    %1180 = vmatpush1.bf16.msra.mxu0 0
    %1181 = vmatprep.subr.bf16.mxu0 0
    %1182 = vmatpush1.bf16.msra.mxu0 0
    %1183 = vmatprep.subr.bf16.mxu0 0
    %1184 = vmatpush1.bf16.msra.mxu0 0
    %1185 = vmatprep.subr.bf16.mxu0 0
    %1186 = vmatpush1.bf16.msra.mxu0 0
    %1187 = vmatprep.mubr.bf16.mxu0 0
    %1188 = vmatmul.mubr.bf16.gmra.mrb[0].mxu0 %v1046
    %v1189 = vpop.f32.mrb[0].mxu0
    %v1190 = vadd.f32 %v1068, %v1189
    %v1191 = vpop.f32.mrb[0].mxu0
    %v1192 = vadd.f32 %v1072, %v1191
    %v1193 = vpop.f32.mrb[0].mxu0
    %v1194 = vadd.f32 %v1068, %v1193
    %v1195 = vpop.f32.mrb[0].mxu0
    %v1196 = vadd.f32 %v1072, %v1195
    %1197 = vdwg.mxu0
    %v1198 = vmul.f32 %v1190, 0.5
    %v1199 = vmul.f32 %v1192, 0.5
    %v1200 = vmul.f32 %v1194, 0.5
    %v1201 = vmul.f32 %v1196, 0.5
    %v1202 = vmul.f32 %v1190, 0.044715
    %v1203 = vmul.f32 %v1192, 0.044715
    %v1204 = vmul.f32 %v1194, 0.044715
    %v1205 = vmul.f32 %v1196, 0.044715
    %v1206 = vmul.f32 %v1202, %v1190
    %v1207 = vmul.f32 %v1203, %v1192
    %v1208 = vmul.f32 %v1204, %v1194
    %v1209 = vmul.f32 %v1205, %v1196
    %v1210 = vmul.f32 %v1206, %v1190
    %v1211 = vmul.f32 %v1207, %v1192
    %v1212 = vmul.f32 %v1208, %v1194
    %v1213 = vmul.f32 %v1209, %v1196
    %v1214 = vadd.f32 %v1190, %v1210
    %v1215 = vadd.f32 %v1192, %v1211
    %v1216 = vadd.f32 %v1194, %v1212
    %v1217 = vadd.f32 %v1196, %v1213
    %v1218 = vmul.f32 %v1214, 0.7978846
    %v1219 = vmul.f32 %v1215, 0.7978846
    %v1220 = vmul.f32 %v1216, 0.7978846
    %v1221 = vmul.f32 %v1217, 0.7978846
    %v1222 = vtanh.pop %v1218
    %v1223 = vtanh.pop %v1219
    %v1224 = vtanh.pop %v1220
    %v1225 = vtanh.pop %v1221
    %v1226 = vadd.f32 %v1222, 1.0
    %v1227 = vadd.f32 %v1223, 1.0
    %v1228 = vadd.f32 %v1224, 1.0
    %v1229 = vadd.f32 %v1225, 1.0
    %v1230 = vmul.f32 %v1198, %v1226
    %v1231 = vmul.f32 %v1199, %v1227
    %v1232 = vmul.f32 %v1200, %v1228
    %v1233 = vmul.f32 %v1201, %v1229
    %v1234 = vpack.c.bf16 %v1232, %v1230
    %v1235 = vpack.c.bf16 %v1233, %v1231
    %v1236 = vld [vmem:[#allocation10] sm:$0xf]
    %v1237 = vld [vmem:[#allocation10 + $0x4] sm:$0xf]
    %v1238 = vld [vmem:[#allocation10 + $0x8] sm:$0xf]
    %v1239 = vld [vmem:[#allocation10 + $0xc] sm:$0xf]
    %v1240 = vld [vmem:[#allocation10 + $0x10] sm:$0xf]
    %v1241 = vld [vmem:[#allocation10 + $0x14] sm:$0xf]
    %v1242 = vld [vmem:[#allocation10 + $0x18] sm:$0xf]
    %v1243 = vld [vmem:[#allocation10 + $0x1c] sm:$0xf]
    %v1244 = vld [vmem:[#allocation10 + $0x20] sm:$0xf]
    %v1245 = vld [vmem:[#allocation10 + $0x24] sm:$0xf]
    %v1246 = vld [vmem:[#allocation10 + $0x28] sm:$0xf]
    %v1247 = vld [vmem:[#allocation10 + $0x2c] sm:$0xf]
    %v1248 = vld [vmem:[#allocation10 + $0x30] sm:$0xf]
    %v1249 = vld [vmem:[#allocation10 + $0x34] sm:$0xf]
    %v1250 = vld [vmem:[#allocation10 + $0x38] sm:$0xf]
    %v1251 = vld [vmem:[#allocation10 + $0x3c] sm:$0xf]
    %v1252 = vld [vmem:[#allocation10 + $0x40] sm:$0xf]
    %v1253 = vld [vmem:[#allocation10 + $0x44] sm:$0xf]
    %v1254 = vld [vmem:[#allocation10 + $0x48] sm:$0xf]
    %v1255 = vld [vmem:[#allocation10 + $0x4c] sm:$0xf]
    %v1256 = vld [vmem:[#allocation10 + $0x50] sm:$0xf]
    %v1257 = vld [vmem:[#allocation10 + $0x54] sm:$0xf]
    %v1258 = vld [vmem:[#allocation10 + $0x58] sm:$0xf]
    %v1259 = vld [vmem:[#allocation10 + $0x5c] sm:$0xf]
    %v1260 = vld [vmem:[#allocation10 + $0x60] sm:$0xf]
    %v1261 = vld [vmem:[#allocation10 + $0x64] sm:$0xf]
    %v1262 = vld [vmem:[#allocation10 + $0x68] sm:$0xf]
    %v1263 = vld [vmem:[#allocation10 + $0x6c] sm:$0xf]
    %v1264 = vld [vmem:[#allocation10 + $0x70] sm:$0xf]
    %v1265 = vld [vmem:[#allocation10 + $0x74] sm:$0xf]
    %v1266 = vld [vmem:[#allocation10 + $0x78] sm:$0xf]
    %v1267 = vld [vmem:[#allocation10 + $0x7c] sm:$0xf]
    %v1268 = vld [vmem:[#allocation12] sm:$0x1]
    %v1270 = vlaneseq
    %v1271 = vshrl.u32 %v1270, 7
    %v1272 = vsub.s32 0, %v1271
    %v1273 = vrot.slane %v1268, %v1272
    %v1307 = vunpack.c.l.b16 %v1236
    %v1308 = vunpack.c.l.b16 %v1237
    %v1309 = vunpack.c.l.b16 %v1238
    %v1310 = vunpack.c.l.b16 %v1239
    %v1311 = vunpack.c.l.b16 %v1240
    %v1312 = vunpack.c.l.b16 %v1241
    %v1313 = vunpack.c.l.b16 %v1242
    %v1314 = vunpack.c.l.b16 %v1243
    %v1315 = vunpack.c.l.b16 %v1244
    %v1316 = vunpack.c.l.b16 %v1245
    %v1317 = vunpack.c.l.b16 %v1246
    %v1318 = vunpack.c.l.b16 %v1247
    %v1319 = vunpack.c.l.b16 %v1248
    %v1320 = vunpack.c.l.b16 %v1249
    %v1321 = vunpack.c.l.b16 %v1250
    %v1322 = vunpack.c.l.b16 %v1251
    %v1323 = vunpack.c.l.b16 %v1252
    %v1324 = vunpack.c.l.b16 %v1253
    %v1325 = vunpack.c.l.b16 %v1254
    %v1326 = vunpack.c.l.b16 %v1255
    %v1327 = vunpack.c.l.b16 %v1256
    %v1328 = vunpack.c.l.b16 %v1257
    %v1329 = vunpack.c.l.b16 %v1258
    %v1330 = vunpack.c.l.b16 %v1259
    %v1331 = vunpack.c.l.b16 %v1260
    %v1332 = vunpack.c.l.b16 %v1261
    %v1333 = vunpack.c.l.b16 %v1262
    %v1334 = vunpack.c.l.b16 %v1263
    %v1335 = vunpack.c.l.b16 %v1264
    %v1336 = vunpack.c.l.b16 %v1265
    %v1337 = vunpack.c.l.b16 %v1266
    %v1338 = vunpack.c.l.b16 %v1267
    %v1339 = vpack.c.b16 %v1308, %v1307
    %v1340 = vpack.c.b16 %v1310, %v1309
    %v1341 = vpack.c.b16 %v1312, %v1311
    %v1342 = vpack.c.b16 %v1314, %v1313
    %v1343 = vpack.c.b16 %v1316, %v1315
    %v1344 = vpack.c.b16 %v1318, %v1317
    %v1345 = vpack.c.b16 %v1320, %v1319
    %v1346 = vpack.c.b16 %v1322, %v1321
    %v1347 = vpack.c.b16 %v1324, %v1323
    %v1348 = vpack.c.b16 %v1326, %v1325
    %v1349 = vpack.c.b16 %v1328, %v1327
    %v1350 = vpack.c.b16 %v1330, %v1329
    %v1351 = vpack.c.b16 %v1332, %v1331
    %v1352 = vpack.c.b16 %v1334, %v1333
    %v1353 = vpack.c.b16 %v1336, %v1335
    %v1354 = vpack.c.b16 %v1338, %v1337
    %1371 = vmatprep.subr.bf16.mxu0 0
    %1372 = vmatpush1.bf16.msra.mxu0 %v1339
    %1373 = vmatprep.subr.bf16.mxu0 0
    %1374 = vmatpush1.bf16.msra.mxu0 %v1340
    %1375 = vmatprep.subr.bf16.mxu0 0
    %1376 = vmatpush1.bf16.msra.mxu0 %v1341
    %1377 = vmatprep.subr.bf16.mxu0 0
    %1378 = vmatpush1.bf16.msra.mxu0 %v1342
    %1379 = vmatprep.subr.bf16.mxu0 0
    %1380 = vmatpush1.bf16.msra.mxu0 %v1343
    %1381 = vmatprep.subr.bf16.mxu0 0
    %1382 = vmatpush1.bf16.msra.mxu0 %v1344
    %1383 = vmatprep.subr.bf16.mxu0 0
    %1384 = vmatpush1.bf16.msra.mxu0 %v1345
    %1385 = vmatprep.subr.bf16.mxu0 0
    %1386 = vmatpush1.bf16.msra.mxu0 %v1346
    %1387 = vmatprep.subr.bf16.mxu0 0
    %1388 = vmatpush1.bf16.msra.mxu0 %v1347
    %1389 = vmatprep.subr.bf16.mxu0 0
    %1390 = vmatpush1.bf16.msra.mxu0 %v1348
    %1391 = vmatprep.subr.bf16.mxu0 0
    %1392 = vmatpush1.bf16.msra.mxu0 %v1349
    %1393 = vmatprep.subr.bf16.mxu0 0
    %1394 = vmatpush1.bf16.msra.mxu0 %v1350
    %1395 = vmatprep.subr.bf16.mxu0 0
    %1396 = vmatpush1.bf16.msra.mxu0 %v1351
    %1397 = vmatprep.subr.bf16.mxu0 0
    %1398 = vmatpush1.bf16.msra.mxu0 %v1352
    %1399 = vmatprep.subr.bf16.mxu0 0
    %1400 = vmatpush1.bf16.msra.mxu0 %v1353
    %1401 = vmatprep.subr.bf16.mxu0 0
    %1402 = vmatpush1.bf16.msra.mxu0 %v1354
    %1403 = vmatprep.mubr.bf16.mxu0 %v1235
    %1404 = vmatmul.mubr.bf16.gmra.mrb[0].mxu0 %v1234
    %v1405 = vpop.f32.mrb[0].mxu0
    %v1406 = vadd.f32 %v1273, %v1405
    %v1407 = vpop.f32.mrb[0].mxu0
    %v1408 = vpop.f32.mrb[0].mxu0
    %v1409 = vadd.f32 %v1273, %v1408
    %v1410 = vpop.f32.mrb[0].mxu0
    %1411 = vdwg.mxu0
    %v1412 = vadd.f32 %v1044, %v1406
    %v1413 = vadd.f32 %v1045, %v1409
    %v1414 = vld [vmem:[#allocation13] sm:$0x1]
    %v1415 = vld [vmem:[#allocation15] sm:$0x1]
    %1416 = vadd.xlane.f32.xlu0 %v1412
    %v1417 = vpop.xlane.xlu0 %1416
    %1418 = vadd.xlane.f32.xlu0 %v1413
    %v1419 = vpop.xlane.xlu0 %1418
    %v1420 = vmul.f32 %v1417, %v1011
    %v1421 = vmul.f32 %v1419, %v1011
    %v1422 = vsub.f32 %v1412, %v1420
    %v1423 = vsub.f32 %v1413, %v1421
    %v1424 = vmul.f32 %v1422, %v1422
    %v1425 = vmul.f32 %v1423, %v1423
    %1426 = vadd.xlane.f32.xlu0 %v1424
    %v1427 = vpop.xlane.xlu0 %1426
    %1428 = vadd.xlane.f32.xlu0 %v1425
    %v1429 = vpop.xlane.xlu0 %1428
    %v1430 = vmul.f32 %v1427, %v1011
    %v1431 = vmul.f32 %v1429, %v1011
    %v1432 = vadd.f32 %v1430, 1e-12
    %v1433 = vadd.f32 %v1431, 1e-12
    %v1434 = vrsqrt.pop %v1432
    %v1435 = vrsqrt.pop %v1433
    %v1436 = vmul.f32 %v1422, %v1434
    %v1437 = vmul.f32 %v1423, %v1435
    %v1439 = vlaneseq
    %v1440 = vshrl.u32 %v1439, 7
    %v1441 = vsub.s32 0, %v1440
    %v1442 = vrot.slane %v1414, %v1441
    %v1444 = vmul.f32 %v1436, %v1442
    %v1445 = vmul.f32 %v1437, %v1442
    %v1447 = vlaneseq
    %v1448 = vshrl.u32 %v1447, 7
    %v1449 = vsub.s32 0, %v1448
    %v1450 = vrot.slane %v1415, %v1449
    %v1452 = vadd.f32 %v1444, %v1450
    %v1453 = vadd.f32 %v1445, %v1450
    %1454 = vst [vmem:[%s14] sm:$0xff] %v1452
    %1455 = vst [vmem:[%s14 + $0x8] sm:$0xff] %v1453
    // Predicated region
    $region94: #{bert_classifier_forward.5} parent=1 // pred_check
      _
    $region95: #{bert_classifier_forward.5} parent=1 // pred_check_branch
      %1457 = sbr.rel (0) target = $region97
    $region96: #{bert_classifier_forward.5} parent=1 // pred_region
      _
    $region97: #{bert_classifier_forward.5} parent=1 // pred_fallthru
      _
    // Predicated region
    $region98: #{bert_classifier_forward.5} parent=1 // pred_check
      _
    $region99: #{bert_classifier_forward.5} parent=1 // pred_check_branch
      %1459 = sbr.rel (0) target = $region101
    $region100: #{bert_classifier_forward.5} parent=1 // pred_region
      _
    $region101: #{bert_classifier_forward.5} parent=1 // pred_fallthru
      _
    %1460 = vsyncpa [#allocation3], 1
    %1461 = vsyncpa [#allocation5], 1
    %1462 = vsyncpa [#allocation8], 1
    %1463 = vsyncpa [#allocation11], 1
    %1464 = vsyncpa [#allocation14], 1

</llo_original>
